<compile_context>
chip_gen: v7x
topology: tpu7x:2x2x1
jax: 0.10.0
libtpu: 0.0.40
codegen_flags: <defaults>
</compile_context>

<pallas_src>
import functools

import jax
import jax.numpy as jnp
from jax.experimental import pallas as pl
from jax.experimental.pallas import tpu as pltpu

EPS = 1e-5
BF16 = jnp.bfloat16


def _layernorm(x, g, b):
    mu = jnp.mean(x, axis=-1, keepdims=True)
    var = jnp.mean((x - mu) ** 2, axis=-1, keepdims=True)
    return (x - mu) * jax.lax.rsqrt(var + EPS) * g + b


def _mm(a, w_bf16):
    # (M, K) @ (O, K)^T -> (M, O); bf16 MXU inputs, f32 accumulation.
    return jnp.einsum('mk,ok->mo', a.astype(BF16), w_bf16,
                      preferred_element_type=jnp.float32)


# --------------------------- fused kernel -----------------------------------


def acmr_fused_kernel(num_heads, num_layers,
                      tok_ref, mkt_ref, neg_ref, sm_ref, hist_ref,
                      emb_g_ref, emb_b_ref,
                      wq_ref, bq_ref, wk_ref, bk_ref, wv_ref, bv_ref,
                      wo_ref, bo_ref, ln1w_ref, ln1b_ref,
                      w1_ref, b1_ref, w2_ref, b2_ref, ln2w_ref, ln2b_ref,
                      wu_ref, wi_ref, ob_ref,
                      o_ref):
    # per-grid-step (one batch element) block shapes:
    #   tok/mkt: (1,S,H)  neg: (1,1,S)  sm: (1,1,S-1)  hist: (1,1,1)  o: (1,1,1)
    S, H = tok_ref.shape[1], tok_ref.shape[2]
    dh = H // num_heads
    scale = 1.0 / float(dh) ** 0.5

    # 1) embedding add + LayerNorm (dropout -> identity in eval mode)
    x = _layernorm(tok_ref[0] + mkt_ref[0], emb_g_ref[...], emb_b_ref[...])  # (S,H)
    neg = neg_ref[0]                                   # (1,S) key-padding bias

    # 2) transformer encoder layers (post-LN, ReLU FFN, eps=1e-5)
    for l in range(num_layers):
        # --- multi-head self-attention ---
        q = (_mm(x, wq_ref[l]) + bq_ref[l]).reshape(S, num_heads, dh).transpose(1, 0, 2)
        k = (_mm(x, wk_ref[l]) + bk_ref[l]).reshape(S, num_heads, dh).transpose(1, 0, 2)
        v = (_mm(x, wv_ref[l]) + bv_ref[l]).reshape(S, num_heads, dh).transpose(1, 0, 2)

        s = jnp.einsum('nqd,nkd->nqk', q.astype(BF16), k.astype(BF16),
                       preferred_element_type=jnp.float32) * scale
        s = s + neg[None, :, :]                        # broadcast (1,1,S)
        s = s - jnp.max(s, axis=-1, keepdims=True)
        p = jnp.exp(s)
        p = p * pl.reciprocal(jnp.sum(p, axis=-1, keepdims=True), approx=True)

        ctx = jnp.einsum('nqk,nkd->nqd', p.astype(BF16), v.astype(BF16),
                         preferred_element_type=jnp.float32)
        ctx = ctx.transpose(1, 0, 2).reshape(S, H)

        attn = _mm(ctx, wo_ref[l]) + bo_ref[l]
        x = _layernorm(x + attn, ln1w_ref[l], ln1b_ref[l])

        # --- feed-forward (ReLU) ---
        h1 = jnp.maximum(_mm(x, w1_ref[l]) + b1_ref[l], 0.0)
        ff = _mm(h1, w2_ref[l]) + b2_ref[l]
        x = _layernorm(x + ff, ln2w_ref[l], ln2b_ref[l])

    # 3) head: masked mean-pool of history, split Linear(2H->1), Sigmoid
    sm = sm_ref[0]                                     # (1, S-1)
    user = jnp.einsum('bs,sh->bh', sm.astype(BF16), x[:-1, :].astype(BF16),
                      preferred_element_type=jnp.float32)          # (1, H)
    user = user * pl.reciprocal(hist_ref[0], approx=True)          # / history_num
    item = x[-1:, :]                                                # (1, H)

    logit = _mm(user, wu_ref[...]) + _mm(item, wi_ref[...]) + ob_ref[...]   # (1,1)
    o_ref[...] = jax.nn.sigmoid(logit).reshape(1, 1, 1)


# --------------------------- parameters -------------------------------------


def init_params(key, vocab_size, num_markets, hidden, n_layers):
    ffn = 4 * hidden
    keys = jax.random.split(key, 3 + 4 * n_layers)
    kit = iter(keys)

    def w(shape, scale=0.02):
        return jax.random.normal(next(kit), shape, jnp.float32) * scale

    token = w((vocab_size, hidden)).at[0].set(0.0)    # padding_idx = 0
    market = w((num_markets + 1, hidden))
    params = dict(
        token=token,
        market=market,
        emb_ln_g=jnp.ones((hidden,), jnp.float32),
        emb_ln_b=jnp.zeros((hidden,), jnp.float32),
        layers=[],
        out_w=w((1, 2 * hidden)),
        out_b=jnp.zeros((1,), jnp.float32),
    )
    for _ in range(n_layers):
        params['layers'].append(dict(
            wqkv=w((3 * hidden, hidden)),
            bqkv=jnp.zeros((3 * hidden,), jnp.float32),
            wo=w((hidden, hidden)),
            bo=jnp.zeros((hidden,), jnp.float32),
            ln1w=jnp.ones((hidden,), jnp.float32),
            ln1b=jnp.zeros((hidden,), jnp.float32),
            w1=w((ffn, hidden)),
            b1=jnp.zeros((ffn,), jnp.float32),
            w2=w((hidden, ffn)),
            b2=jnp.zeros((hidden,), jnp.float32),
            ln2w=jnp.ones((hidden,), jnp.float32),
            ln2b=jnp.zeros((hidden,), jnp.float32),
        ))
    return params


def _pack_weights(params):
    """Stack per-layer weights along a leading layer axis, split fused QKV and
    the head Linear, cast matmul weights to bf16.  Done once, in plain JAX."""
    H = params['emb_ln_g'].shape[0]
    layers = params['layers']

    def stk(fn):
        return jnp.stack([fn(l) for l in layers], axis=0)

    packed = [
        params['emb_ln_g'].reshape(1, H),                       # emb_g
        params['emb_ln_b'].reshape(1, H),                       # emb_b
        stk(lambda l: l['wqkv'][0 * H:1 * H]).astype(BF16),     # wq  (L,H,H)
        stk(lambda l: l['bqkv'][0 * H:1 * H].reshape(1, H)),    # bq  (L,1,H)
        stk(lambda l: l['wqkv'][1 * H:2 * H]).astype(BF16),     # wk
        stk(lambda l: l['bqkv'][1 * H:2 * H].reshape(1, H)),    # bk
        stk(lambda l: l['wqkv'][2 * H:3 * H]).astype(BF16),     # wv
        stk(lambda l: l['bqkv'][2 * H:3 * H].reshape(1, H)),    # bv
        stk(lambda l: l['wo']).astype(BF16),                    # wo  (L,H,H)
        stk(lambda l: l['bo'].reshape(1, H)),                   # bo
        stk(lambda l: l['ln1w'].reshape(1, H)),                 # ln1w
        stk(lambda l: l['ln1b'].reshape(1, H)),                 # ln1b
        stk(lambda l: l['w1']).astype(BF16),                    # w1  (L,4H,H)
        stk(lambda l: l['b1'].reshape(1, -1)),                  # b1  (L,1,4H)
        stk(lambda l: l['w2']).astype(BF16),                    # w2  (L,H,4H)
        stk(lambda l: l['b2'].reshape(1, H)),                   # b2
        stk(lambda l: l['ln2w'].reshape(1, H)),                 # ln2w
        stk(lambda l: l['ln2b'].reshape(1, H)),                 # ln2b
        params['out_w'][:, :H].astype(BF16),                    # wu (user half)
        params['out_w'][:, H:].astype(BF16),                    # wi (item half)
        params['out_b'].reshape(1, 1),                          # ob
    ]
    return packed


# ----------------------------- forward --------------------------------------


def acmr_forward(params, x_ids, mkt_ids, history_num, seq_mask, *, num_heads):
    # Embedding gathers are glue (data-dependent row lookup), done in plain JAX.
    tok = params['token'][x_ids]          # (B,S,H)
    mkt = params['market'][mkt_ids]       # (B,S,H)
    B, S, H = tok.shape
    L = len(params['layers'])

    # key-padding bias computed once (hoisted out of the layer loop)
    neg = jnp.where(x_ids <= 0, -1e9, 0.0).astype(jnp.float32).reshape(B, 1, S)
    sm = seq_mask.astype(jnp.float32).reshape(B, 1, S - 1)
    hist = history_num.astype(jnp.float32).reshape(B, 1, 1)

    weights = _pack_weights(params)

    # per-batch blocks (grid over batch, "parallel" for v7x dual-TC)
    batch_specs = [
        pl.BlockSpec((1, S, H), lambda b: (b, 0, 0)),       # tok
        pl.BlockSpec((1, S, H), lambda b: (b, 0, 0)),       # mkt
        pl.BlockSpec((1, 1, S), lambda b: (b, 0, 0)),       # neg
        pl.BlockSpec((1, 1, S - 1), lambda b: (b, 0, 0)),   # seq mask
        pl.BlockSpec((1, 1, 1), lambda b: (b, 0, 0)),       # history num
    ]

    def full_spec(arr):
        n = arr.ndim
        return pl.BlockSpec(arr.shape, lambda b, n=n: (0,) * n)

    grid_spec = pltpu.PrefetchScalarGridSpec(
        num_scalar_prefetch=0,
        grid=(B,),
        in_specs=batch_specs + [full_spec(w) for w in weights],
        out_specs=pl.BlockSpec((1, 1, 1), lambda b: (b, 0, 0)),
    )

    out = pl.pallas_call(
        functools.partial(acmr_fused_kernel, num_heads, L),
        out_shape=jax.ShapeDtypeStruct((B, 1, 1), jnp.float32),
        grid_spec=grid_spec,
        compiler_params=pltpu.CompilerParams(
            dimension_semantics=("parallel",)),
    )(tok, mkt, neg, sm, hist, *weights)

    return out.reshape(B, 1)


# ------------------------------- main ----------------------------------------

if __name__ == "__main__":
    config = dict(
        bert_max_len=8,
        user_num=10,
        item_num=50,
        bert_num_blocks=2,
        bert_num_heads=2,
        latent_dim=32,
        dropout=0.3,
        num_mkts=4,
    )
    B = 2
    S = config['bert_max_len']
    H = config['latent_dim']
    vocab_size = int(config['item_num'] + 1) + 2    # num_items + 2

    key = jax.random.PRNGKey(0)
    kx, km, ksm, kp = jax.random.split(key, 4)

    # x: (B,S) item ids, with a couple of padding (0) positions at the front
    x_ids = jax.random.randint(kx, (B, S), 1, vocab_size, dtype=jnp.int32)
    x_ids = x_ids.at[:, :2].set(0)
    # market: (B,S) market ids
    mkt_ids = jax.random.randint(km, (B, S), 0, config['num_mkts'] + 1,
                                 dtype=jnp.int32)
    # sequenceMask: (B, S-1) float {0,1}; history_num: (B,)
    seq_mask = (jax.random.uniform(ksm, (B, S - 1)) > 0.3).astype(jnp.float32)
    history_num = jnp.maximum(jnp.sum(seq_mask, axis=-1), 1.0)

    params = init_params(kp, vocab_size, config['num_mkts'], H,
                         config['bert_num_blocks'])

    fwd = jax.jit(functools.partial(acmr_forward,
                                    num_heads=config['bert_num_heads']))
    out = fwd(params, x_ids, mkt_ids, history_num, seq_mask)
    jax.block_until_ready(out)
    assert out.shape == (B, 1)
    print("KERNEL_OK")
</pallas_src>

<mosaic_0001>
module attributes {stable_mosaic.version = 11 : i64} {
  func.func @acmr_fused_kernel(%arg0: i32, %arg1: memref<1x8x32xf32, #tpu.memory_space<vmem>>, %arg2: memref<1x8x32xf32, #tpu.memory_space<vmem>>, %arg3: memref<1x1x8xf32, #tpu.memory_space<vmem>>, %arg4: memref<1x1x7xf32, #tpu.memory_space<vmem>>, %arg5: memref<1x1x1xf32, #tpu.memory_space<vmem>>, %arg6: memref<1x32xf32, #tpu.memory_space<vmem>>, %arg7: memref<1x32xf32, #tpu.memory_space<vmem>>, %arg8: memref<2x32x32xbf16, #tpu.memory_space<vmem>>, %arg9: memref<2x1x32xf32, #tpu.memory_space<vmem>>, %arg10: memref<2x32x32xbf16, #tpu.memory_space<vmem>>, %arg11: memref<2x1x32xf32, #tpu.memory_space<vmem>>, %arg12: memref<2x32x32xbf16, #tpu.memory_space<vmem>>, %arg13: memref<2x1x32xf32, #tpu.memory_space<vmem>>, %arg14: memref<2x32x32xbf16, #tpu.memory_space<vmem>>, %arg15: memref<2x1x32xf32, #tpu.memory_space<vmem>>, %arg16: memref<2x1x32xf32, #tpu.memory_space<vmem>>, %arg17: memref<2x1x32xf32, #tpu.memory_space<vmem>>, %arg18: memref<2x128x32xbf16, #tpu.memory_space<vmem>>, %arg19: memref<2x1x128xf32, #tpu.memory_space<vmem>>, %arg20: memref<2x32x128xbf16, #tpu.memory_space<vmem>>, %arg21: memref<2x1x32xf32, #tpu.memory_space<vmem>>, %arg22: memref<2x1x32xf32, #tpu.memory_space<vmem>>, %arg23: memref<2x1x32xf32, #tpu.memory_space<vmem>>, %arg24: memref<1x32xbf16, #tpu.memory_space<vmem>>, %arg25: memref<1x32xbf16, #tpu.memory_space<vmem>>, %arg26: memref<1x1xf32, #tpu.memory_space<vmem>>, %arg27: memref<1x1x1xf32, #tpu.memory_space<vmem>>) attributes {dimension_semantics = [#tpu.dimension_semantics<parallel>], iteration_bounds = array<i64: 2>, scalar_prefetch = 0 : i64, scratch_operands = 0 : i64, tpu.core_type = #tpu.core_type<tc>, window_params = [{transform_indices = @transform_0, window_bounds = array<i64: 1, 8, 32>}, {transform_indices = @transform_1, window_bounds = array<i64: 1, 8, 32>}, {transform_indices = @transform_2, window_bounds = array<i64: 1, 1, 8>}, {transform_indices = @transform_3, window_bounds = array<i64: 1, 1, 7>}, {transform_indices = @transform_4, window_bounds = array<i64: 1, 1, 1>}, {pipeline_mode = #tpu.pipeline_mode<synchronous>, transform_indices = @transform_5, window_bounds = array<i64: 1, 32>}, {pipeline_mode = #tpu.pipeline_mode<synchronous>, transform_indices = @transform_6, window_bounds = array<i64: 1, 32>}, {pipeline_mode = #tpu.pipeline_mode<synchronous>, transform_indices = @transform_7, window_bounds = array<i64: 2, 32, 32>}, {pipeline_mode = #tpu.pipeline_mode<synchronous>, transform_indices = @transform_8, window_bounds = array<i64: 2, 1, 32>}, {pipeline_mode = #tpu.pipeline_mode<synchronous>, transform_indices = @transform_9, window_bounds = array<i64: 2, 32, 32>}, {pipeline_mode = #tpu.pipeline_mode<synchronous>, transform_indices = @transform_10, window_bounds = array<i64: 2, 1, 32>}, {pipeline_mode = #tpu.pipeline_mode<synchronous>, transform_indices = @transform_11, window_bounds = array<i64: 2, 32, 32>}, {pipeline_mode = #tpu.pipeline_mode<synchronous>, transform_indices = @transform_12, window_bounds = array<i64: 2, 1, 32>}, {pipeline_mode = #tpu.pipeline_mode<synchronous>, transform_indices = @transform_13, window_bounds = array<i64: 2, 32, 32>}, {pipeline_mode = #tpu.pipeline_mode<synchronous>, transform_indices = @transform_14, window_bounds = array<i64: 2, 1, 32>}, {pipeline_mode = #tpu.pipeline_mode<synchronous>, transform_indices = @transform_15, window_bounds = array<i64: 2, 1, 32>}, {pipeline_mode = #tpu.pipeline_mode<synchronous>, transform_indices = @transform_16, window_bounds = array<i64: 2, 1, 32>}, {pipeline_mode = #tpu.pipeline_mode<synchronous>, transform_indices = @transform_17, window_bounds = array<i64: 2, 128, 32>}, {pipeline_mode = #tpu.pipeline_mode<synchronous>, transform_indices = @transform_18, window_bounds = array<i64: 2, 1, 128>}, {pipeline_mode = #tpu.pipeline_mode<synchronous>, transform_indices = @transform_19, window_bounds = array<i64: 2, 32, 128>}, {pipeline_mode = #tpu.pipeline_mode<synchronous>, transform_indices = @transform_20, window_bounds = array<i64: 2, 1, 32>}, {pipeline_mode = #tpu.pipeline_mode<synchronous>, transform_indices = @transform_21, window_bounds = array<i64: 2, 1, 32>}, {pipeline_mode = #tpu.pipeline_mode<synchronous>, transform_indices = @transform_22, window_bounds = array<i64: 2, 1, 32>}, {pipeline_mode = #tpu.pipeline_mode<synchronous>, transform_indices = @transform_23, window_bounds = array<i64: 1, 32>}, {pipeline_mode = #tpu.pipeline_mode<synchronous>, transform_indices = @transform_24, window_bounds = array<i64: 1, 32>}, {pipeline_mode = #tpu.pipeline_mode<synchronous>, transform_indices = @transform_25, window_bounds = array<i64: 1, 1>}, {transform_indices = @transform_26, window_bounds = array<i64: 1, 1, 1>}]} {
    %c0 = arith.constant 0 : index
    %c0_0 = arith.constant 0 : index
    %c0_1 = arith.constant 0 : index
    %0 = vector.load %arg1[%c0, %c0_0, %c0_1] : memref<1x8x32xf32, #tpu.memory_space<vmem>>, vector<1x8x32xf32>
    %1 = vector.shape_cast %0 : vector<1x8x32xf32> to vector<8x32xf32>
    %c0_2 = arith.constant 0 : index
    %c0_3 = arith.constant 0 : index
    %c0_4 = arith.constant 0 : index
    %2 = vector.load %arg2[%c0_2, %c0_3, %c0_4] : memref<1x8x32xf32, #tpu.memory_space<vmem>>, vector<1x8x32xf32>
    %3 = vector.shape_cast %2 : vector<1x8x32xf32> to vector<8x32xf32>
    %4 = arith.addf %1, %3 : vector<8x32xf32>
    %c0_5 = arith.constant 0 : index
    %c0_6 = arith.constant 0 : index
    %5 = vector.load %arg6[%c0_5, %c0_6] : memref<1x32xf32, #tpu.memory_space<vmem>>, vector<1x32xf32>
    %c0_7 = arith.constant 0 : index
    %c0_8 = arith.constant 0 : index
    %6 = vector.load %arg7[%c0_7, %c0_8] : memref<1x32xf32, #tpu.memory_space<vmem>>, vector<1x32xf32>
    %cst = arith.constant dense<0.000000e+00> : vector<8xf32>
    %7 = vector.multi_reduction <add>, %4, %cst [1] : vector<8x32xf32> to vector<8xf32>
    %8 = vector.shape_cast %7 : vector<8xf32> to vector<8x1xf32>
    %cst_9 = arith.constant 3.200000e+01 : f32
    %9 = vector.broadcast %cst_9 : f32 to vector<8x1xf32>
    %10 = arith.divf %8, %9 : vector<8x1xf32>
    %11 = vector.broadcast %10 : vector<8x1xf32> to vector<8x32xf32>
    %12 = arith.subf %4, %11 : vector<8x32xf32>
    %13 = arith.mulf %12, %12 : vector<8x32xf32>
    %cst_10 = arith.constant dense<0.000000e+00> : vector<8xf32>
    %14 = vector.multi_reduction <add>, %13, %cst_10 [1] : vector<8x32xf32> to vector<8xf32>
    %15 = vector.shape_cast %14 : vector<8xf32> to vector<8x1xf32>
    %cst_11 = arith.constant 3.200000e+01 : f32
    %16 = vector.broadcast %cst_11 : f32 to vector<8x1xf32>
    %17 = arith.divf %15, %16 : vector<8x1xf32>
    %18 = vector.broadcast %10 : vector<8x1xf32> to vector<8x32xf32>
    %19 = arith.subf %4, %18 : vector<8x32xf32>
    %cst_12 = arith.constant 9.99999974E-6 : f32
    %20 = vector.broadcast %cst_12 : f32 to vector<8x1xf32>
    %21 = arith.addf %17, %20 : vector<8x1xf32>
    %22 = math.rsqrt %21 : vector<8x1xf32>
    %23 = vector.broadcast %22 : vector<8x1xf32> to vector<8x32xf32>
    %24 = arith.mulf %19, %23 : vector<8x32xf32>
    %25 = vector.broadcast %5 : vector<1x32xf32> to vector<8x32xf32>
    %26 = arith.mulf %24, %25 : vector<8x32xf32>
    %27 = vector.broadcast %6 : vector<1x32xf32> to vector<8x32xf32>
    %28 = arith.addf %26, %27 : vector<8x32xf32>
    %c0_13 = arith.constant 0 : index
    %c0_14 = arith.constant 0 : index
    %c0_15 = arith.constant 0 : index
    %29 = vector.load %arg3[%c0_13, %c0_14, %c0_15] : memref<1x1x8xf32, #tpu.memory_space<vmem>>, vector<1x1x8xf32>
    %30 = vector.shape_cast %29 : vector<1x1x8xf32> to vector<1x8xf32>
    %c0_16 = arith.constant 0 : index
    %c0_17 = arith.constant 0 : index
    %c0_18 = arith.constant 0 : index
    %31 = vector.load %arg8[%c0_16, %c0_17, %c0_18] : memref<2x32x32xbf16, #tpu.memory_space<vmem>>, vector<1x32x32xbf16>
    %32 = vector.shape_cast %31 : vector<1x32x32xbf16> to vector<32x32xbf16>
    %33 = arith.truncf %28 : vector<8x32xf32> to vector<8x32xbf16>
    "tpu.trace_start"() <{level = 10 : i32, message = "mk,ok->mo"}> : () -> ()
    %cst_19 = arith.constant dense<0.000000e+00> : vector<8x32xf32>
    %34 = tpu.matmul %33, %32, %cst_19 {dimension_numbers = #tpu.dot_dimension_numbers<[1], [1], [0], [0], [0, 0, 1, 0], [], []>} : vector<8x32xbf16>, vector<32x32xbf16>, vector<8x32xf32> -> vector<8x32xf32>
    "tpu.trace_stop"() : () -> ()
    %c0_20 = arith.constant 0 : index
    %c0_21 = arith.constant 0 : index
    %c0_22 = arith.constant 0 : index
    %35 = vector.load %arg9[%c0_20, %c0_21, %c0_22] : memref<2x1x32xf32, #tpu.memory_space<vmem>>, vector<1x1x32xf32>
    %36 = vector.shape_cast %35 : vector<1x1x32xf32> to vector<1x32xf32>
    %37 = vector.broadcast %36 : vector<1x32xf32> to vector<8x32xf32>
    %38 = arith.addf %34, %37 : vector<8x32xf32>
    %39 = vector.shape_cast %38 : vector<8x32xf32> to vector<8x2x16xf32>
    %40 = tpu.transpose %39, [1, 0, 2] : vector<8x2x16xf32> -> vector<2x8x16xf32>
    %c0_23 = arith.constant 0 : index
    %c0_24 = arith.constant 0 : index
    %c0_25 = arith.constant 0 : index
    %41 = vector.load %arg10[%c0_23, %c0_24, %c0_25] : memref<2x32x32xbf16, #tpu.memory_space<vmem>>, vector<1x32x32xbf16>
    %42 = vector.shape_cast %41 : vector<1x32x32xbf16> to vector<32x32xbf16>
    %43 = arith.truncf %28 : vector<8x32xf32> to vector<8x32xbf16>
    "tpu.trace_start"() <{level = 10 : i32, message = "mk,ok->mo"}> : () -> ()
    %cst_26 = arith.constant dense<0.000000e+00> : vector<8x32xf32>
    %44 = tpu.matmul %43, %42, %cst_26 {dimension_numbers = #tpu.dot_dimension_numbers<[1], [1], [0], [0], [0, 0, 1, 0], [], []>} : vector<8x32xbf16>, vector<32x32xbf16>, vector<8x32xf32> -> vector<8x32xf32>
    "tpu.trace_stop"() : () -> ()
    %c0_27 = arith.constant 0 : index
    %c0_28 = arith.constant 0 : index
    %c0_29 = arith.constant 0 : index
    %45 = vector.load %arg11[%c0_27, %c0_28, %c0_29] : memref<2x1x32xf32, #tpu.memory_space<vmem>>, vector<1x1x32xf32>
    %46 = vector.shape_cast %45 : vector<1x1x32xf32> to vector<1x32xf32>
    %47 = vector.broadcast %46 : vector<1x32xf32> to vector<8x32xf32>
    %48 = arith.addf %44, %47 : vector<8x32xf32>
    %49 = vector.shape_cast %48 : vector<8x32xf32> to vector<8x2x16xf32>
    %50 = tpu.transpose %49, [1, 0, 2] : vector<8x2x16xf32> -> vector<2x8x16xf32>
    %c0_30 = arith.constant 0 : index
    %c0_31 = arith.constant 0 : index
    %c0_32 = arith.constant 0 : index
    %51 = vector.load %arg12[%c0_30, %c0_31, %c0_32] : memref<2x32x32xbf16, #tpu.memory_space<vmem>>, vector<1x32x32xbf16>
    %52 = vector.shape_cast %51 : vector<1x32x32xbf16> to vector<32x32xbf16>
    %53 = arith.truncf %28 : vector<8x32xf32> to vector<8x32xbf16>
    "tpu.trace_start"() <{level = 10 : i32, message = "mk,ok->mo"}> : () -> ()
    %cst_33 = arith.constant dense<0.000000e+00> : vector<8x32xf32>
    %54 = tpu.matmul %53, %52, %cst_33 {dimension_numbers = #tpu.dot_dimension_numbers<[1], [1], [0], [0], [0, 0, 1, 0], [], []>} : vector<8x32xbf16>, vector<32x32xbf16>, vector<8x32xf32> -> vector<8x32xf32>
    "tpu.trace_stop"() : () -> ()
    %c0_34 = arith.constant 0 : index
    %c0_35 = arith.constant 0 : index
    %c0_36 = arith.constant 0 : index
    %55 = vector.load %arg13[%c0_34, %c0_35, %c0_36] : memref<2x1x32xf32, #tpu.memory_space<vmem>>, vector<1x1x32xf32>
    %56 = vector.shape_cast %55 : vector<1x1x32xf32> to vector<1x32xf32>
    %57 = vector.broadcast %56 : vector<1x32xf32> to vector<8x32xf32>
    %58 = arith.addf %54, %57 : vector<8x32xf32>
    %59 = vector.shape_cast %58 : vector<8x32xf32> to vector<8x2x16xf32>
    %60 = tpu.transpose %59, [1, 0, 2] : vector<8x2x16xf32> -> vector<2x8x16xf32>
    %61 = arith.truncf %40 : vector<2x8x16xf32> to vector<2x8x16xbf16>
    %62 = arith.truncf %50 : vector<2x8x16xf32> to vector<2x8x16xbf16>
    "tpu.trace_start"() <{level = 10 : i32, message = "nqd,nkd->nqk"}> : () -> ()
    %cst_37 = arith.constant dense<0.000000e+00> : vector<2x8x8xf32>
    %63 = tpu.matmul %61, %62, %cst_37 {dimension_numbers = #tpu.dot_dimension_numbers<[2], [2], [1], [1], [0, 0, 0, 1, 1, 1], [0], [0]>} : vector<2x8x16xbf16>, vector<2x8x16xbf16>, vector<2x8x8xf32> -> vector<2x8x8xf32>
    "tpu.trace_stop"() : () -> ()
    %cst_38 = arith.constant 2.500000e-01 : f32
    %64 = vector.broadcast %cst_38 : f32 to vector<2x8x8xf32>
    %65 = arith.mulf %63, %64 : vector<2x8x8xf32>
    %66 = vector.shape_cast %30 : vector<1x8xf32> to vector<1x1x8xf32>
    %67 = vector.broadcast %66 : vector<1x1x8xf32> to vector<2x8x8xf32>
    %68 = arith.addf %65, %67 : vector<2x8x8xf32>
    %cst_39 = arith.constant dense<0xFF800000> : vector<2x8xf32>
    %69 = vector.multi_reduction <maximumf>, %68, %cst_39 [2] : vector<2x8x8xf32> to vector<2x8xf32>
    %70 = vector.shape_cast %69 : vector<2x8xf32> to vector<2x8x1xf32>
    %71 = vector.broadcast %70 : vector<2x8x1xf32> to vector<2x8x8xf32>
    %72 = arith.subf %68, %71 : vector<2x8x8xf32>
    %73 = math.exp %72 : vector<2x8x8xf32>
    %cst_40 = arith.constant dense<0.000000e+00> : vector<2x8xf32>
    %74 = vector.multi_reduction <add>, %73, %cst_40 [2] : vector<2x8x8xf32> to vector<2x8xf32>
    %75 = vector.shape_cast %74 : vector<2x8xf32> to vector<2x8x1xf32>
    %76 = tpu.reciprocal %75 {approx = true} : vector<2x8x1xf32> -> vector<2x8x1xf32>
    %77 = vector.broadcast %76 : vector<2x8x1xf32> to vector<2x8x8xf32>
    %78 = arith.mulf %73, %77 : vector<2x8x8xf32>
    %79 = arith.truncf %78 : vector<2x8x8xf32> to vector<2x8x8xbf16>
    %80 = arith.truncf %60 : vector<2x8x16xf32> to vector<2x8x16xbf16>
    "tpu.trace_start"() <{level = 10 : i32, message = "nqk,nkd->nqd"}> : () -> ()
    %cst_41 = arith.constant dense<0.000000e+00> : vector<2x8x16xf32>
    %81 = tpu.matmul %79, %80, %cst_41 {dimension_numbers = #tpu.dot_dimension_numbers<[2], [1], [1], [2], [0, 0, 0, 1, 1, 2], [0], [0]>} : vector<2x8x8xbf16>, vector<2x8x16xbf16>, vector<2x8x16xf32> -> vector<2x8x16xf32>
    "tpu.trace_stop"() : () -> ()
    %82 = tpu.transpose %81, [1, 0, 2] : vector<2x8x16xf32> -> vector<8x2x16xf32>
    %83 = vector.shape_cast %82 : vector<8x2x16xf32> to vector<8x32xf32>
    %c0_42 = arith.constant 0 : index
    %c0_43 = arith.constant 0 : index
    %c0_44 = arith.constant 0 : index
    %84 = vector.load %arg14[%c0_42, %c0_43, %c0_44] : memref<2x32x32xbf16, #tpu.memory_space<vmem>>, vector<1x32x32xbf16>
    %85 = vector.shape_cast %84 : vector<1x32x32xbf16> to vector<32x32xbf16>
    %86 = arith.truncf %83 : vector<8x32xf32> to vector<8x32xbf16>
    "tpu.trace_start"() <{level = 10 : i32, message = "mk,ok->mo"}> : () -> ()
    %cst_45 = arith.constant dense<0.000000e+00> : vector<8x32xf32>
    %87 = tpu.matmul %86, %85, %cst_45 {dimension_numbers = #tpu.dot_dimension_numbers<[1], [1], [0], [0], [0, 0, 1, 0], [], []>} : vector<8x32xbf16>, vector<32x32xbf16>, vector<8x32xf32> -> vector<8x32xf32>
    "tpu.trace_stop"() : () -> ()
    %c0_46 = arith.constant 0 : index
    %c0_47 = arith.constant 0 : index
    %c0_48 = arith.constant 0 : index
    %88 = vector.load %arg15[%c0_46, %c0_47, %c0_48] : memref<2x1x32xf32, #tpu.memory_space<vmem>>, vector<1x1x32xf32>
    %89 = vector.shape_cast %88 : vector<1x1x32xf32> to vector<1x32xf32>
    %90 = vector.broadcast %89 : vector<1x32xf32> to vector<8x32xf32>
    %91 = arith.addf %87, %90 : vector<8x32xf32>
    %92 = arith.addf %28, %91 : vector<8x32xf32>
    %c0_49 = arith.constant 0 : index
    %c0_50 = arith.constant 0 : index
    %c0_51 = arith.constant 0 : index
    %93 = vector.load %arg16[%c0_49, %c0_50, %c0_51] : memref<2x1x32xf32, #tpu.memory_space<vmem>>, vector<1x1x32xf32>
    %94 = vector.shape_cast %93 : vector<1x1x32xf32> to vector<1x32xf32>
    %c0_52 = arith.constant 0 : index
    %c0_53 = arith.constant 0 : index
    %c0_54 = arith.constant 0 : index
    %95 = vector.load %arg17[%c0_52, %c0_53, %c0_54] : memref<2x1x32xf32, #tpu.memory_space<vmem>>, vector<1x1x32xf32>
    %96 = vector.shape_cast %95 : vector<1x1x32xf32> to vector<1x32xf32>
    %cst_55 = arith.constant dense<0.000000e+00> : vector<8xf32>
    %97 = vector.multi_reduction <add>, %92, %cst_55 [1] : vector<8x32xf32> to vector<8xf32>
    %98 = vector.shape_cast %97 : vector<8xf32> to vector<8x1xf32>
    %cst_56 = arith.constant 3.200000e+01 : f32
    %99 = vector.broadcast %cst_56 : f32 to vector<8x1xf32>
    %100 = arith.divf %98, %99 : vector<8x1xf32>
    %101 = vector.broadcast %100 : vector<8x1xf32> to vector<8x32xf32>
    %102 = arith.subf %92, %101 : vector<8x32xf32>
    %103 = arith.mulf %102, %102 : vector<8x32xf32>
    %cst_57 = arith.constant dense<0.000000e+00> : vector<8xf32>
    %104 = vector.multi_reduction <add>, %103, %cst_57 [1] : vector<8x32xf32> to vector<8xf32>
    %105 = vector.shape_cast %104 : vector<8xf32> to vector<8x1xf32>
    %cst_58 = arith.constant 3.200000e+01 : f32
    %106 = vector.broadcast %cst_58 : f32 to vector<8x1xf32>
    %107 = arith.divf %105, %106 : vector<8x1xf32>
    %108 = vector.broadcast %100 : vector<8x1xf32> to vector<8x32xf32>
    %109 = arith.subf %92, %108 : vector<8x32xf32>
    %cst_59 = arith.constant 9.99999974E-6 : f32
    %110 = vector.broadcast %cst_59 : f32 to vector<8x1xf32>
    %111 = arith.addf %107, %110 : vector<8x1xf32>
    %112 = math.rsqrt %111 : vector<8x1xf32>
    %113 = vector.broadcast %112 : vector<8x1xf32> to vector<8x32xf32>
    %114 = arith.mulf %109, %113 : vector<8x32xf32>
    %115 = vector.broadcast %94 : vector<1x32xf32> to vector<8x32xf32>
    %116 = arith.mulf %114, %115 : vector<8x32xf32>
    %117 = vector.broadcast %96 : vector<1x32xf32> to vector<8x32xf32>
    %118 = arith.addf %116, %117 : vector<8x32xf32>
    %c0_60 = arith.constant 0 : index
    %c0_61 = arith.constant 0 : index
    %c0_62 = arith.constant 0 : index
    %119 = vector.load %arg18[%c0_60, %c0_61, %c0_62] : memref<2x128x32xbf16, #tpu.memory_space<vmem>>, vector<1x128x32xbf16>
    %120 = vector.shape_cast %119 : vector<1x128x32xbf16> to vector<128x32xbf16>
    %121 = arith.truncf %118 : vector<8x32xf32> to vector<8x32xbf16>
    "tpu.trace_start"() <{level = 10 : i32, message = "mk,ok->mo"}> : () -> ()
    %cst_63 = arith.constant dense<0.000000e+00> : vector<8x128xf32>
    %122 = tpu.matmul %121, %120, %cst_63 {dimension_numbers = #tpu.dot_dimension_numbers<[1], [1], [0], [0], [0, 0, 1, 0], [], []>} : vector<8x32xbf16>, vector<128x32xbf16>, vector<8x128xf32> -> vector<8x128xf32>
    "tpu.trace_stop"() : () -> ()
    %c0_64 = arith.constant 0 : index
    %c0_65 = arith.constant 0 : index
    %c0_66 = arith.constant 0 : index
    %123 = vector.load %arg19[%c0_64, %c0_65, %c0_66] : memref<2x1x128xf32, #tpu.memory_space<vmem>>, vector<1x1x128xf32>
    %124 = vector.shape_cast %123 : vector<1x1x128xf32> to vector<1x128xf32>
    %125 = vector.broadcast %124 : vector<1x128xf32> to vector<8x128xf32>
    %126 = arith.addf %122, %125 : vector<8x128xf32>
    %cst_67 = arith.constant 0.000000e+00 : f32
    %127 = vector.broadcast %cst_67 : f32 to vector<8x128xf32>
    %128 = arith.maximumf %126, %127 : vector<8x128xf32>
    %c0_68 = arith.constant 0 : index
    %c0_69 = arith.constant 0 : index
    %c0_70 = arith.constant 0 : index
    %129 = vector.load %arg20[%c0_68, %c0_69, %c0_70] : memref<2x32x128xbf16, #tpu.memory_space<vmem>>, vector<1x32x128xbf16>
    %130 = vector.shape_cast %129 : vector<1x32x128xbf16> to vector<32x128xbf16>
    %131 = arith.truncf %128 : vector<8x128xf32> to vector<8x128xbf16>
    "tpu.trace_start"() <{level = 10 : i32, message = "mk,ok->mo"}> : () -> ()
    %cst_71 = arith.constant dense<0.000000e+00> : vector<8x32xf32>
    %132 = tpu.matmul %131, %130, %cst_71 {dimension_numbers = #tpu.dot_dimension_numbers<[1], [1], [0], [0], [0, 0, 1, 0], [], []>} : vector<8x128xbf16>, vector<32x128xbf16>, vector<8x32xf32> -> vector<8x32xf32>
    "tpu.trace_stop"() : () -> ()
    %c0_72 = arith.constant 0 : index
    %c0_73 = arith.constant 0 : index
    %c0_74 = arith.constant 0 : index
    %133 = vector.load %arg21[%c0_72, %c0_73, %c0_74] : memref<2x1x32xf32, #tpu.memory_space<vmem>>, vector<1x1x32xf32>
    %134 = vector.shape_cast %133 : vector<1x1x32xf32> to vector<1x32xf32>
    %135 = vector.broadcast %134 : vector<1x32xf32> to vector<8x32xf32>
    %136 = arith.addf %132, %135 : vector<8x32xf32>
    %137 = arith.addf %118, %136 : vector<8x32xf32>
    %c0_75 = arith.constant 0 : index
    %c0_76 = arith.constant 0 : index
    %c0_77 = arith.constant 0 : index
    %138 = vector.load %arg22[%c0_75, %c0_76, %c0_77] : memref<2x1x32xf32, #tpu.memory_space<vmem>>, vector<1x1x32xf32>
    %139 = vector.shape_cast %138 : vector<1x1x32xf32> to vector<1x32xf32>
    %c0_78 = arith.constant 0 : index
    %c0_79 = arith.constant 0 : index
    %c0_80 = arith.constant 0 : index
    %140 = vector.load %arg23[%c0_78, %c0_79, %c0_80] : memref<2x1x32xf32, #tpu.memory_space<vmem>>, vector<1x1x32xf32>
    %141 = vector.shape_cast %140 : vector<1x1x32xf32> to vector<1x32xf32>
    %cst_81 = arith.constant dense<0.000000e+00> : vector<8xf32>
    %142 = vector.multi_reduction <add>, %137, %cst_81 [1] : vector<8x32xf32> to vector<8xf32>
    %143 = vector.shape_cast %142 : vector<8xf32> to vector<8x1xf32>
    %cst_82 = arith.constant 3.200000e+01 : f32
    %144 = vector.broadcast %cst_82 : f32 to vector<8x1xf32>
    %145 = arith.divf %143, %144 : vector<8x1xf32>
    %146 = vector.broadcast %145 : vector<8x1xf32> to vector<8x32xf32>
    %147 = arith.subf %137, %146 : vector<8x32xf32>
    %148 = arith.mulf %147, %147 : vector<8x32xf32>
    %cst_83 = arith.constant dense<0.000000e+00> : vector<8xf32>
    %149 = vector.multi_reduction <add>, %148, %cst_83 [1] : vector<8x32xf32> to vector<8xf32>
    %150 = vector.shape_cast %149 : vector<8xf32> to vector<8x1xf32>
    %cst_84 = arith.constant 3.200000e+01 : f32
    %151 = vector.broadcast %cst_84 : f32 to vector<8x1xf32>
    %152 = arith.divf %150, %151 : vector<8x1xf32>
    %153 = vector.broadcast %145 : vector<8x1xf32> to vector<8x32xf32>
    %154 = arith.subf %137, %153 : vector<8x32xf32>
    %cst_85 = arith.constant 9.99999974E-6 : f32
    %155 = vector.broadcast %cst_85 : f32 to vector<8x1xf32>
    %156 = arith.addf %152, %155 : vector<8x1xf32>
    %157 = math.rsqrt %156 : vector<8x1xf32>
    %158 = vector.broadcast %157 : vector<8x1xf32> to vector<8x32xf32>
    %159 = arith.mulf %154, %158 : vector<8x32xf32>
    %160 = vector.broadcast %139 : vector<1x32xf32> to vector<8x32xf32>
    %161 = arith.mulf %159, %160 : vector<8x32xf32>
    %162 = vector.broadcast %141 : vector<1x32xf32> to vector<8x32xf32>
    %163 = arith.addf %161, %162 : vector<8x32xf32>
    %c1 = arith.constant 1 : index
    %c0_86 = arith.constant 0 : index
    %c0_87 = arith.constant 0 : index
    %164 = vector.load %arg8[%c1, %c0_86, %c0_87] : memref<2x32x32xbf16, #tpu.memory_space<vmem>>, vector<1x32x32xbf16>
    %165 = vector.shape_cast %164 : vector<1x32x32xbf16> to vector<32x32xbf16>
    %166 = arith.truncf %163 : vector<8x32xf32> to vector<8x32xbf16>
    "tpu.trace_start"() <{level = 10 : i32, message = "mk,ok->mo"}> : () -> ()
    %cst_88 = arith.constant dense<0.000000e+00> : vector<8x32xf32>
    %167 = tpu.matmul %166, %165, %cst_88 {dimension_numbers = #tpu.dot_dimension_numbers<[1], [1], [0], [0], [0, 0, 1, 0], [], []>} : vector<8x32xbf16>, vector<32x32xbf16>, vector<8x32xf32> -> vector<8x32xf32>
    "tpu.trace_stop"() : () -> ()
    %c1_89 = arith.constant 1 : index
    %c0_90 = arith.constant 0 : index
    %c0_91 = arith.constant 0 : index
    %168 = vector.load %arg9[%c1_89, %c0_90, %c0_91] : memref<2x1x32xf32, #tpu.memory_space<vmem>>, vector<1x1x32xf32>
    %169 = vector.shape_cast %168 : vector<1x1x32xf32> to vector<1x32xf32>
    %170 = vector.broadcast %169 : vector<1x32xf32> to vector<8x32xf32>
    %171 = arith.addf %167, %170 : vector<8x32xf32>
    %172 = vector.shape_cast %171 : vector<8x32xf32> to vector<8x2x16xf32>
    %173 = tpu.transpose %172, [1, 0, 2] : vector<8x2x16xf32> -> vector<2x8x16xf32>
    %c1_92 = arith.constant 1 : index
    %c0_93 = arith.constant 0 : index
    %c0_94 = arith.constant 0 : index
    %174 = vector.load %arg10[%c1_92, %c0_93, %c0_94] : memref<2x32x32xbf16, #tpu.memory_space<vmem>>, vector<1x32x32xbf16>
    %175 = vector.shape_cast %174 : vector<1x32x32xbf16> to vector<32x32xbf16>
    %176 = arith.truncf %163 : vector<8x32xf32> to vector<8x32xbf16>
    "tpu.trace_start"() <{level = 10 : i32, message = "mk,ok->mo"}> : () -> ()
    %cst_95 = arith.constant dense<0.000000e+00> : vector<8x32xf32>
    %177 = tpu.matmul %176, %175, %cst_95 {dimension_numbers = #tpu.dot_dimension_numbers<[1], [1], [0], [0], [0, 0, 1, 0], [], []>} : vector<8x32xbf16>, vector<32x32xbf16>, vector<8x32xf32> -> vector<8x32xf32>
    "tpu.trace_stop"() : () -> ()
    %c1_96 = arith.constant 1 : index
    %c0_97 = arith.constant 0 : index
    %c0_98 = arith.constant 0 : index
    %178 = vector.load %arg11[%c1_96, %c0_97, %c0_98] : memref<2x1x32xf32, #tpu.memory_space<vmem>>, vector<1x1x32xf32>
    %179 = vector.shape_cast %178 : vector<1x1x32xf32> to vector<1x32xf32>
    %180 = vector.broadcast %179 : vector<1x32xf32> to vector<8x32xf32>
    %181 = arith.addf %177, %180 : vector<8x32xf32>
    %182 = vector.shape_cast %181 : vector<8x32xf32> to vector<8x2x16xf32>
    %183 = tpu.transpose %182, [1, 0, 2] : vector<8x2x16xf32> -> vector<2x8x16xf32>
    %c1_99 = arith.constant 1 : index
    %c0_100 = arith.constant 0 : index
    %c0_101 = arith.constant 0 : index
    %184 = vector.load %arg12[%c1_99, %c0_100, %c0_101] : memref<2x32x32xbf16, #tpu.memory_space<vmem>>, vector<1x32x32xbf16>
    %185 = vector.shape_cast %184 : vector<1x32x32xbf16> to vector<32x32xbf16>
    %186 = arith.truncf %163 : vector<8x32xf32> to vector<8x32xbf16>
    "tpu.trace_start"() <{level = 10 : i32, message = "mk,ok->mo"}> : () -> ()
    %cst_102 = arith.constant dense<0.000000e+00> : vector<8x32xf32>
    %187 = tpu.matmul %186, %185, %cst_102 {dimension_numbers = #tpu.dot_dimension_numbers<[1], [1], [0], [0], [0, 0, 1, 0], [], []>} : vector<8x32xbf16>, vector<32x32xbf16>, vector<8x32xf32> -> vector<8x32xf32>
    "tpu.trace_stop"() : () -> ()
    %c1_103 = arith.constant 1 : index
    %c0_104 = arith.constant 0 : index
    %c0_105 = arith.constant 0 : index
    %188 = vector.load %arg13[%c1_103, %c0_104, %c0_105] : memref<2x1x32xf32, #tpu.memory_space<vmem>>, vector<1x1x32xf32>
    %189 = vector.shape_cast %188 : vector<1x1x32xf32> to vector<1x32xf32>
    %190 = vector.broadcast %189 : vector<1x32xf32> to vector<8x32xf32>
    %191 = arith.addf %187, %190 : vector<8x32xf32>
    %192 = vector.shape_cast %191 : vector<8x32xf32> to vector<8x2x16xf32>
    %193 = tpu.transpose %192, [1, 0, 2] : vector<8x2x16xf32> -> vector<2x8x16xf32>
    %194 = arith.truncf %173 : vector<2x8x16xf32> to vector<2x8x16xbf16>
    %195 = arith.truncf %183 : vector<2x8x16xf32> to vector<2x8x16xbf16>
    "tpu.trace_start"() <{level = 10 : i32, message = "nqd,nkd->nqk"}> : () -> ()
    %cst_106 = arith.constant dense<0.000000e+00> : vector<2x8x8xf32>
    %196 = tpu.matmul %194, %195, %cst_106 {dimension_numbers = #tpu.dot_dimension_numbers<[2], [2], [1], [1], [0, 0, 0, 1, 1, 1], [0], [0]>} : vector<2x8x16xbf16>, vector<2x8x16xbf16>, vector<2x8x8xf32> -> vector<2x8x8xf32>
    "tpu.trace_stop"() : () -> ()
    %cst_107 = arith.constant 2.500000e-01 : f32
    %197 = vector.broadcast %cst_107 : f32 to vector<2x8x8xf32>
    %198 = arith.mulf %196, %197 : vector<2x8x8xf32>
    %199 = vector.shape_cast %30 : vector<1x8xf32> to vector<1x1x8xf32>
    %200 = vector.broadcast %199 : vector<1x1x8xf32> to vector<2x8x8xf32>
    %201 = arith.addf %198, %200 : vector<2x8x8xf32>
    %cst_108 = arith.constant dense<0xFF800000> : vector<2x8xf32>
    %202 = vector.multi_reduction <maximumf>, %201, %cst_108 [2] : vector<2x8x8xf32> to vector<2x8xf32>
    %203 = vector.shape_cast %202 : vector<2x8xf32> to vector<2x8x1xf32>
    %204 = vector.broadcast %203 : vector<2x8x1xf32> to vector<2x8x8xf32>
    %205 = arith.subf %201, %204 : vector<2x8x8xf32>
    %206 = math.exp %205 : vector<2x8x8xf32>
    %cst_109 = arith.constant dense<0.000000e+00> : vector<2x8xf32>
    %207 = vector.multi_reduction <add>, %206, %cst_109 [2] : vector<2x8x8xf32> to vector<2x8xf32>
    %208 = vector.shape_cast %207 : vector<2x8xf32> to vector<2x8x1xf32>
    %209 = tpu.reciprocal %208 {approx = true} : vector<2x8x1xf32> -> vector<2x8x1xf32>
    %210 = vector.broadcast %209 : vector<2x8x1xf32> to vector<2x8x8xf32>
    %211 = arith.mulf %206, %210 : vector<2x8x8xf32>
    %212 = arith.truncf %211 : vector<2x8x8xf32> to vector<2x8x8xbf16>
    %213 = arith.truncf %193 : vector<2x8x16xf32> to vector<2x8x16xbf16>
    "tpu.trace_start"() <{level = 10 : i32, message = "nqk,nkd->nqd"}> : () -> ()
    %cst_110 = arith.constant dense<0.000000e+00> : vector<2x8x16xf32>
    %214 = tpu.matmul %212, %213, %cst_110 {dimension_numbers = #tpu.dot_dimension_numbers<[2], [1], [1], [2], [0, 0, 0, 1, 1, 2], [0], [0]>} : vector<2x8x8xbf16>, vector<2x8x16xbf16>, vector<2x8x16xf32> -> vector<2x8x16xf32>
    "tpu.trace_stop"() : () -> ()
    %215 = tpu.transpose %214, [1, 0, 2] : vector<2x8x16xf32> -> vector<8x2x16xf32>
    %216 = vector.shape_cast %215 : vector<8x2x16xf32> to vector<8x32xf32>
    %c1_111 = arith.constant 1 : index
    %c0_112 = arith.constant 0 : index
    %c0_113 = arith.constant 0 : index
    %217 = vector.load %arg14[%c1_111, %c0_112, %c0_113] : memref<2x32x32xbf16, #tpu.memory_space<vmem>>, vector<1x32x32xbf16>
    %218 = vector.shape_cast %217 : vector<1x32x32xbf16> to vector<32x32xbf16>
    %219 = arith.truncf %216 : vector<8x32xf32> to vector<8x32xbf16>
    "tpu.trace_start"() <{level = 10 : i32, message = "mk,ok->mo"}> : () -> ()
    %cst_114 = arith.constant dense<0.000000e+00> : vector<8x32xf32>
    %220 = tpu.matmul %219, %218, %cst_114 {dimension_numbers = #tpu.dot_dimension_numbers<[1], [1], [0], [0], [0, 0, 1, 0], [], []>} : vector<8x32xbf16>, vector<32x32xbf16>, vector<8x32xf32> -> vector<8x32xf32>
    "tpu.trace_stop"() : () -> ()
    %c1_115 = arith.constant 1 : index
    %c0_116 = arith.constant 0 : index
    %c0_117 = arith.constant 0 : index
    %221 = vector.load %arg15[%c1_115, %c0_116, %c0_117] : memref<2x1x32xf32, #tpu.memory_space<vmem>>, vector<1x1x32xf32>
    %222 = vector.shape_cast %221 : vector<1x1x32xf32> to vector<1x32xf32>
    %223 = vector.broadcast %222 : vector<1x32xf32> to vector<8x32xf32>
    %224 = arith.addf %220, %223 : vector<8x32xf32>
    %225 = arith.addf %163, %224 : vector<8x32xf32>
    %c1_118 = arith.constant 1 : index
    %c0_119 = arith.constant 0 : index
    %c0_120 = arith.constant 0 : index
    %226 = vector.load %arg16[%c1_118, %c0_119, %c0_120] : memref<2x1x32xf32, #tpu.memory_space<vmem>>, vector<1x1x32xf32>
    %227 = vector.shape_cast %226 : vector<1x1x32xf32> to vector<1x32xf32>
    %c1_121 = arith.constant 1 : index
    %c0_122 = arith.constant 0 : index
    %c0_123 = arith.constant 0 : index
    %228 = vector.load %arg17[%c1_121, %c0_122, %c0_123] : memref<2x1x32xf32, #tpu.memory_space<vmem>>, vector<1x1x32xf32>
    %229 = vector.shape_cast %228 : vector<1x1x32xf32> to vector<1x32xf32>
    %cst_124 = arith.constant dense<0.000000e+00> : vector<8xf32>
    %230 = vector.multi_reduction <add>, %225, %cst_124 [1] : vector<8x32xf32> to vector<8xf32>
    %231 = vector.shape_cast %230 : vector<8xf32> to vector<8x1xf32>
    %cst_125 = arith.constant 3.200000e+01 : f32
    %232 = vector.broadcast %cst_125 : f32 to vector<8x1xf32>
    %233 = arith.divf %231, %232 : vector<8x1xf32>
    %234 = vector.broadcast %233 : vector<8x1xf32> to vector<8x32xf32>
    %235 = arith.subf %225, %234 : vector<8x32xf32>
    %236 = arith.mulf %235, %235 : vector<8x32xf32>
    %cst_126 = arith.constant dense<0.000000e+00> : vector<8xf32>
    %237 = vector.multi_reduction <add>, %236, %cst_126 [1] : vector<8x32xf32> to vector<8xf32>
    %238 = vector.shape_cast %237 : vector<8xf32> to vector<8x1xf32>
    %cst_127 = arith.constant 3.200000e+01 : f32
    %239 = vector.broadcast %cst_127 : f32 to vector<8x1xf32>
    %240 = arith.divf %238, %239 : vector<8x1xf32>
    %241 = vector.broadcast %233 : vector<8x1xf32> to vector<8x32xf32>
    %242 = arith.subf %225, %241 : vector<8x32xf32>
    %cst_128 = arith.constant 9.99999974E-6 : f32
    %243 = vector.broadcast %cst_128 : f32 to vector<8x1xf32>
    %244 = arith.addf %240, %243 : vector<8x1xf32>
    %245 = math.rsqrt %244 : vector<8x1xf32>
    %246 = vector.broadcast %245 : vector<8x1xf32> to vector<8x32xf32>
    %247 = arith.mulf %242, %246 : vector<8x32xf32>
    %248 = vector.broadcast %227 : vector<1x32xf32> to vector<8x32xf32>
    %249 = arith.mulf %247, %248 : vector<8x32xf32>
    %250 = vector.broadcast %229 : vector<1x32xf32> to vector<8x32xf32>
    %251 = arith.addf %249, %250 : vector<8x32xf32>
    %c1_129 = arith.constant 1 : index
    %c0_130 = arith.constant 0 : index
    %c0_131 = arith.constant 0 : index
    %252 = vector.load %arg18[%c1_129, %c0_130, %c0_131] : memref<2x128x32xbf16, #tpu.memory_space<vmem>>, vector<1x128x32xbf16>
    %253 = vector.shape_cast %252 : vector<1x128x32xbf16> to vector<128x32xbf16>
    %254 = arith.truncf %251 : vector<8x32xf32> to vector<8x32xbf16>
    "tpu.trace_start"() <{level = 10 : i32, message = "mk,ok->mo"}> : () -> ()
    %cst_132 = arith.constant dense<0.000000e+00> : vector<8x128xf32>
    %255 = tpu.matmul %254, %253, %cst_132 {dimension_numbers = #tpu.dot_dimension_numbers<[1], [1], [0], [0], [0, 0, 1, 0], [], []>} : vector<8x32xbf16>, vector<128x32xbf16>, vector<8x128xf32> -> vector<8x128xf32>
    "tpu.trace_stop"() : () -> ()
    %c1_133 = arith.constant 1 : index
    %c0_134 = arith.constant 0 : index
    %c0_135 = arith.constant 0 : index
    %256 = vector.load %arg19[%c1_133, %c0_134, %c0_135] : memref<2x1x128xf32, #tpu.memory_space<vmem>>, vector<1x1x128xf32>
    %257 = vector.shape_cast %256 : vector<1x1x128xf32> to vector<1x128xf32>
    %258 = vector.broadcast %257 : vector<1x128xf32> to vector<8x128xf32>
    %259 = arith.addf %255, %258 : vector<8x128xf32>
    %cst_136 = arith.constant 0.000000e+00 : f32
    %260 = vector.broadcast %cst_136 : f32 to vector<8x128xf32>
    %261 = arith.maximumf %259, %260 : vector<8x128xf32>
    %c1_137 = arith.constant 1 : index
    %c0_138 = arith.constant 0 : index
    %c0_139 = arith.constant 0 : index
    %262 = vector.load %arg20[%c1_137, %c0_138, %c0_139] : memref<2x32x128xbf16, #tpu.memory_space<vmem>>, vector<1x32x128xbf16>
    %263 = vector.shape_cast %262 : vector<1x32x128xbf16> to vector<32x128xbf16>
    %264 = arith.truncf %261 : vector<8x128xf32> to vector<8x128xbf16>
    "tpu.trace_start"() <{level = 10 : i32, message = "mk,ok->mo"}> : () -> ()
    %cst_140 = arith.constant dense<0.000000e+00> : vector<8x32xf32>
    %265 = tpu.matmul %264, %263, %cst_140 {dimension_numbers = #tpu.dot_dimension_numbers<[1], [1], [0], [0], [0, 0, 1, 0], [], []>} : vector<8x128xbf16>, vector<32x128xbf16>, vector<8x32xf32> -> vector<8x32xf32>
    "tpu.trace_stop"() : () -> ()
    %c1_141 = arith.constant 1 : index
    %c0_142 = arith.constant 0 : index
    %c0_143 = arith.constant 0 : index
    %266 = vector.load %arg21[%c1_141, %c0_142, %c0_143] : memref<2x1x32xf32, #tpu.memory_space<vmem>>, vector<1x1x32xf32>
    %267 = vector.shape_cast %266 : vector<1x1x32xf32> to vector<1x32xf32>
    %268 = vector.broadcast %267 : vector<1x32xf32> to vector<8x32xf32>
    %269 = arith.addf %265, %268 : vector<8x32xf32>
    %270 = arith.addf %251, %269 : vector<8x32xf32>
    %c1_144 = arith.constant 1 : index
    %c0_145 = arith.constant 0 : index
    %c0_146 = arith.constant 0 : index
    %271 = vector.load %arg22[%c1_144, %c0_145, %c0_146] : memref<2x1x32xf32, #tpu.memory_space<vmem>>, vector<1x1x32xf32>
    %272 = vector.shape_cast %271 : vector<1x1x32xf32> to vector<1x32xf32>
    %c1_147 = arith.constant 1 : index
    %c0_148 = arith.constant 0 : index
    %c0_149 = arith.constant 0 : index
    %273 = vector.load %arg23[%c1_147, %c0_148, %c0_149] : memref<2x1x32xf32, #tpu.memory_space<vmem>>, vector<1x1x32xf32>
    %274 = vector.shape_cast %273 : vector<1x1x32xf32> to vector<1x32xf32>
    %cst_150 = arith.constant dense<0.000000e+00> : vector<8xf32>
    %275 = vector.multi_reduction <add>, %270, %cst_150 [1] : vector<8x32xf32> to vector<8xf32>
    %276 = vector.shape_cast %275 : vector<8xf32> to vector<8x1xf32>
    %cst_151 = arith.constant 3.200000e+01 : f32
    %277 = vector.broadcast %cst_151 : f32 to vector<8x1xf32>
    %278 = arith.divf %276, %277 : vector<8x1xf32>
    %279 = vector.broadcast %278 : vector<8x1xf32> to vector<8x32xf32>
    %280 = arith.subf %270, %279 : vector<8x32xf32>
    %281 = arith.mulf %280, %280 : vector<8x32xf32>
    %cst_152 = arith.constant dense<0.000000e+00> : vector<8xf32>
    %282 = vector.multi_reduction <add>, %281, %cst_152 [1] : vector<8x32xf32> to vector<8xf32>
    %283 = vector.shape_cast %282 : vector<8xf32> to vector<8x1xf32>
    %cst_153 = arith.constant 3.200000e+01 : f32
    %284 = vector.broadcast %cst_153 : f32 to vector<8x1xf32>
    %285 = arith.divf %283, %284 : vector<8x1xf32>
    %286 = vector.broadcast %278 : vector<8x1xf32> to vector<8x32xf32>
    %287 = arith.subf %270, %286 : vector<8x32xf32>
    %cst_154 = arith.constant 9.99999974E-6 : f32
    %288 = vector.broadcast %cst_154 : f32 to vector<8x1xf32>
    %289 = arith.addf %285, %288 : vector<8x1xf32>
    %290 = math.rsqrt %289 : vector<8x1xf32>
    %291 = vector.broadcast %290 : vector<8x1xf32> to vector<8x32xf32>
    %292 = arith.mulf %287, %291 : vector<8x32xf32>
    %293 = vector.broadcast %272 : vector<1x32xf32> to vector<8x32xf32>
    %294 = arith.mulf %292, %293 : vector<8x32xf32>
    %295 = vector.broadcast %274 : vector<1x32xf32> to vector<8x32xf32>
    %296 = arith.addf %294, %295 : vector<8x32xf32>
    %c0_155 = arith.constant 0 : index
    %c0_156 = arith.constant 0 : index
    %c0_157 = arith.constant 0 : index
    %297 = vector.load %arg4[%c0_155, %c0_156, %c0_157] : memref<1x1x7xf32, #tpu.memory_space<vmem>>, vector<1x1x7xf32>
    %298 = vector.shape_cast %297 : vector<1x1x7xf32> to vector<1x7xf32>
    %299 = arith.truncf %298 : vector<1x7xf32> to vector<1x7xbf16>
    %300 = vector.extract_strided_slice %296 {offsets = [0, 0], sizes = [7, 32], strides = [1, 1]} : vector<8x32xf32> to vector<7x32xf32>
    %301 = arith.truncf %300 : vector<7x32xf32> to vector<7x32xbf16>
    "tpu.trace_start"() <{level = 10 : i32, message = "bs,sh->bh"}> : () -> ()
    %cst_158 = arith.constant dense<0.000000e+00> : vector<1x32xf32>
    %302 = tpu.matmul %299, %301, %cst_158 {dimension_numbers = #tpu.dot_dimension_numbers<[1], [0], [0], [1], [0, 0, 1, 1], [], []>} : vector<1x7xbf16>, vector<7x32xbf16>, vector<1x32xf32> -> vector<1x32xf32>
    "tpu.trace_stop"() : () -> ()
    %c0_159 = arith.constant 0 : index
    %c0_160 = arith.constant 0 : index
    %c0_161 = arith.constant 0 : index
    %303 = vector.load %arg5[%c0_159, %c0_160, %c0_161] : memref<1x1x1xf32, #tpu.memory_space<vmem>>, vector<1x1x1xf32>
    %304 = vector.shape_cast %303 : vector<1x1x1xf32> to vector<1x1xf32>
    %305 = tpu.reciprocal %304 {approx = true} : vector<1x1xf32> -> vector<1x1xf32>
    %306 = vector.broadcast %305 : vector<1x1xf32> to vector<1x32xf32>
    %307 = arith.mulf %302, %306 : vector<1x32xf32>
    %308 = vector.extract_strided_slice %296 {offsets = [7, 0], sizes = [1, 32], strides = [1, 1]} : vector<8x32xf32> to vector<1x32xf32>
    %c0_162 = arith.constant 0 : index
    %c0_163 = arith.constant 0 : index
    %309 = vector.load %arg24[%c0_162, %c0_163] : memref<1x32xbf16, #tpu.memory_space<vmem>>, vector<1x32xbf16>
    %310 = arith.truncf %307 : vector<1x32xf32> to vector<1x32xbf16>
    "tpu.trace_start"() <{level = 10 : i32, message = "mk,ok->mo"}> : () -> ()
    %311 = arith.extf %310 : vector<1x32xbf16> to vector<1x32xf32>
    %312 = arith.extf %309 : vector<1x32xbf16> to vector<1x32xf32>
    %cst_164 = arith.constant dense<0.000000e+00> : vector<1xf32>
    %313 = arith.mulf %311, %312 : vector<1x32xf32>
    %314 = vector.multi_reduction <add>, %313, %cst_164 [1] : vector<1x32xf32> to vector<1xf32>
    %315 = vector.shape_cast %314 : vector<1xf32> to vector<1x1xf32>
    "tpu.trace_stop"() : () -> ()
    %c0_165 = arith.constant 0 : index
    %c0_166 = arith.constant 0 : index
    %316 = vector.load %arg25[%c0_165, %c0_166] : memref<1x32xbf16, #tpu.memory_space<vmem>>, vector<1x32xbf16>
    %317 = arith.truncf %308 : vector<1x32xf32> to vector<1x32xbf16>
    "tpu.trace_start"() <{level = 10 : i32, message = "mk,ok->mo"}> : () -> ()
    %318 = arith.extf %317 : vector<1x32xbf16> to vector<1x32xf32>
    %319 = arith.extf %316 : vector<1x32xbf16> to vector<1x32xf32>
    %cst_167 = arith.constant dense<0.000000e+00> : vector<1xf32>
    %320 = arith.mulf %318, %319 : vector<1x32xf32>
    %321 = vector.multi_reduction <add>, %320, %cst_167 [1] : vector<1x32xf32> to vector<1xf32>
    %322 = vector.shape_cast %321 : vector<1xf32> to vector<1x1xf32>
    "tpu.trace_stop"() : () -> ()
    %323 = arith.addf %315, %322 : vector<1x1xf32>
    %c0_168 = arith.constant 0 : index
    %c0_169 = arith.constant 0 : index
    %324 = vector.load %arg26[%c0_168, %c0_169] : memref<1x1xf32, #tpu.memory_space<vmem>>, vector<1x1xf32>
    %325 = arith.addf %323, %324 : vector<1x1xf32>
    %326 = arith.negf %325 : vector<1x1xf32>
    %327 = math.exp %326 : vector<1x1xf32>
    %cst_170 = arith.constant 1.000000e+00 : f32
    %328 = vector.broadcast %cst_170 : f32 to vector<1x1xf32>
    %329 = arith.addf %328, %327 : vector<1x1xf32>
    %330 = arith.divf %328, %329 : vector<1x1xf32>
    %331 = vector.shape_cast %330 : vector<1x1xf32> to vector<1x1x1xf32>
    %c0_171 = arith.constant 0 : index
    %c0_172 = arith.constant 0 : index
    %c0_173 = arith.constant 0 : index
    %332 = vector.load %arg27[%c0_171, %c0_172, %c0_173] : memref<1x1x1xf32, #tpu.memory_space<vmem>>, vector<1x1x1xf32>
    tpu.vector_store %arg27[%c0_171, %c0_172, %c0_173], %331 {strides = array<i32>} : memref<1x1x1xf32, #tpu.memory_space<vmem>>, vector<1x1x1xf32>,
    return
  }
  func.func @transform_0(%arg0: i32) -> (i32, i32, i32) {
    %c0_i32 = arith.constant 0 : i32
    %c0_i32_0 = arith.constant 0 : i32
    %c0_i32_1 = arith.constant 0 : i32
    return %arg0, %c0_i32, %c0_i32_0 : i32, i32, i32
  }
  func.func @transform_1(%arg0: i32) -> (i32, i32, i32) {
    %c0_i32 = arith.constant 0 : i32
    %c0_i32_0 = arith.constant 0 : i32
    %c0_i32_1 = arith.constant 0 : i32
    return %arg0, %c0_i32, %c0_i32_0 : i32, i32, i32
  }
  func.func @transform_2(%arg0: i32) -> (i32, i32, i32) {
    %c0_i32 = arith.constant 0 : i32
    %c0_i32_0 = arith.constant 0 : i32
    %c0_i32_1 = arith.constant 0 : i32
    return %arg0, %c0_i32, %c0_i32_0 : i32, i32, i32
  }
  func.func @transform_3(%arg0: i32) -> (i32, i32, i32) {
    %c0_i32 = arith.constant 0 : i32
    %c0_i32_0 = arith.constant 0 : i32
    %c0_i32_1 = arith.constant 0 : i32
    return %arg0, %c0_i32, %c0_i32_0 : i32, i32, i32
  }
  func.func @transform_4(%arg0: i32) -> (i32, i32, i32) {
    %c0_i32 = arith.constant 0 : i32
    %c0_i32_0 = arith.constant 0 : i32
    %c0_i32_1 = arith.constant 0 : i32
    return %arg0, %c0_i32, %c0_i32_0 : i32, i32, i32
  }
  func.func @transform_5(%arg0: i32) -> (i32, i32) {
    %c0_i32 = arith.constant 0 : i32
    %c0_i32_0 = arith.constant 0 : i32
    %c0_i32_1 = arith.constant 0 : i32
    return %c0_i32, %c0_i32_0 : i32, i32
  }
  func.func @transform_6(%arg0: i32) -> (i32, i32) {
    %c0_i32 = arith.constant 0 : i32
    %c0_i32_0 = arith.constant 0 : i32
    %c0_i32_1 = arith.constant 0 : i32
    return %c0_i32, %c0_i32_0 : i32, i32
  }
  func.func @transform_7(%arg0: i32) -> (i32, i32, i32) {
    %c0_i32 = arith.constant 0 : i32
    %c0_i32_0 = arith.constant 0 : i32
    %c0_i32_1 = arith.constant 0 : i32
    %c0_i32_2 = arith.constant 0 : i32
    return %c0_i32, %c0_i32_0, %c0_i32_1 : i32, i32, i32
  }
  func.func @transform_8(%arg0: i32) -> (i32, i32, i32) {
    %c0_i32 = arith.constant 0 : i32
    %c0_i32_0 = arith.constant 0 : i32
    %c0_i32_1 = arith.constant 0 : i32
    %c0_i32_2 = arith.constant 0 : i32
    return %c0_i32, %c0_i32_0, %c0_i32_1 : i32, i32, i32
  }
  func.func @transform_9(%arg0: i32) -> (i32, i32, i32) {
    %c0_i32 = arith.constant 0 : i32
    %c0_i32_0 = arith.constant 0 : i32
    %c0_i32_1 = arith.constant 0 : i32
    %c0_i32_2 = arith.constant 0 : i32
    return %c0_i32, %c0_i32_0, %c0_i32_1 : i32, i32, i32
  }
  func.func @transform_10(%arg0: i32) -> (i32, i32, i32) {
    %c0_i32 = arith.constant 0 : i32
    %c0_i32_0 = arith.constant 0 : i32
    %c0_i32_1 = arith.constant 0 : i32
    %c0_i32_2 = arith.constant 0 : i32
    return %c0_i32, %c0_i32_0, %c0_i32_1 : i32, i32, i32
  }
  func.func @transform_11(%arg0: i32) -> (i32, i32, i32) {
    %c0_i32 = arith.constant 0 : i32
    %c0_i32_0 = arith.constant 0 : i32
    %c0_i32_1 = arith.constant 0 : i32
    %c0_i32_2 = arith.constant 0 : i32
    return %c0_i32, %c0_i32_0, %c0_i32_1 : i32, i32, i32
  }
  func.func @transform_12(%arg0: i32) -> (i32, i32, i32) {
    %c0_i32 = arith.constant 0 : i32
    %c0_i32_0 = arith.constant 0 : i32
    %c0_i32_1 = arith.constant 0 : i32
    %c0_i32_2 = arith.constant 0 : i32
    return %c0_i32, %c0_i32_0, %c0_i32_1 : i32, i32, i32
  }
  func.func @transform_13(%arg0: i32) -> (i32, i32, i32) {
    %c0_i32 = arith.constant 0 : i32
    %c0_i32_0 = arith.constant 0 : i32
    %c0_i32_1 = arith.constant 0 : i32
    %c0_i32_2 = arith.constant 0 : i32
    return %c0_i32, %c0_i32_0, %c0_i32_1 : i32, i32, i32
  }
  func.func @transform_14(%arg0: i32) -> (i32, i32, i32) {
    %c0_i32 = arith.constant 0 : i32
    %c0_i32_0 = arith.constant 0 : i32
    %c0_i32_1 = arith.constant 0 : i32
    %c0_i32_2 = arith.constant 0 : i32
    return %c0_i32, %c0_i32_0, %c0_i32_1 : i32, i32, i32
  }
  func.func @transform_15(%arg0: i32) -> (i32, i32, i32) {
    %c0_i32 = arith.constant 0 : i32
    %c0_i32_0 = arith.constant 0 : i32
    %c0_i32_1 = arith.constant 0 : i32
    %c0_i32_2 = arith.constant 0 : i32
    return %c0_i32, %c0_i32_0, %c0_i32_1 : i32, i32, i32
  }
  func.func @transform_16(%arg0: i32) -> (i32, i32, i32) {
    %c0_i32 = arith.constant 0 : i32
    %c0_i32_0 = arith.constant 0 : i32
    %c0_i32_1 = arith.constant 0 : i32
    %c0_i32_2 = arith.constant 0 : i32
    return %c0_i32, %c0_i32_0, %c0_i32_1 : i32, i32, i32
  }
  func.func @transform_17(%arg0: i32) -> (i32, i32, i32) {
    %c0_i32 = arith.constant 0 : i32
    %c0_i32_0 = arith.constant 0 : i32
    %c0_i32_1 = arith.constant 0 : i32
    %c0_i32_2 = arith.constant 0 : i32
    return %c0_i32, %c0_i32_0, %c0_i32_1 : i32, i32, i32
  }
  func.func @transform_18(%arg0: i32) -> (i32, i32, i32) {
    %c0_i32 = arith.constant 0 : i32
    %c0_i32_0 = arith.constant 0 : i32
    %c0_i32_1 = arith.constant 0 : i32
    %c0_i32_2 = arith.constant 0 : i32
    return %c0_i32, %c0_i32_0, %c0_i32_1 : i32, i32, i32
  }
  func.func @transform_19(%arg0: i32) -> (i32, i32, i32) {
    %c0_i32 = arith.constant 0 : i32
    %c0_i32_0 = arith.constant 0 : i32
    %c0_i32_1 = arith.constant 0 : i32
    %c0_i32_2 = arith.constant 0 : i32
    return %c0_i32, %c0_i32_0, %c0_i32_1 : i32, i32, i32
  }
  func.func @transform_20(%arg0: i32) -> (i32, i32, i32) {
    %c0_i32 = arith.constant 0 : i32
    %c0_i32_0 = arith.constant 0 : i32
    %c0_i32_1 = arith.constant 0 : i32
    %c0_i32_2 = arith.constant 0 : i32
    return %c0_i32, %c0_i32_0, %c0_i32_1 : i32, i32, i32
  }
  func.func @transform_21(%arg0: i32) -> (i32, i32, i32) {
    %c0_i32 = arith.constant 0 : i32
    %c0_i32_0 = arith.constant 0 : i32
    %c0_i32_1 = arith.constant 0 : i32
    %c0_i32_2 = arith.constant 0 : i32
    return %c0_i32, %c0_i32_0, %c0_i32_1 : i32, i32, i32
  }
  func.func @transform_22(%arg0: i32) -> (i32, i32, i32) {
    %c0_i32 = arith.constant 0 : i32
    %c0_i32_0 = arith.constant 0 : i32
    %c0_i32_1 = arith.constant 0 : i32
    %c0_i32_2 = arith.constant 0 : i32
    return %c0_i32, %c0_i32_0, %c0_i32_1 : i32, i32, i32
  }
  func.func @transform_23(%arg0: i32) -> (i32, i32) {
    %c0_i32 = arith.constant 0 : i32
    %c0_i32_0 = arith.constant 0 : i32
    %c0_i32_1 = arith.constant 0 : i32
    return %c0_i32, %c0_i32_0 : i32, i32
  }
  func.func @transform_24(%arg0: i32) -> (i32, i32) {
    %c0_i32 = arith.constant 0 : i32
    %c0_i32_0 = arith.constant 0 : i32
    %c0_i32_1 = arith.constant 0 : i32
    return %c0_i32, %c0_i32_0 : i32, i32
  }
  func.func @transform_25(%arg0: i32) -> (i32, i32) {
    %c0_i32 = arith.constant 0 : i32
    %c0_i32_0 = arith.constant 0 : i32
    %c0_i32_1 = arith.constant 0 : i32
    return %c0_i32, %c0_i32_0 : i32, i32
  }
  func.func @transform_26(%arg0: i32) -> (i32, i32, i32) {
    %c0_i32 = arith.constant 0 : i32
    %c0_i32_0 = arith.constant 0 : i32
    %c0_i32_1 = arith.constant 0 : i32
    return %arg0, %c0_i32, %c0_i32_0 : i32, i32, i32
  }
}

</mosaic_0001>

<llo_original>
// kernel: acmr_forward.1
$region0: #{acmr_forward.1}
  #allocation0 [shape = 'u32[]', space=smem, size = 0x4, offset = 0x4, fixed_abs, tag = 'smem constant byte address 0x4 - core index']
  #allocation1 [shape = 'u32[144,128]{1,0:T(1,128)}', space=vmem, size = 0x12000, scoped, tag = 'internal scratch']
  #allocation2 [shape = 'f32[1,1]{1,0:T(1,128)S(1)}', space=vmem, size = 0x200, scoped, tag = 'scoped memory for acmr_forward.1']
  %s0 = inlined_call_operand.vmem [shape: f32[2,8,32], index: 0, kind: input, shape index: {}]
  %s1 = inlined_call_operand.vmem [shape: f32[2,8,32], index: 1, kind: input, shape index: {}]
  %s2 = inlined_call_operand.vmem [shape: f32[2,1,8], index: 2, kind: input, shape index: {}]
  %s3 = inlined_call_operand.vmem [shape: f32[2,1,7], index: 3, kind: input, shape index: {}]
  %s4 = inlined_call_operand.vmem [shape: f32[2,1,1], index: 4, kind: input, shape index: {}]
  %s5 = inlined_call_operand.vmem [shape: f32[1,32], index: 5, kind: input, shape index: {}]
  %s6 = inlined_call_operand.vmem [shape: f32[1,32], index: 6, kind: input, shape index: {}]
  %s7 = inlined_call_operand.vmem [shape: bf16[2,32,32], index: 7, kind: input, shape index: {}]
  %s8 = inlined_call_operand.vmem [shape: f32[2,1,32], index: 8, kind: input, shape index: {}]
  %s9 = inlined_call_operand.vmem [shape: bf16[2,32,32], index: 9, kind: input, shape index: {}]
  %s10 = inlined_call_operand.vmem [shape: f32[2,1,32], index: 10, kind: input, shape index: {}]
  %s11 = inlined_call_operand.vmem [shape: bf16[2,32,32], index: 11, kind: input, shape index: {}]
  %s12 = inlined_call_operand.vmem [shape: f32[2,1,32], index: 12, kind: input, shape index: {}]
  %s13 = inlined_call_operand.vmem [shape: bf16[2,32,32], index: 13, kind: input, shape index: {}]
  %s14 = inlined_call_operand.vmem [shape: f32[2,1,32], index: 14, kind: input, shape index: {}]
  %s15 = inlined_call_operand.vmem [shape: f32[2,1,32], index: 15, kind: input, shape index: {}]
  %s16 = inlined_call_operand.vmem [shape: f32[2,1,32], index: 16, kind: input, shape index: {}]
  %s17 = inlined_call_operand.vmem [shape: bf16[2,128,32], index: 17, kind: input, shape index: {}]
  %s18 = inlined_call_operand.vmem [shape: f32[2,1,128], index: 18, kind: input, shape index: {}]
  %s19 = inlined_call_operand.vmem [shape: bf16[2,32,128], index: 19, kind: input, shape index: {}]
  %s20 = inlined_call_operand.vmem [shape: f32[2,1,32], index: 20, kind: input, shape index: {}]
  %s21 = inlined_call_operand.vmem [shape: f32[2,1,32], index: 21, kind: input, shape index: {}]
  %s22 = inlined_call_operand.vmem [shape: f32[2,1,32], index: 22, kind: input, shape index: {}]
  %s23 = inlined_call_operand.vmem [shape: bf16[1,32], index: 23, kind: input, shape index: {}]
  %s24 = inlined_call_operand.vmem [shape: bf16[1,32], index: 24, kind: input, shape index: {}]
  %s25 = inlined_call_operand.<no memory space> [shape: f32[1,1], index: 25, kind: input, shape index: {}]
  %s26 = inlined_call_operand.vmem [shape: f32[2,1,1], index: 26, kind: output, shape index: {}]
  %s27 = sld [smem:[#allocation0]]
  $region137: #{acmr_forward.1} parent=0
    _
  %s29 = ssub.s32 1, %s27
  %s30 = scalar_select 0, %s29, %s27
  %v31 = vstv %s25
  %32 = vst [vmem:[#allocation2] sm:$0x1] %v31
  loop: start=0, step=1, limit=4
  $region2: #{acmr_forward.1} parent=0 // loop_pre_header
    _
  $region3: #{acmr_forward.1} parent=0 // loop_header
    %s34 = sphi 0, %s38
    %p35 = scmp.ge.s32.totalorder %s34, 4
    %s44 = sphi 0, %s46
    %s47 = sphi 0, %s44
    %s48 = sphi 0, %s47
    %s64 = sphi 0, %s48
    %s70 = sphi 0, %s72
    %s73 = sphi 0, %s70
    %s74 = sphi 0, %s73
    %s90 = sphi 0, %s74
    %s96 = sphi 0, %s98
    %s99 = sphi 0, %s96
    %s100 = sphi 0, %s99
    %s116 = sphi 0, %s100
    %s122 = sphi 0, %s124
    %s125 = sphi 0, %s122
    %s126 = sphi 0, %s125
    %s142 = sphi 0, %s126
    %s148 = sphi 0, %s150
    %s151 = sphi 0, %s148
    %s152 = sphi 0, %s151
    %s168 = sphi 0, %s152
    %s172 = sphi 0, %s172
    %s174 = sphi 0, %s172
    %s175 = sphi 0, %s174
    %s189 = sphi 0, %s175
    %s193 = sphi 0, %s193
    %s195 = sphi 0, %s193
    %s196 = sphi 0, %s195
    %s210 = sphi 0, %s196
    %s214 = sphi 0, %s214
    %s216 = sphi 0, %s214
    %s217 = sphi 0, %s216
    %s231 = sphi 0, %s217
    %s235 = sphi 0, %s235
    %s237 = sphi 0, %s235
    %s238 = sphi 0, %s237
    %s252 = sphi 0, %s238
    %s256 = sphi 0, %s256
    %s258 = sphi 0, %s256
    %s259 = sphi 0, %s258
    %s273 = sphi 0, %s259
    %s277 = sphi 0, %s277
    %s279 = sphi 0, %s277
    %s280 = sphi 0, %s279
    %s294 = sphi 0, %s280
    %s298 = sphi 0, %s298
    %s300 = sphi 0, %s298
    %s301 = sphi 0, %s300
    %s315 = sphi 0, %s301
    %s319 = sphi 0, %s319
    %s321 = sphi 0, %s319
    %s322 = sphi 0, %s321
    %s336 = sphi 0, %s322
    %s340 = sphi 0, %s340
    %s342 = sphi 0, %s340
    %s343 = sphi 0, %s342
    %s357 = sphi 0, %s343
    %s361 = sphi 0, %s361
    %s363 = sphi 0, %s361
    %s364 = sphi 0, %s363
    %s378 = sphi 0, %s364
    %s382 = sphi 0, %s382
    %s384 = sphi 0, %s382
    %s385 = sphi 0, %s384
    %s399 = sphi 0, %s385
    %s403 = sphi 0, %s403
    %s405 = sphi 0, %s403
    %s406 = sphi 0, %s405
    %s420 = sphi 0, %s406
    %s424 = sphi 0, %s424
    %s426 = sphi 0, %s424
    %s427 = sphi 0, %s426
    %s441 = sphi 0, %s427
    %s445 = sphi 0, %s445
    %s447 = sphi 0, %s445
    %s448 = sphi 0, %s447
    %s462 = sphi 0, %s448
    %s466 = sphi 0, %s466
    %s468 = sphi 0, %s466
    %s469 = sphi 0, %s468
    %s483 = sphi 0, %s469
    %s487 = sphi 0, %s487
    %s489 = sphi 0, %s487
    %s490 = sphi 0, %s489
    %s504 = sphi 0, %s490
    %s508 = sphi 0, %s508
    %s510 = sphi 0, %s508
    %s511 = sphi 0, %s510
    %s525 = sphi 0, %s511
    %s529 = sphi 0, %s529
    %s531 = sphi 0, %s529
    %s532 = sphi 0, %s531
    %s546 = sphi 0, %s532
    %s550 = sphi 0, %s550
    %s552 = sphi 0, %s550
    %s553 = sphi 0, %s552
    %s567 = sphi 0, %s553
    %s571 = sphi 0, %s571
    %s573 = sphi 0, %s571
    %s574 = sphi 0, %s573
    %s588 = sphi 0, %s574
    %s592 = sphi 0, %s592
    %s594 = sphi 0, %s592
    %s595 = sphi 0, %s594
    %s609 = sphi 0, %s595
    %s615 = sphi 0, %s617
    %s618 = sphi 0, %s615
    %s619 = sphi 0, %s618
    %s635 = sphi 0, %s619
  $region4: #{acmr_forward.1} parent=0 // loop_header_branch
    %37 = sbr.rel (%p35) target = $region8
  $region5: #{acmr_forward.1} parent=0 // loop_body
    %s39 = ssub.s32 %s34, 1
    %s40 = ssub.s32 %s34, 2
    %s41 = sadd.s32 %s34, 1
    %s42 = ssub.s32 %s34, %s41
    %p43 = scmp.eq.s32.totalorder %s42, 0
    %s45 = sadd.s32 %s44, 1
    %s46 = scalar_select %p43, %s44, %s45
    %p49 = pneg %p43
    %p50 = scmp.eq.s32.totalorder %s34, 1
    %p51 = por %p49, %p50
    %p52 = scmp.ne.s32.totalorder %s44, %s47
    %p53 = scmp.eq.s32.totalorder %s34, 0
    %p54 = por %p52, %p53
    %p55 = scmp.ne.s32.totalorder %s44, %s47
    %p56 = scmp.eq.s32.totalorder %s39, 1
    %p57 = por %p55, %p56
    %p58 = scmp.ne.s32.totalorder %s47, %s48
    %p59 = scmp.eq.s32.totalorder %s39, 0
    %p60 = por %p58, %p59
    %p61 = scmp.ne.s32.totalorder %s47, %s48
    %p62 = scmp.eq.s32.totalorder %s40, 1
    %p63 = por %p61, %p62
    %p65 = scmp.ne.s32.totalorder %s48, %s64
    %p66 = scmp.eq.s32.totalorder %s40, 0
    %p67 = por %p65, %p66
    %s68 = ssub.s32 %s34, %s41
    %p69 = scmp.eq.s32.totalorder %s68, 0
    %s71 = sadd.s32 %s70, 1
    %s72 = scalar_select %p69, %s70, %s71
    %p75 = pneg %p69
    %p76 = scmp.eq.s32.totalorder %s34, 1
    %p77 = por %p75, %p76
    %p78 = scmp.ne.s32.totalorder %s70, %s73
    %p79 = scmp.eq.s32.totalorder %s34, 0
    %p80 = por %p78, %p79
    %p81 = scmp.ne.s32.totalorder %s70, %s73
    %p82 = scmp.eq.s32.totalorder %s39, 1
    %p83 = por %p81, %p82
    %p84 = scmp.ne.s32.totalorder %s73, %s74
    %p85 = scmp.eq.s32.totalorder %s39, 0
    %p86 = por %p84, %p85
    %p87 = scmp.ne.s32.totalorder %s73, %s74
    %p88 = scmp.eq.s32.totalorder %s40, 1
    %p89 = por %p87, %p88
    %p91 = scmp.ne.s32.totalorder %s74, %s90
    %p92 = scmp.eq.s32.totalorder %s40, 0
    %p93 = por %p91, %p92
    %s94 = ssub.s32 %s34, %s41
    %p95 = scmp.eq.s32.totalorder %s94, 0
    %s97 = sadd.s32 %s96, 1
    %s98 = scalar_select %p95, %s96, %s97
    %p101 = pneg %p95
    %p102 = scmp.eq.s32.totalorder %s34, 1
    %p103 = por %p101, %p102
    %p104 = scmp.ne.s32.totalorder %s96, %s99
    %p105 = scmp.eq.s32.totalorder %s34, 0
    %p106 = por %p104, %p105
    %p107 = scmp.ne.s32.totalorder %s96, %s99
    %p108 = scmp.eq.s32.totalorder %s39, 1
    %p109 = por %p107, %p108
    %p110 = scmp.ne.s32.totalorder %s99, %s100
    %p111 = scmp.eq.s32.totalorder %s39, 0
    %p112 = por %p110, %p111
    %p113 = scmp.ne.s32.totalorder %s99, %s100
    %p114 = scmp.eq.s32.totalorder %s40, 1
    %p115 = por %p113, %p114
    %p117 = scmp.ne.s32.totalorder %s100, %s116
    %p118 = scmp.eq.s32.totalorder %s40, 0
    %p119 = por %p117, %p118
    %s120 = ssub.s32 %s34, %s41
    %p121 = scmp.eq.s32.totalorder %s120, 0
    %s123 = sadd.s32 %s122, 1
    %s124 = scalar_select %p121, %s122, %s123
    %p127 = pneg %p121
    %p128 = scmp.eq.s32.totalorder %s34, 1
    %p129 = por %p127, %p128
    %p130 = scmp.ne.s32.totalorder %s122, %s125
    %p131 = scmp.eq.s32.totalorder %s34, 0
    %p132 = por %p130, %p131
    %p133 = scmp.ne.s32.totalorder %s122, %s125
    %p134 = scmp.eq.s32.totalorder %s39, 1
    %p135 = por %p133, %p134
    %p136 = scmp.ne.s32.totalorder %s125, %s126
    %p137 = scmp.eq.s32.totalorder %s39, 0
    %p138 = por %p136, %p137
    %p139 = scmp.ne.s32.totalorder %s125, %s126
    %p140 = scmp.eq.s32.totalorder %s40, 1
    %p141 = por %p139, %p140
    %p143 = scmp.ne.s32.totalorder %s126, %s142
    %p144 = scmp.eq.s32.totalorder %s40, 0
    %p145 = por %p143, %p144
    %s146 = ssub.s32 %s34, %s41
    %p147 = scmp.eq.s32.totalorder %s146, 0
    %s149 = sadd.s32 %s148, 1
    %s150 = scalar_select %p147, %s148, %s149
    %p153 = pneg %p147
    %p154 = scmp.eq.s32.totalorder %s34, 1
    %p155 = por %p153, %p154
    %p156 = scmp.ne.s32.totalorder %s148, %s151
    %p157 = scmp.eq.s32.totalorder %s34, 0
    %p158 = por %p156, %p157
    %p159 = scmp.ne.s32.totalorder %s148, %s151
    %p160 = scmp.eq.s32.totalorder %s39, 1
    %p161 = por %p159, %p160
    %p162 = scmp.ne.s32.totalorder %s151, %s152
    %p163 = scmp.eq.s32.totalorder %s39, 0
    %p164 = por %p162, %p163
    %p165 = scmp.ne.s32.totalorder %s151, %s152
    %p166 = scmp.eq.s32.totalorder %s40, 1
    %p167 = por %p165, %p166
    %p169 = scmp.ne.s32.totalorder %s152, %s168
    %p170 = scmp.eq.s32.totalorder %s40, 0
    %p171 = por %p169, %p170
    %s173 = sadd.s32 %s172, 1
    %p176 = scmp.eq.s32.totalorder %s34, 1
    %p177 = scmp.ne.s32.totalorder %s172, %s174
    %p178 = scmp.eq.s32.totalorder %s34, 0
    %p179 = por %p177, %p178
    %p180 = scmp.ne.s32.totalorder %s172, %s174
    %p181 = scmp.eq.s32.totalorder %s39, 1
    %p182 = por %p180, %p181
    %p183 = scmp.ne.s32.totalorder %s174, %s175
    %p184 = scmp.eq.s32.totalorder %s39, 0
    %p185 = por %p183, %p184
    %p186 = scmp.ne.s32.totalorder %s174, %s175
    %p187 = scmp.eq.s32.totalorder %s40, 1
    %p188 = por %p186, %p187
    %p190 = scmp.ne.s32.totalorder %s175, %s189
    %p191 = scmp.eq.s32.totalorder %s40, 0
    %p192 = por %p190, %p191
    %s194 = sadd.s32 %s193, 1
    %p197 = scmp.eq.s32.totalorder %s34, 1
    %p198 = scmp.ne.s32.totalorder %s193, %s195
    %p199 = scmp.eq.s32.totalorder %s34, 0
    %p200 = por %p198, %p199
    %p201 = scmp.ne.s32.totalorder %s193, %s195
    %p202 = scmp.eq.s32.totalorder %s39, 1
    %p203 = por %p201, %p202
    %p204 = scmp.ne.s32.totalorder %s195, %s196
    %p205 = scmp.eq.s32.totalorder %s39, 0
    %p206 = por %p204, %p205
    %p207 = scmp.ne.s32.totalorder %s195, %s196
    %p208 = scmp.eq.s32.totalorder %s40, 1
    %p209 = por %p207, %p208
    %p211 = scmp.ne.s32.totalorder %s196, %s210
    %p212 = scmp.eq.s32.totalorder %s40, 0
    %p213 = por %p211, %p212
    %s215 = sadd.s32 %s214, 1
    %p218 = scmp.eq.s32.totalorder %s34, 1
    %p219 = scmp.ne.s32.totalorder %s214, %s216
    %p220 = scmp.eq.s32.totalorder %s34, 0
    %p221 = por %p219, %p220
    %p222 = scmp.ne.s32.totalorder %s214, %s216
    %p223 = scmp.eq.s32.totalorder %s39, 1
    %p224 = por %p222, %p223
    %p225 = scmp.ne.s32.totalorder %s216, %s217
    %p226 = scmp.eq.s32.totalorder %s39, 0
    %p227 = por %p225, %p226
    %p228 = scmp.ne.s32.totalorder %s216, %s217
    %p229 = scmp.eq.s32.totalorder %s40, 1
    %p230 = por %p228, %p229
    %p232 = scmp.ne.s32.totalorder %s217, %s231
    %p233 = scmp.eq.s32.totalorder %s40, 0
    %p234 = por %p232, %p233
    %s236 = sadd.s32 %s235, 1
    %p239 = scmp.eq.s32.totalorder %s34, 1
    %p240 = scmp.ne.s32.totalorder %s235, %s237
    %p241 = scmp.eq.s32.totalorder %s34, 0
    %p242 = por %p240, %p241
    %p243 = scmp.ne.s32.totalorder %s235, %s237
    %p244 = scmp.eq.s32.totalorder %s39, 1
    %p245 = por %p243, %p244
    %p246 = scmp.ne.s32.totalorder %s237, %s238
    %p247 = scmp.eq.s32.totalorder %s39, 0
    %p248 = por %p246, %p247
    %p249 = scmp.ne.s32.totalorder %s237, %s238
    %p250 = scmp.eq.s32.totalorder %s40, 1
    %p251 = por %p249, %p250
    %p253 = scmp.ne.s32.totalorder %s238, %s252
    %p254 = scmp.eq.s32.totalorder %s40, 0
    %p255 = por %p253, %p254
    %s257 = sadd.s32 %s256, 1
    %p260 = scmp.eq.s32.totalorder %s34, 1
    %p261 = scmp.ne.s32.totalorder %s256, %s258
    %p262 = scmp.eq.s32.totalorder %s34, 0
    %p263 = por %p261, %p262
    %p264 = scmp.ne.s32.totalorder %s256, %s258
    %p265 = scmp.eq.s32.totalorder %s39, 1
    %p266 = por %p264, %p265
    %p267 = scmp.ne.s32.totalorder %s258, %s259
    %p268 = scmp.eq.s32.totalorder %s39, 0
    %p269 = por %p267, %p268
    %p270 = scmp.ne.s32.totalorder %s258, %s259
    %p271 = scmp.eq.s32.totalorder %s40, 1
    %p272 = por %p270, %p271
    %p274 = scmp.ne.s32.totalorder %s259, %s273
    %p275 = scmp.eq.s32.totalorder %s40, 0
    %p276 = por %p274, %p275
    %s278 = sadd.s32 %s277, 1
    %p281 = scmp.eq.s32.totalorder %s34, 1
    %p282 = scmp.ne.s32.totalorder %s277, %s279
    %p283 = scmp.eq.s32.totalorder %s34, 0
    %p284 = por %p282, %p283
    %p285 = scmp.ne.s32.totalorder %s277, %s279
    %p286 = scmp.eq.s32.totalorder %s39, 1
    %p287 = por %p285, %p286
    %p288 = scmp.ne.s32.totalorder %s279, %s280
    %p289 = scmp.eq.s32.totalorder %s39, 0
    %p290 = por %p288, %p289
    %p291 = scmp.ne.s32.totalorder %s279, %s280
    %p292 = scmp.eq.s32.totalorder %s40, 1
    %p293 = por %p291, %p292
    %p295 = scmp.ne.s32.totalorder %s280, %s294
    %p296 = scmp.eq.s32.totalorder %s40, 0
    %p297 = por %p295, %p296
    %s299 = sadd.s32 %s298, 1
    %p302 = scmp.eq.s32.totalorder %s34, 1
    %p303 = scmp.ne.s32.totalorder %s298, %s300
    %p304 = scmp.eq.s32.totalorder %s34, 0
    %p305 = por %p303, %p304
    %p306 = scmp.ne.s32.totalorder %s298, %s300
    %p307 = scmp.eq.s32.totalorder %s39, 1
    %p308 = por %p306, %p307
    %p309 = scmp.ne.s32.totalorder %s300, %s301
    %p310 = scmp.eq.s32.totalorder %s39, 0
    %p311 = por %p309, %p310
    %p312 = scmp.ne.s32.totalorder %s300, %s301
    %p313 = scmp.eq.s32.totalorder %s40, 1
    %p314 = por %p312, %p313
    %p316 = scmp.ne.s32.totalorder %s301, %s315
    %p317 = scmp.eq.s32.totalorder %s40, 0
    %p318 = por %p316, %p317
    %s320 = sadd.s32 %s319, 1
    %p323 = scmp.eq.s32.totalorder %s34, 1
    %p324 = scmp.ne.s32.totalorder %s319, %s321
    %p325 = scmp.eq.s32.totalorder %s34, 0
    %p326 = por %p324, %p325
    %p327 = scmp.ne.s32.totalorder %s319, %s321
    %p328 = scmp.eq.s32.totalorder %s39, 1
    %p329 = por %p327, %p328
    %p330 = scmp.ne.s32.totalorder %s321, %s322
    %p331 = scmp.eq.s32.totalorder %s39, 0
    %p332 = por %p330, %p331
    %p333 = scmp.ne.s32.totalorder %s321, %s322
    %p334 = scmp.eq.s32.totalorder %s40, 1
    %p335 = por %p333, %p334
    %p337 = scmp.ne.s32.totalorder %s322, %s336
    %p338 = scmp.eq.s32.totalorder %s40, 0
    %p339 = por %p337, %p338
    %s341 = sadd.s32 %s340, 1
    %p344 = scmp.eq.s32.totalorder %s34, 1
    %p345 = scmp.ne.s32.totalorder %s340, %s342
    %p346 = scmp.eq.s32.totalorder %s34, 0
    %p347 = por %p345, %p346
    %p348 = scmp.ne.s32.totalorder %s340, %s342
    %p349 = scmp.eq.s32.totalorder %s39, 1
    %p350 = por %p348, %p349
    %p351 = scmp.ne.s32.totalorder %s342, %s343
    %p352 = scmp.eq.s32.totalorder %s39, 0
    %p353 = por %p351, %p352
    %p354 = scmp.ne.s32.totalorder %s342, %s343
    %p355 = scmp.eq.s32.totalorder %s40, 1
    %p356 = por %p354, %p355
    %p358 = scmp.ne.s32.totalorder %s343, %s357
    %p359 = scmp.eq.s32.totalorder %s40, 0
    %p360 = por %p358, %p359
    %s362 = sadd.s32 %s361, 1
    %p365 = scmp.eq.s32.totalorder %s34, 1
    %p366 = scmp.ne.s32.totalorder %s361, %s363
    %p367 = scmp.eq.s32.totalorder %s34, 0
    %p368 = por %p366, %p367
    %p369 = scmp.ne.s32.totalorder %s361, %s363
    %p370 = scmp.eq.s32.totalorder %s39, 1
    %p371 = por %p369, %p370
    %p372 = scmp.ne.s32.totalorder %s363, %s364
    %p373 = scmp.eq.s32.totalorder %s39, 0
    %p374 = por %p372, %p373
    %p375 = scmp.ne.s32.totalorder %s363, %s364
    %p376 = scmp.eq.s32.totalorder %s40, 1
    %p377 = por %p375, %p376
    %p379 = scmp.ne.s32.totalorder %s364, %s378
    %p380 = scmp.eq.s32.totalorder %s40, 0
    %p381 = por %p379, %p380
    %s383 = sadd.s32 %s382, 1
    %p386 = scmp.eq.s32.totalorder %s34, 1
    %p387 = scmp.ne.s32.totalorder %s382, %s384
    %p388 = scmp.eq.s32.totalorder %s34, 0
    %p389 = por %p387, %p388
    %p390 = scmp.ne.s32.totalorder %s382, %s384
    %p391 = scmp.eq.s32.totalorder %s39, 1
    %p392 = por %p390, %p391
    %p393 = scmp.ne.s32.totalorder %s384, %s385
    %p394 = scmp.eq.s32.totalorder %s39, 0
    %p395 = por %p393, %p394
    %p396 = scmp.ne.s32.totalorder %s384, %s385
    %p397 = scmp.eq.s32.totalorder %s40, 1
    %p398 = por %p396, %p397
    %p400 = scmp.ne.s32.totalorder %s385, %s399
    %p401 = scmp.eq.s32.totalorder %s40, 0
    %p402 = por %p400, %p401
    %s404 = sadd.s32 %s403, 1
    %p407 = scmp.eq.s32.totalorder %s34, 1
    %p408 = scmp.ne.s32.totalorder %s403, %s405
    %p409 = scmp.eq.s32.totalorder %s34, 0
    %p410 = por %p408, %p409
    %p411 = scmp.ne.s32.totalorder %s403, %s405
    %p412 = scmp.eq.s32.totalorder %s39, 1
    %p413 = por %p411, %p412
    %p414 = scmp.ne.s32.totalorder %s405, %s406
    %p415 = scmp.eq.s32.totalorder %s39, 0
    %p416 = por %p414, %p415
    %p417 = scmp.ne.s32.totalorder %s405, %s406
    %p418 = scmp.eq.s32.totalorder %s40, 1
    %p419 = por %p417, %p418
    %p421 = scmp.ne.s32.totalorder %s406, %s420
    %p422 = scmp.eq.s32.totalorder %s40, 0
    %p423 = por %p421, %p422
    %s425 = sadd.s32 %s424, 1
    %p428 = scmp.eq.s32.totalorder %s34, 1
    %p429 = scmp.ne.s32.totalorder %s424, %s426
    %p430 = scmp.eq.s32.totalorder %s34, 0
    %p431 = por %p429, %p430
    %p432 = scmp.ne.s32.totalorder %s424, %s426
    %p433 = scmp.eq.s32.totalorder %s39, 1
    %p434 = por %p432, %p433
    %p435 = scmp.ne.s32.totalorder %s426, %s427
    %p436 = scmp.eq.s32.totalorder %s39, 0
    %p437 = por %p435, %p436
    %p438 = scmp.ne.s32.totalorder %s426, %s427
    %p439 = scmp.eq.s32.totalorder %s40, 1
    %p440 = por %p438, %p439
    %p442 = scmp.ne.s32.totalorder %s427, %s441
    %p443 = scmp.eq.s32.totalorder %s40, 0
    %p444 = por %p442, %p443
    %s446 = sadd.s32 %s445, 1
    %p449 = scmp.eq.s32.totalorder %s34, 1
    %p450 = scmp.ne.s32.totalorder %s445, %s447
    %p451 = scmp.eq.s32.totalorder %s34, 0
    %p452 = por %p450, %p451
    %p453 = scmp.ne.s32.totalorder %s445, %s447
    %p454 = scmp.eq.s32.totalorder %s39, 1
    %p455 = por %p453, %p454
    %p456 = scmp.ne.s32.totalorder %s447, %s448
    %p457 = scmp.eq.s32.totalorder %s39, 0
    %p458 = por %p456, %p457
    %p459 = scmp.ne.s32.totalorder %s447, %s448
    %p460 = scmp.eq.s32.totalorder %s40, 1
    %p461 = por %p459, %p460
    %p463 = scmp.ne.s32.totalorder %s448, %s462
    %p464 = scmp.eq.s32.totalorder %s40, 0
    %p465 = por %p463, %p464
    %s467 = sadd.s32 %s466, 1
    %p470 = scmp.eq.s32.totalorder %s34, 1
    %p471 = scmp.ne.s32.totalorder %s466, %s468
    %p472 = scmp.eq.s32.totalorder %s34, 0
    %p473 = por %p471, %p472
    %p474 = scmp.ne.s32.totalorder %s466, %s468
    %p475 = scmp.eq.s32.totalorder %s39, 1
    %p476 = por %p474, %p475
    %p477 = scmp.ne.s32.totalorder %s468, %s469
    %p478 = scmp.eq.s32.totalorder %s39, 0
    %p479 = por %p477, %p478
    %p480 = scmp.ne.s32.totalorder %s468, %s469
    %p481 = scmp.eq.s32.totalorder %s40, 1
    %p482 = por %p480, %p481
    %p484 = scmp.ne.s32.totalorder %s469, %s483
    %p485 = scmp.eq.s32.totalorder %s40, 0
    %p486 = por %p484, %p485
    %s488 = sadd.s32 %s487, 1
    %p491 = scmp.eq.s32.totalorder %s34, 1
    %p492 = scmp.ne.s32.totalorder %s487, %s489
    %p493 = scmp.eq.s32.totalorder %s34, 0
    %p494 = por %p492, %p493
    %p495 = scmp.ne.s32.totalorder %s487, %s489
    %p496 = scmp.eq.s32.totalorder %s39, 1
    %p497 = por %p495, %p496
    %p498 = scmp.ne.s32.totalorder %s489, %s490
    %p499 = scmp.eq.s32.totalorder %s39, 0
    %p500 = por %p498, %p499
    %p501 = scmp.ne.s32.totalorder %s489, %s490
    %p502 = scmp.eq.s32.totalorder %s40, 1
    %p503 = por %p501, %p502
    %p505 = scmp.ne.s32.totalorder %s490, %s504
    %p506 = scmp.eq.s32.totalorder %s40, 0
    %p507 = por %p505, %p506
    %s509 = sadd.s32 %s508, 1
    %p512 = scmp.eq.s32.totalorder %s34, 1
    %p513 = scmp.ne.s32.totalorder %s508, %s510
    %p514 = scmp.eq.s32.totalorder %s34, 0
    %p515 = por %p513, %p514
    %p516 = scmp.ne.s32.totalorder %s508, %s510
    %p517 = scmp.eq.s32.totalorder %s39, 1
    %p518 = por %p516, %p517
    %p519 = scmp.ne.s32.totalorder %s510, %s511
    %p520 = scmp.eq.s32.totalorder %s39, 0
    %p521 = por %p519, %p520
    %p522 = scmp.ne.s32.totalorder %s510, %s511
    %p523 = scmp.eq.s32.totalorder %s40, 1
    %p524 = por %p522, %p523
    %p526 = scmp.ne.s32.totalorder %s511, %s525
    %p527 = scmp.eq.s32.totalorder %s40, 0
    %p528 = por %p526, %p527
    %s530 = sadd.s32 %s529, 1
    %p533 = scmp.eq.s32.totalorder %s34, 1
    %p534 = scmp.ne.s32.totalorder %s529, %s531
    %p535 = scmp.eq.s32.totalorder %s34, 0
    %p536 = por %p534, %p535
    %p537 = scmp.ne.s32.totalorder %s529, %s531
    %p538 = scmp.eq.s32.totalorder %s39, 1
    %p539 = por %p537, %p538
    %p540 = scmp.ne.s32.totalorder %s531, %s532
    %p541 = scmp.eq.s32.totalorder %s39, 0
    %p542 = por %p540, %p541
    %p543 = scmp.ne.s32.totalorder %s531, %s532
    %p544 = scmp.eq.s32.totalorder %s40, 1
    %p545 = por %p543, %p544
    %p547 = scmp.ne.s32.totalorder %s532, %s546
    %p548 = scmp.eq.s32.totalorder %s40, 0
    %p549 = por %p547, %p548
    %s551 = sadd.s32 %s550, 1
    %p554 = scmp.eq.s32.totalorder %s34, 1
    %p555 = scmp.ne.s32.totalorder %s550, %s552
    %p556 = scmp.eq.s32.totalorder %s34, 0
    %p557 = por %p555, %p556
    %p558 = scmp.ne.s32.totalorder %s550, %s552
    %p559 = scmp.eq.s32.totalorder %s39, 1
    %p560 = por %p558, %p559
    %p561 = scmp.ne.s32.totalorder %s552, %s553
    %p562 = scmp.eq.s32.totalorder %s39, 0
    %p563 = por %p561, %p562
    %p564 = scmp.ne.s32.totalorder %s552, %s553
    %p565 = scmp.eq.s32.totalorder %s40, 1
    %p566 = por %p564, %p565
    %p568 = scmp.ne.s32.totalorder %s553, %s567
    %p569 = scmp.eq.s32.totalorder %s40, 0
    %p570 = por %p568, %p569
    %s572 = sadd.s32 %s571, 1
    %p575 = scmp.eq.s32.totalorder %s34, 1
    %p576 = scmp.ne.s32.totalorder %s571, %s573
    %p577 = scmp.eq.s32.totalorder %s34, 0
    %p578 = por %p576, %p577
    %p579 = scmp.ne.s32.totalorder %s571, %s573
    %p580 = scmp.eq.s32.totalorder %s39, 1
    %p581 = por %p579, %p580
    %p582 = scmp.ne.s32.totalorder %s573, %s574
    %p583 = scmp.eq.s32.totalorder %s39, 0
    %p584 = por %p582, %p583
    %p585 = scmp.ne.s32.totalorder %s573, %s574
    %p586 = scmp.eq.s32.totalorder %s40, 1
    %p587 = por %p585, %p586
    %p589 = scmp.ne.s32.totalorder %s574, %s588
    %p590 = scmp.eq.s32.totalorder %s40, 0
    %p591 = por %p589, %p590
    %s593 = sadd.s32 %s592, 1
    %p596 = scmp.eq.s32.totalorder %s34, 1
    %p597 = scmp.ne.s32.totalorder %s592, %s594
    %p598 = scmp.eq.s32.totalorder %s34, 0
    %p599 = por %p597, %p598
    %p600 = scmp.ne.s32.totalorder %s592, %s594
    %p601 = scmp.eq.s32.totalorder %s39, 1
    %p602 = por %p600, %p601
    %p603 = scmp.ne.s32.totalorder %s594, %s595
    %p604 = scmp.eq.s32.totalorder %s39, 0
    %p605 = por %p603, %p604
    %p606 = scmp.ne.s32.totalorder %s594, %s595
    %p607 = scmp.eq.s32.totalorder %s40, 1
    %p608 = por %p606, %p607
    %p610 = scmp.ne.s32.totalorder %s595, %s609
    %p611 = scmp.eq.s32.totalorder %s40, 0
    %p612 = por %p610, %p611
    %s613 = ssub.s32 %s34, %s41
    %p614 = scmp.eq.s32.totalorder %s613, 0
    %s616 = sadd.s32 %s615, 1
    %s617 = scalar_select %p614, %s615, %s616
    %p620 = pneg %p614
    %p621 = scmp.eq.s32.totalorder %s34, 1
    %p622 = por %p620, %p621
    %p623 = scmp.ne.s32.totalorder %s615, %s618
    %p624 = scmp.eq.s32.totalorder %s34, 0
    %p625 = por %p623, %p624
    %p626 = scmp.ne.s32.totalorder %s615, %s618
    %p627 = scmp.eq.s32.totalorder %s39, 1
    %p628 = por %p626, %p627
    %p629 = scmp.ne.s32.totalorder %s618, %s619
    %p630 = scmp.eq.s32.totalorder %s39, 0
    %p631 = por %p629, %p630
    %p632 = scmp.ne.s32.totalorder %s618, %s619
    %p633 = scmp.eq.s32.totalorder %s40, 1
    %p634 = por %p632, %p633
    %p636 = scmp.ne.s32.totalorder %s619, %s635
    %p637 = scmp.eq.s32.totalorder %s40, 0
    %p638 = por %p636, %p637
    %p639 = scmp.le.s32.totalorder 1, %s34
    %p640 = scmp.lt.s32.totalorder %s34, 3
    %p641 = pnand %p639, %p640
    %p642 = pneg %p641
    // Predicated region
    $region9: #{acmr_forward.1} parent=5 // pred_check
      _
    $region10: #{acmr_forward.1} parent=5 // pred_check_branch
      %644 = sbr.rel (%p641) target = $region12
    $region11: #{acmr_forward.1} parent=5 // pred_region
      %s645 = ssub.s32 %s34, 1
      // Predicated region
      $region13: #{acmr_forward.1} parent=11 // pred_check
        %p646 = pneg %p185
      $region14: #{acmr_forward.1} parent=11 // pred_check_branch
        %648 = sbr.rel (%p646) target = $region16
      $region15: #{acmr_forward.1} parent=11 // pred_region
        _
      $region16: #{acmr_forward.1} parent=11 // pred_fallthru
        _
      // Predicated region
      $region17: #{acmr_forward.1} parent=11 // pred_check
        %p649 = pneg %p206
      $region18: #{acmr_forward.1} parent=11 // pred_check_branch
        %651 = sbr.rel (%p649) target = $region20
      $region19: #{acmr_forward.1} parent=11 // pred_region
        _
      $region20: #{acmr_forward.1} parent=11 // pred_fallthru
        _
      // Predicated region
      $region21: #{acmr_forward.1} parent=11 // pred_check
        %p652 = pneg %p227
      $region22: #{acmr_forward.1} parent=11 // pred_check_branch
        %654 = sbr.rel (%p652) target = $region24
      $region23: #{acmr_forward.1} parent=11 // pred_region
        _
      $region24: #{acmr_forward.1} parent=11 // pred_fallthru
        _
      // Predicated region
      $region25: #{acmr_forward.1} parent=11 // pred_check
        %p655 = pneg %p248
      $region26: #{acmr_forward.1} parent=11 // pred_check_branch
        %657 = sbr.rel (%p655) target = $region28
      $region27: #{acmr_forward.1} parent=11 // pred_region
        _
      $region28: #{acmr_forward.1} parent=11 // pred_fallthru
        _
      // Predicated region
      $region29: #{acmr_forward.1} parent=11 // pred_check
        %p658 = pneg %p269
      $region30: #{acmr_forward.1} parent=11 // pred_check_branch
        %660 = sbr.rel (%p658) target = $region32
      $region31: #{acmr_forward.1} parent=11 // pred_region
        _
      $region32: #{acmr_forward.1} parent=11 // pred_fallthru
        _
      // Predicated region
      $region33: #{acmr_forward.1} parent=11 // pred_check
        %p661 = pneg %p290
      $region34: #{acmr_forward.1} parent=11 // pred_check_branch
        %663 = sbr.rel (%p661) target = $region36
      $region35: #{acmr_forward.1} parent=11 // pred_region
        _
      $region36: #{acmr_forward.1} parent=11 // pred_fallthru
        _
      // Predicated region
      $region37: #{acmr_forward.1} parent=11 // pred_check
        %p664 = pneg %p311
      $region38: #{acmr_forward.1} parent=11 // pred_check_branch
        %666 = sbr.rel (%p664) target = $region40
      $region39: #{acmr_forward.1} parent=11 // pred_region
        _
      $region40: #{acmr_forward.1} parent=11 // pred_fallthru
        _
      // Predicated region
      $region41: #{acmr_forward.1} parent=11 // pred_check
        %p667 = pneg %p332
      $region42: #{acmr_forward.1} parent=11 // pred_check_branch
        %669 = sbr.rel (%p667) target = $region44
      $region43: #{acmr_forward.1} parent=11 // pred_region
        _
      $region44: #{acmr_forward.1} parent=11 // pred_fallthru
        _
      // Predicated region
      $region45: #{acmr_forward.1} parent=11 // pred_check
        %p670 = pneg %p353
      $region46: #{acmr_forward.1} parent=11 // pred_check_branch
        %672 = sbr.rel (%p670) target = $region48
      $region47: #{acmr_forward.1} parent=11 // pred_region
        _
      $region48: #{acmr_forward.1} parent=11 // pred_fallthru
        _
      // Predicated region
      $region49: #{acmr_forward.1} parent=11 // pred_check
        %p673 = pneg %p374
      $region50: #{acmr_forward.1} parent=11 // pred_check_branch
        %675 = sbr.rel (%p673) target = $region52
      $region51: #{acmr_forward.1} parent=11 // pred_region
        _
      $region52: #{acmr_forward.1} parent=11 // pred_fallthru
        _
      // Predicated region
      $region53: #{acmr_forward.1} parent=11 // pred_check
        %p676 = pneg %p395
      $region54: #{acmr_forward.1} parent=11 // pred_check_branch
        %678 = sbr.rel (%p676) target = $region56
      $region55: #{acmr_forward.1} parent=11 // pred_region
        _
      $region56: #{acmr_forward.1} parent=11 // pred_fallthru
        _
      // Predicated region
      $region57: #{acmr_forward.1} parent=11 // pred_check
        %p679 = pneg %p416
      $region58: #{acmr_forward.1} parent=11 // pred_check_branch
        %681 = sbr.rel (%p679) target = $region60
      $region59: #{acmr_forward.1} parent=11 // pred_region
        _
      $region60: #{acmr_forward.1} parent=11 // pred_fallthru
        _
      // Predicated region
      $region61: #{acmr_forward.1} parent=11 // pred_check
        %p682 = pneg %p437
      $region62: #{acmr_forward.1} parent=11 // pred_check_branch
        %684 = sbr.rel (%p682) target = $region64
      $region63: #{acmr_forward.1} parent=11 // pred_region
        _
      $region64: #{acmr_forward.1} parent=11 // pred_fallthru
        _
      // Predicated region
      $region65: #{acmr_forward.1} parent=11 // pred_check
        %p685 = pneg %p458
      $region66: #{acmr_forward.1} parent=11 // pred_check_branch
        %687 = sbr.rel (%p685) target = $region68
      $region67: #{acmr_forward.1} parent=11 // pred_region
        _
      $region68: #{acmr_forward.1} parent=11 // pred_fallthru
        _
      // Predicated region
      $region69: #{acmr_forward.1} parent=11 // pred_check
        %p688 = pneg %p479
      $region70: #{acmr_forward.1} parent=11 // pred_check_branch
        %690 = sbr.rel (%p688) target = $region72
      $region71: #{acmr_forward.1} parent=11 // pred_region
        _
      $region72: #{acmr_forward.1} parent=11 // pred_fallthru
        _
      // Predicated region
      $region73: #{acmr_forward.1} parent=11 // pred_check
        %p691 = pneg %p500
      $region74: #{acmr_forward.1} parent=11 // pred_check_branch
        %693 = sbr.rel (%p691) target = $region76
      $region75: #{acmr_forward.1} parent=11 // pred_region
        _
      $region76: #{acmr_forward.1} parent=11 // pred_fallthru
        _
      // Predicated region
      $region77: #{acmr_forward.1} parent=11 // pred_check
        %p694 = pneg %p521
      $region78: #{acmr_forward.1} parent=11 // pred_check_branch
        %696 = sbr.rel (%p694) target = $region80
      $region79: #{acmr_forward.1} parent=11 // pred_region
        _
      $region80: #{acmr_forward.1} parent=11 // pred_fallthru
        _
      // Predicated region
      $region81: #{acmr_forward.1} parent=11 // pred_check
        %p697 = pneg %p542
      $region82: #{acmr_forward.1} parent=11 // pred_check_branch
        %699 = sbr.rel (%p697) target = $region84
      $region83: #{acmr_forward.1} parent=11 // pred_region
        _
      $region84: #{acmr_forward.1} parent=11 // pred_fallthru
        _
      // Predicated region
      $region85: #{acmr_forward.1} parent=11 // pred_check
        %p700 = pneg %p563
      $region86: #{acmr_forward.1} parent=11 // pred_check_branch
        %702 = sbr.rel (%p700) target = $region88
      $region87: #{acmr_forward.1} parent=11 // pred_region
        _
      $region88: #{acmr_forward.1} parent=11 // pred_fallthru
        _
      // Predicated region
      $region89: #{acmr_forward.1} parent=11 // pred_check
        %p703 = pneg %p584
      $region90: #{acmr_forward.1} parent=11 // pred_check_branch
        %705 = sbr.rel (%p703) target = $region92
      $region91: #{acmr_forward.1} parent=11 // pred_region
        _
      $region92: #{acmr_forward.1} parent=11 // pred_fallthru
        _
      // Predicated region
      $region93: #{acmr_forward.1} parent=11 // pred_check
        %p706 = pneg %p605
      $region94: #{acmr_forward.1} parent=11 // pred_check_branch
        %708 = sbr.rel (%p706) target = $region96
      $region95: #{acmr_forward.1} parent=11 // pred_region
        _
      $region96: #{acmr_forward.1} parent=11 // pred_fallthru
        _
    $region12: #{acmr_forward.1} parent=5 // pred_fallthru
      _
    %p709 = scmp.lt.s32.totalorder %s34, 2
    // Predicated region
    $region97: #{acmr_forward.1} parent=5 // pred_check
      %p710 = pneg %p709
    $region98: #{acmr_forward.1} parent=5 // pred_check_branch
      %712 = sbr.rel (%p710) target = $region100
    $region99: #{acmr_forward.1} parent=5 // pred_region
      // Predicated region
      $region101: #{acmr_forward.1} parent=99 // pred_check
        %p713 = pneg %p54
      $region102: #{acmr_forward.1} parent=99 // pred_check_branch
        %715 = sbr.rel (%p713) target = $region104
      $region103: #{acmr_forward.1} parent=99 // pred_region
        %p716 = scmp.lt.s32.totalorder %s34, 1
        %s717 = scalar_select %p716, %s34, 1
        %s718 = smul.addr %s717, 8
        %s719 = scalar_lea.vmem %s0, %s718
      $region104: #{acmr_forward.1} parent=99 // pred_fallthru
        _
      // Predicated region
      $region105: #{acmr_forward.1} parent=99 // pred_check
        %p720 = pneg %p80
      $region106: #{acmr_forward.1} parent=99 // pred_check_branch
        %722 = sbr.rel (%p720) target = $region108
      $region107: #{acmr_forward.1} parent=99 // pred_region
        %p723 = scmp.lt.s32.totalorder %s34, 1
        %s724 = scalar_select %p723, %s34, 1
        %s725 = smul.addr %s724, 8
        %s726 = scalar_lea.vmem %s1, %s725
      $region108: #{acmr_forward.1} parent=99 // pred_fallthru
        _
      // Predicated region
      $region109: #{acmr_forward.1} parent=99 // pred_check
        %p727 = pneg %p106
      $region110: #{acmr_forward.1} parent=99 // pred_check_branch
        %729 = sbr.rel (%p727) target = $region112
      $region111: #{acmr_forward.1} parent=99 // pred_region
        %p730 = scmp.lt.s32.totalorder %s34, 1
        %s731 = scalar_select %p730, %s34, 1
        %s732 = scalar_lea.vmem %s2, %s731
      $region112: #{acmr_forward.1} parent=99 // pred_fallthru
        _
      // Predicated region
      $region113: #{acmr_forward.1} parent=99 // pred_check
        %p733 = pneg %p132
      $region114: #{acmr_forward.1} parent=99 // pred_check_branch
        %735 = sbr.rel (%p733) target = $region116
      $region115: #{acmr_forward.1} parent=99 // pred_region
        %p736 = scmp.lt.s32.totalorder %s34, 1
        %s737 = scalar_select %p736, %s34, 1
        %s738 = scalar_lea.vmem %s3, %s737
      $region116: #{acmr_forward.1} parent=99 // pred_fallthru
        _
      // Predicated region
      $region117: #{acmr_forward.1} parent=99 // pred_check
        %p739 = pneg %p158
      $region118: #{acmr_forward.1} parent=99 // pred_check_branch
        %741 = sbr.rel (%p739) target = $region120
      $region119: #{acmr_forward.1} parent=99 // pred_region
        %p742 = scmp.lt.s32.totalorder %s34, 1
        %s743 = scalar_select %p742, %s34, 1
        %s744 = scalar_lea.vmem %s4, %s743
      $region120: #{acmr_forward.1} parent=99 // pred_fallthru
        _
    $region100: #{acmr_forward.1} parent=5 // pred_fallthru
      _
    %p745 = scmp.le.s32.totalorder 1, %s34
    %p746 = scmp.lt.s32.totalorder %s34, 3
    %p747 = pnand %p745, %p746
    %p748 = pneg %p747
    // Predicated region
    $region121: #{acmr_forward.1} parent=5 // pred_check
      _
    $region122: #{acmr_forward.1} parent=5 // pred_check_branch
      %750 = sbr.rel (%p747) target = $region124
    $region123: #{acmr_forward.1} parent=5 // pred_region
      %s751 = ssub.s32 %s34, 1
      %p752 = scmp.lt.s32.totalorder %s39, 1
      %s753 = scalar_select %p752, %s39, 1
      %s754 = smul.addr %s753, 8
      %s755 = scalar_lea.vmem %s0, %s754
      %p756 = pneg %p60
      %p757 = pneg %p57
      %p758 = scmp.lt.s32.totalorder %s39, 1
      %s759 = scalar_select %p758, %s39, 1
      %s760 = smul.addr %s759, 8
      %s761 = scalar_lea.vmem %s1, %s760
      %p762 = pneg %p86
      %p763 = pneg %p83
      %p764 = scmp.lt.s32.totalorder %s39, 1
      %s765 = scalar_select %p764, %s39, 1
      %s766 = scalar_lea.vmem %s2, %s765
      %p767 = pneg %p112
      %p768 = pneg %p109
      %p769 = scmp.lt.s32.totalorder %s39, 1
      %s770 = scalar_select %p769, %s39, 1
      %s771 = scalar_lea.vmem %s3, %s770
      %p772 = pneg %p138
      %p773 = pneg %p135
      %p774 = scmp.lt.s32.totalorder %s39, 1
      %s775 = scalar_select %p774, %s39, 1
      %s776 = scalar_lea.vmem %s4, %s775
      %p777 = pneg %p164
      %p778 = pneg %p161
      %p779 = pneg %p185
      %p780 = pneg %p182
      %p781 = pneg %p206
      %p782 = pneg %p203
      %p783 = pneg %p227
      %p784 = pneg %p224
      %p785 = pneg %p248
      %p786 = pneg %p245
      %p787 = pneg %p269
      %p788 = pneg %p266
      %p789 = pneg %p290
      %p790 = pneg %p287
      %p791 = pneg %p311
      %p792 = pneg %p308
      %p793 = pneg %p332
      %p794 = pneg %p329
      %p795 = pneg %p353
      %p796 = pneg %p350
      %p797 = pneg %p374
      %p798 = pneg %p371
      %p799 = pneg %p395
      %p800 = pneg %p392
      %p801 = pneg %p416
      %p802 = pneg %p413
      %p803 = pneg %p437
      %p804 = pneg %p434
      %p805 = pneg %p458
      %p806 = pneg %p455
      %p807 = pneg %p479
      %p808 = pneg %p476
      %p809 = pneg %p500
      %p810 = pneg %p497
      %p811 = pneg %p521
      %p812 = pneg %p518
      %p813 = pneg %p542
      %p814 = pneg %p539
      %p815 = pneg %p563
      %p816 = pneg %p560
      %p817 = pneg %p584
      %p818 = pneg %p581
      %p819 = pneg %p605
      %p820 = pneg %p602
      %p821 = pneg %p631
      %p822 = pneg %p628
      %p823 = scmp.lt.s32.totalorder %s39, 1
      %s824 = scalar_select %p823, %s39, 1
      %s825 = scalar_lea.vmem %s26, %s824
      %p826 = scmp.lt.s32.totalorder %s39, 1
      %s827 = scalar_select %p826, %s39, 1
      %s828 = smul.addr %s827, 8
      %s829 = scalar_lea.vmem %s0, %s828
      %p830 = scmp.lt.s32.totalorder %s39, 1
      %s831 = scalar_select %p830, %s39, 1
      %s832 = smul.addr %s831, 8
      %s833 = scalar_lea.vmem %s1, %s832
      %p834 = scmp.lt.s32.totalorder %s39, 1
      %s835 = scalar_select %p834, %s39, 1
      %s836 = scalar_lea.vmem %s2, %s835
      %p837 = scmp.lt.s32.totalorder %s39, 1
      %s838 = scalar_select %p837, %s39, 1
      %s839 = scalar_lea.vmem %s3, %s838
      %p840 = scmp.lt.s32.totalorder %s39, 1
      %s841 = scalar_select %p840, %s39, 1
      %s842 = scalar_lea.vmem %s4, %s841
      %p843 = scmp.lt.s32.totalorder %s39, 1
      %s844 = scalar_select %p843, %s39, 1
      %s845 = scalar_lea.vmem %s26, %s844
      %v847 = vld [vmem:[%s829] sm:$0xff]
      %v848 = vld [vmem:[%s833] sm:$0xff]
      %v849 = vadd.f32 %v847, %v848
      %v850 = vld [vmem:[%s5] sm:$0x1]
      %v851 = vld [vmem:[%s6] sm:$0x1]
      %vm852 = vcmask 261120
      %v853 = vsel %vm852, %v849, 0.0
      %854 = vadd.xlane.f32.xlu0 %v853
      %v855 = vpop.xlane.xlu0 %854
      %v856 = vrcp.pop 32.0
      %v857 = vmul.f32 %v855, %v856
      %v858 = vsub.f32 %v849, %v857
      %v859 = vmul.f32 %v858, %v858
      %v860 = vsel %vm852, %v859, 0.0
      %861 = vadd.xlane.f32.xlu0 %v860
      %v862 = vpop.xlane.xlu0 %861
      %v863 = vmul.f32 %v862, %v856
      %v864 = vadd.f32 %v863, 1e-05
      %v865 = vrsqrt.pop %v864
      %v866 = vmul.f32 %v858, %v865
      %v868 = vlaneseq
      %v869 = vshrl.u32 %v868, 7
      %v870 = vsub.s32 0, %v869
      %v871 = vrot.slane %v850, %v870
      %v873 = vmul.f32 %v866, %v871
      %v875 = vlaneseq
      %v876 = vshrl.u32 %v875, 7
      %v877 = vsub.s32 0, %v876
      %v878 = vrot.slane %v851, %v877
      %v880 = vadd.f32 %v873, %v878
      %v881 = vld [vmem:[%s836] sm:$0x1]
      %v882 = vld [vmem:[%s7] sm:$0xf]
      %v883 = vld [vmem:[%s7 + $0x4] sm:$0xf]
      %v884 = vld [vmem:[%s7 + $0x8] sm:$0xf]
      %v885 = vld [vmem:[%s7 + $0xc] sm:$0xf]
      %v886 = vpack.c.bf16 %v880, %v880
      %v887 = vld [vmem:[%s8] sm:$0x1]
      %v889 = vlaneseq
      %v890 = vshrl.u32 %v889, 7
      %v891 = vsub.s32 0, %v890
      %v892 = vrot.slane %v887, %v891
      %v898 = vunpack.c.l.b16 %v882
      %v899 = vunpack.c.l.b16 %v883
      %v900 = vunpack.c.l.b16 %v884
      %v901 = vunpack.c.l.b16 %v885
      %v902 = vpack.c.b16 %v899, %v898
      %v903 = vpack.c.b16 %v901, %v900
      %v905 = vsel %vm852, %v886, 0
      %v908 = vsel %vm852, %v902, 0
      %v911 = vsel %vm852, %v903, 0
      %913 = vmatprep.subr.bf16.mxu0 0
      %914 = vmatpush1.bf16.xpose.msra.mxu0 %v908
      %915 = vmatprep.subr.bf16.mxu0 0
      %916 = vmatpush1.bf16.xpose.msra.mxu0 %v911
      %917 = vmatprep.subr.bf16.mxu0 0
      %918 = vmatpush1.bf16.xpose.msra.mxu0 0
      %919 = vmatprep.subr.bf16.mxu0 0
      %920 = vmatpush1.bf16.xpose.msra.mxu0 0
      %921 = vmatprep.subr.bf16.mxu0 0
      %922 = vmatpush1.bf16.xpose.msra.mxu0 0
      %923 = vmatprep.subr.bf16.mxu0 0
      %924 = vmatpush1.bf16.xpose.msra.mxu0 0
      %925 = vmatprep.subr.bf16.mxu0 0
      %926 = vmatpush1.bf16.xpose.msra.mxu0 0
      %927 = vmatprep.subr.bf16.mxu0 0
      %928 = vmatpush1.bf16.xpose.msra.mxu0 0
      %929 = vmatprep.subr.bf16.mxu0 0
      %930 = vmatpush1.bf16.xpose.msra.mxu0 0
      %931 = vmatprep.subr.bf16.mxu0 0
      %932 = vmatpush1.bf16.xpose.msra.mxu0 0
      %933 = vmatprep.subr.bf16.mxu0 0
      %934 = vmatpush1.bf16.xpose.msra.mxu0 0
      %935 = vmatprep.subr.bf16.mxu0 0
      %936 = vmatpush1.bf16.xpose.msra.mxu0 0
      %937 = vmatprep.subr.bf16.mxu0 0
      %938 = vmatpush1.bf16.xpose.msra.mxu0 0
      %939 = vmatprep.subr.bf16.mxu0 0
      %940 = vmatpush1.bf16.xpose.msra.mxu0 0
      %941 = vmatprep.subr.bf16.mxu0 0
      %942 = vmatpush1.bf16.xpose.msra.mxu0 0
      %943 = vmatprep.subr.bf16.mxu0 0
      %944 = vmatpush1.bf16.xpose.msra.mxu0 0
      %945 = vmatprep.mubr.bf16.mxu0 0
      %946 = vmatmul.mubr.bf16.gmra.mrb[0].mxu0 %v905
      %v947 = vpop.f32.mrb[0].mxu0
      %v948 = vadd.f32 %v892, %v947
      %v949 = vpop.f32.mrb[0].mxu0
      %v950 = vpop.f32.mrb[0].mxu0
      %v951 = vpop.f32.mrb[0].mxu0
      %952 = vdwg.mxu0
      %954 = vrot.lane.b32.xlu0 %v948, 112
      %v955 = vpop.permute.xlu0 %954
      %v957 = vcombine.high %v948, 0.0
      %v959 = vunpack.c.l.s4 1983009808
      %v960 = vunpack.c.0.s8 %v959
      %v961 = vlaneseq
      %v962 = vshrl.u32 %v961, 7
      %v963 = vsub.s32 %v960, %v962
      %v964 = vrot.slane %v948, %v963
      %v966 = vunpack.c.l.s4 1983009808
      %v967 = vunpack.c.0.s8 %v966
      %v968 = vlaneseq
      %v969 = vshrl.u32 %v968, 7
      %v970 = vsub.s32 %v967, %v969
      %v971 = vrot.slane %v957, %v970
      %v972 = vcombine.high %v955, 0.0
      %v974 = vunpack.c.l.s4 1983009808
      %v975 = vunpack.c.0.s8 %v974
      %v976 = vlaneseq
      %v977 = vshrl.u32 %v976, 7
      %v978 = vsub.s32 %v975, %v977
      %v979 = vrot.slane %v955, %v978
      %v981 = vunpack.c.l.s4 1983009808
      %v982 = vunpack.c.0.s8 %v981
      %v983 = vlaneseq
      %v984 = vshrl.u32 %v983, 7
      %v985 = vsub.s32 %v982, %v984
      %v986 = vrot.slane %v972, %v985
      %v987 = vcombine.low %v964, %v979
      %v988 = vcombine.high %v964, %v979
      %v990 = vunpack.c.l.s4 1934713408
      %v991 = vunpack.c.0.s8 %v990
      %v992 = vlaneseq
      %v993 = vshrl.u32 %v992, 7
      %v994 = vsub.s32 %v991, %v993
      %v995 = vrot.slane %v987, %v994
      %v997 = vunpack.c.l.s4 1934713408
      %v998 = vunpack.c.0.s8 %v997
      %v999 = vlaneseq
      %v1000 = vshrl.u32 %v999, 7
      %v1001 = vsub.s32 %v998, %v1000
      %v1002 = vrot.slane %v988, %v1001
      %v1003 = vcombine.low %v971, %v986
      %v1004 = vcombine.high %v971, %v986
      %v1006 = vunpack.c.l.s4 1934713408
      %v1007 = vunpack.c.0.s8 %v1006
      %v1008 = vlaneseq
      %v1009 = vshrl.u32 %v1008, 7
      %v1010 = vsub.s32 %v1007, %v1009
      %v1011 = vrot.slane %v1003, %v1010
      %v1013 = vunpack.c.l.s4 1934713408
      %v1014 = vunpack.c.0.s8 %v1013
      %v1015 = vlaneseq
      %v1016 = vshrl.u32 %v1015, 7
      %v1017 = vsub.s32 %v1014, %v1016
      %v1018 = vrot.slane %v1004, %v1017
      %v1019 = vcombine.high %v995, 0.0
      %v1020 = vcombine.high %v1002, 0.0
      %v1021 = vcombine.high %v1011, 0.0
      %v1022 = vcombine.high %v1018, 0.0
      %v1023 = vcombine.low %v995, %v1002
      %v1025 = vunpack.c.l.s4 1983009808
      %v1026 = vunpack.c.0.s8 %v1025
      %v1027 = vlaneseq
      %v1028 = vshrl.u32 %v1027, 7
      %v1029 = vsub.s32 %v1026, %v1028
      %v1030 = vrot.slane %v1023, %v1029
      %v1031 = vcombine.low %v1019, %v1020
      %v1033 = vunpack.c.l.s4 1983009808
      %v1034 = vunpack.c.0.s8 %v1033
      %v1035 = vlaneseq
      %v1036 = vshrl.u32 %v1035, 7
      %v1037 = vsub.s32 %v1034, %v1036
      %v1038 = vrot.slane %v1031, %v1037
      %v1039 = vcombine.low %v1011, %v1018
      %v1041 = vunpack.c.l.s4 1983009808
      %v1042 = vunpack.c.0.s8 %v1041
      %v1043 = vlaneseq
      %v1044 = vshrl.u32 %v1043, 7
      %v1045 = vsub.s32 %v1042, %v1044
      %v1046 = vrot.slane %v1039, %v1045
      %v1047 = vcombine.low %v1021, %v1022
      %v1049 = vunpack.c.l.s4 1983009808
      %v1050 = vunpack.c.0.s8 %v1049
      %v1051 = vlaneseq
      %v1052 = vshrl.u32 %v1051, 7
      %v1053 = vsub.s32 %v1050, %v1052
      %v1054 = vrot.slane %v1047, %v1053
      %v1055 = vcombine.low %v1030, %v1038
      %v1057 = vunpack.c.l.s4 1934713408
      %v1058 = vunpack.c.0.s8 %v1057
      %v1059 = vlaneseq
      %v1060 = vshrl.u32 %v1059, 7
      %v1061 = vsub.s32 %v1058, %v1060
      %v1062 = vrot.slane %v1055, %v1061
      %v1063 = vcombine.low %v1046, %v1054
      %v1065 = vunpack.c.l.s4 1934713408
      %v1066 = vunpack.c.0.s8 %v1065
      %v1067 = vlaneseq
      %v1068 = vshrl.u32 %v1067, 7
      %v1069 = vsub.s32 %v1066, %v1068
      %v1070 = vrot.slane %v1063, %v1069
      %v1071 = vcombine.low %v1062, %v1070
      %v1072 = vcombine.high %v1062, %v1070
      %v1073 = vld [vmem:[%s9] sm:$0xf]
      %v1074 = vld [vmem:[%s9 + $0x4] sm:$0xf]
      %v1075 = vld [vmem:[%s9 + $0x8] sm:$0xf]
      %v1076 = vld [vmem:[%s9 + $0xc] sm:$0xf]
      %v1077 = vld [vmem:[%s10] sm:$0x1]
      %v1079 = vlaneseq
      %v1080 = vshrl.u32 %v1079, 7
      %v1081 = vsub.s32 0, %v1080
      %v1082 = vrot.slane %v1077, %v1081
      %v1088 = vunpack.c.l.b16 %v1073
      %v1089 = vunpack.c.l.b16 %v1074
      %v1090 = vunpack.c.l.b16 %v1075
      %v1091 = vunpack.c.l.b16 %v1076
      %v1092 = vpack.c.b16 %v1089, %v1088
      %v1093 = vpack.c.b16 %v1091, %v1090
      %v1095 = vsel %vm852, %v1092, 0
      %v1098 = vsel %vm852, %v1093, 0
      %1100 = vmatprep.subr.bf16.mxu0 0
      %1101 = vmatpush1.bf16.xpose.msra.mxu0 %v1095
      %1102 = vmatprep.subr.bf16.mxu0 0
      %1103 = vmatpush1.bf16.xpose.msra.mxu0 %v1098
      %1104 = vmatprep.subr.bf16.mxu0 0
      %1105 = vmatpush1.bf16.xpose.msra.mxu0 0
      %1106 = vmatprep.subr.bf16.mxu0 0
      %1107 = vmatpush1.bf16.xpose.msra.mxu0 0
      %1108 = vmatprep.subr.bf16.mxu0 0
      %1109 = vmatpush1.bf16.xpose.msra.mxu0 0
      %1110 = vmatprep.subr.bf16.mxu0 0
      %1111 = vmatpush1.bf16.xpose.msra.mxu0 0
      %1112 = vmatprep.subr.bf16.mxu0 0
      %1113 = vmatpush1.bf16.xpose.msra.mxu0 0
      %1114 = vmatprep.subr.bf16.mxu0 0
      %1115 = vmatpush1.bf16.xpose.msra.mxu0 0
      %1116 = vmatprep.subr.bf16.mxu0 0
      %1117 = vmatpush1.bf16.xpose.msra.mxu0 0
      %1118 = vmatprep.subr.bf16.mxu0 0
      %1119 = vmatpush1.bf16.xpose.msra.mxu0 0
      %1120 = vmatprep.subr.bf16.mxu0 0
      %1121 = vmatpush1.bf16.xpose.msra.mxu0 0
      %1122 = vmatprep.subr.bf16.mxu0 0
      %1123 = vmatpush1.bf16.xpose.msra.mxu0 0
      %1124 = vmatprep.subr.bf16.mxu0 0
      %1125 = vmatpush1.bf16.xpose.msra.mxu0 0
      %1126 = vmatprep.subr.bf16.mxu0 0
      %1127 = vmatpush1.bf16.xpose.msra.mxu0 0
      %1128 = vmatprep.subr.bf16.mxu0 0
      %1129 = vmatpush1.bf16.xpose.msra.mxu0 0
      %1130 = vmatprep.subr.bf16.mxu0 0
      %1131 = vmatpush1.bf16.xpose.msra.mxu0 0
      %1132 = vmatprep.mubr.bf16.mxu0 0
      %1133 = vmatmul.mubr.bf16.gmra.mrb[0].mxu0 %v905
      %v1134 = vpop.f32.mrb[0].mxu0
      %v1135 = vadd.f32 %v1082, %v1134
      %v1136 = vpop.f32.mrb[0].mxu0
      %v1137 = vpop.f32.mrb[0].mxu0
      %v1138 = vpop.f32.mrb[0].mxu0
      %1139 = vdwg.mxu0
      %1141 = vrot.lane.b32.xlu0 %v1135, 112
      %v1142 = vpop.permute.xlu0 %1141
      %v1144 = vcombine.high %v1135, 0.0
      %v1146 = vunpack.c.l.s4 1983009808
      %v1147 = vunpack.c.0.s8 %v1146
      %v1148 = vlaneseq
      %v1149 = vshrl.u32 %v1148, 7
      %v1150 = vsub.s32 %v1147, %v1149
      %v1151 = vrot.slane %v1135, %v1150
      %v1153 = vunpack.c.l.s4 1983009808
      %v1154 = vunpack.c.0.s8 %v1153
      %v1155 = vlaneseq
      %v1156 = vshrl.u32 %v1155, 7
      %v1157 = vsub.s32 %v1154, %v1156
      %v1158 = vrot.slane %v1144, %v1157
      %v1159 = vcombine.high %v1142, 0.0
      %v1161 = vunpack.c.l.s4 1983009808
      %v1162 = vunpack.c.0.s8 %v1161
      %v1163 = vlaneseq
      %v1164 = vshrl.u32 %v1163, 7
      %v1165 = vsub.s32 %v1162, %v1164
      %v1166 = vrot.slane %v1142, %v1165
      %v1168 = vunpack.c.l.s4 1983009808
      %v1169 = vunpack.c.0.s8 %v1168
      %v1170 = vlaneseq
      %v1171 = vshrl.u32 %v1170, 7
      %v1172 = vsub.s32 %v1169, %v1171
      %v1173 = vrot.slane %v1159, %v1172
      %v1174 = vcombine.low %v1151, %v1166
      %v1175 = vcombine.high %v1151, %v1166
      %v1177 = vunpack.c.l.s4 1934713408
      %v1178 = vunpack.c.0.s8 %v1177
      %v1179 = vlaneseq
      %v1180 = vshrl.u32 %v1179, 7
      %v1181 = vsub.s32 %v1178, %v1180
      %v1182 = vrot.slane %v1174, %v1181
      %v1184 = vunpack.c.l.s4 1934713408
      %v1185 = vunpack.c.0.s8 %v1184
      %v1186 = vlaneseq
      %v1187 = vshrl.u32 %v1186, 7
      %v1188 = vsub.s32 %v1185, %v1187
      %v1189 = vrot.slane %v1175, %v1188
      %v1190 = vcombine.low %v1158, %v1173
      %v1191 = vcombine.high %v1158, %v1173
      %v1193 = vunpack.c.l.s4 1934713408
      %v1194 = vunpack.c.0.s8 %v1193
      %v1195 = vlaneseq
      %v1196 = vshrl.u32 %v1195, 7
      %v1197 = vsub.s32 %v1194, %v1196
      %v1198 = vrot.slane %v1190, %v1197
      %v1200 = vunpack.c.l.s4 1934713408
      %v1201 = vunpack.c.0.s8 %v1200
      %v1202 = vlaneseq
      %v1203 = vshrl.u32 %v1202, 7
      %v1204 = vsub.s32 %v1201, %v1203
      %v1205 = vrot.slane %v1191, %v1204
      %v1206 = vcombine.high %v1182, 0.0
      %v1207 = vcombine.high %v1189, 0.0
      %v1208 = vcombine.high %v1198, 0.0
      %v1209 = vcombine.high %v1205, 0.0
      %v1210 = vcombine.low %v1182, %v1189
      %v1212 = vunpack.c.l.s4 1983009808
      %v1213 = vunpack.c.0.s8 %v1212
      %v1214 = vlaneseq
      %v1215 = vshrl.u32 %v1214, 7
      %v1216 = vsub.s32 %v1213, %v1215
      %v1217 = vrot.slane %v1210, %v1216
      %v1218 = vcombine.low %v1206, %v1207
      %v1220 = vunpack.c.l.s4 1983009808
      %v1221 = vunpack.c.0.s8 %v1220
      %v1222 = vlaneseq
      %v1223 = vshrl.u32 %v1222, 7
      %v1224 = vsub.s32 %v1221, %v1223
      %v1225 = vrot.slane %v1218, %v1224
      %v1226 = vcombine.low %v1198, %v1205
      %v1228 = vunpack.c.l.s4 1983009808
      %v1229 = vunpack.c.0.s8 %v1228
      %v1230 = vlaneseq
      %v1231 = vshrl.u32 %v1230, 7
      %v1232 = vsub.s32 %v1229, %v1231
      %v1233 = vrot.slane %v1226, %v1232
      %v1234 = vcombine.low %v1208, %v1209
      %v1236 = vunpack.c.l.s4 1983009808
      %v1237 = vunpack.c.0.s8 %v1236
      %v1238 = vlaneseq
      %v1239 = vshrl.u32 %v1238, 7
      %v1240 = vsub.s32 %v1237, %v1239
      %v1241 = vrot.slane %v1234, %v1240
      %v1242 = vcombine.low %v1217, %v1225
      %v1244 = vunpack.c.l.s4 1934713408
      %v1245 = vunpack.c.0.s8 %v1244
      %v1246 = vlaneseq
      %v1247 = vshrl.u32 %v1246, 7
      %v1248 = vsub.s32 %v1245, %v1247
      %v1249 = vrot.slane %v1242, %v1248
      %v1250 = vcombine.low %v1233, %v1241
      %v1252 = vunpack.c.l.s4 1934713408
      %v1253 = vunpack.c.0.s8 %v1252
      %v1254 = vlaneseq
      %v1255 = vshrl.u32 %v1254, 7
      %v1256 = vsub.s32 %v1253, %v1255
      %v1257 = vrot.slane %v1250, %v1256
      %v1258 = vcombine.low %v1249, %v1257
      %v1259 = vcombine.high %v1249, %v1257
      %v1260 = vld [vmem:[%s11] sm:$0xf]
      %v1261 = vld [vmem:[%s11 + $0x4] sm:$0xf]
      %v1262 = vld [vmem:[%s11 + $0x8] sm:$0xf]
      %v1263 = vld [vmem:[%s11 + $0xc] sm:$0xf]
      %v1264 = vld [vmem:[%s12] sm:$0x1]
      %v1266 = vlaneseq
      %v1267 = vshrl.u32 %v1266, 7
      %v1268 = vsub.s32 0, %v1267
      %v1269 = vrot.slane %v1264, %v1268
      %v1275 = vunpack.c.l.b16 %v1260
      %v1276 = vunpack.c.l.b16 %v1261
      %v1277 = vunpack.c.l.b16 %v1262
      %v1278 = vunpack.c.l.b16 %v1263
      %v1279 = vpack.c.b16 %v1276, %v1275
      %v1280 = vpack.c.b16 %v1278, %v1277
      %v1282 = vsel %vm852, %v1279, 0
      %v1285 = vsel %vm852, %v1280, 0
      %1287 = vmatprep.subr.bf16.mxu0 0
      %1288 = vmatpush1.bf16.xpose.msra.mxu0 %v1282
      %1289 = vmatprep.subr.bf16.mxu0 0
      %1290 = vmatpush1.bf16.xpose.msra.mxu0 %v1285
      %1291 = vmatprep.subr.bf16.mxu0 0
      %1292 = vmatpush1.bf16.xpose.msra.mxu0 0
      %1293 = vmatprep.subr.bf16.mxu0 0
      %1294 = vmatpush1.bf16.xpose.msra.mxu0 0
      %1295 = vmatprep.subr.bf16.mxu0 0
      %1296 = vmatpush1.bf16.xpose.msra.mxu0 0
      %1297 = vmatprep.subr.bf16.mxu0 0
      %1298 = vmatpush1.bf16.xpose.msra.mxu0 0
      %1299 = vmatprep.subr.bf16.mxu0 0
      %1300 = vmatpush1.bf16.xpose.msra.mxu0 0
      %1301 = vmatprep.subr.bf16.mxu0 0
      %1302 = vmatpush1.bf16.xpose.msra.mxu0 0
      %1303 = vmatprep.subr.bf16.mxu0 0
      %1304 = vmatpush1.bf16.xpose.msra.mxu0 0
      %1305 = vmatprep.subr.bf16.mxu0 0
      %1306 = vmatpush1.bf16.xpose.msra.mxu0 0
      %1307 = vmatprep.subr.bf16.mxu0 0
      %1308 = vmatpush1.bf16.xpose.msra.mxu0 0
      %1309 = vmatprep.subr.bf16.mxu0 0
      %1310 = vmatpush1.bf16.xpose.msra.mxu0 0
      %1311 = vmatprep.subr.bf16.mxu0 0
      %1312 = vmatpush1.bf16.xpose.msra.mxu0 0
      %1313 = vmatprep.subr.bf16.mxu0 0
      %1314 = vmatpush1.bf16.xpose.msra.mxu0 0
      %1315 = vmatprep.subr.bf16.mxu0 0
      %1316 = vmatpush1.bf16.xpose.msra.mxu0 0
      %1317 = vmatprep.subr.bf16.mxu0 0
      %1318 = vmatpush1.bf16.xpose.msra.mxu0 0
      %1319 = vmatprep.mubr.bf16.mxu0 0
      %1320 = vmatmul.mubr.bf16.gmra.mrb[0].mxu0 %v905
      %v1321 = vpop.f32.mrb[0].mxu0
      %v1322 = vadd.f32 %v1269, %v1321
      %v1323 = vpop.f32.mrb[0].mxu0
      %v1324 = vpop.f32.mrb[0].mxu0
      %v1325 = vpop.f32.mrb[0].mxu0
      %1326 = vdwg.mxu0
      %1328 = vrot.lane.b32.xlu0 %v1322, 112
      %v1329 = vpop.permute.xlu0 %1328
      %v1331 = vcombine.high %v1322, 0.0
      %v1333 = vunpack.c.l.s4 1983009808
      %v1334 = vunpack.c.0.s8 %v1333
      %v1335 = vlaneseq
      %v1336 = vshrl.u32 %v1335, 7
      %v1337 = vsub.s32 %v1334, %v1336
      %v1338 = vrot.slane %v1322, %v1337
      %v1340 = vunpack.c.l.s4 1983009808
      %v1341 = vunpack.c.0.s8 %v1340
      %v1342 = vlaneseq
      %v1343 = vshrl.u32 %v1342, 7
      %v1344 = vsub.s32 %v1341, %v1343
      %v1345 = vrot.slane %v1331, %v1344
      %v1346 = vcombine.high %v1329, 0.0
      %v1348 = vunpack.c.l.s4 1983009808
      %v1349 = vunpack.c.0.s8 %v1348
      %v1350 = vlaneseq
      %v1351 = vshrl.u32 %v1350, 7
      %v1352 = vsub.s32 %v1349, %v1351
      %v1353 = vrot.slane %v1329, %v1352
      %v1355 = vunpack.c.l.s4 1983009808
      %v1356 = vunpack.c.0.s8 %v1355
      %v1357 = vlaneseq
      %v1358 = vshrl.u32 %v1357, 7
      %v1359 = vsub.s32 %v1356, %v1358
      %v1360 = vrot.slane %v1346, %v1359
      %v1361 = vcombine.low %v1338, %v1353
      %v1362 = vcombine.high %v1338, %v1353
      %v1364 = vunpack.c.l.s4 1934713408
      %v1365 = vunpack.c.0.s8 %v1364
      %v1366 = vlaneseq
      %v1367 = vshrl.u32 %v1366, 7
      %v1368 = vsub.s32 %v1365, %v1367
      %v1369 = vrot.slane %v1361, %v1368
      %v1371 = vunpack.c.l.s4 1934713408
      %v1372 = vunpack.c.0.s8 %v1371
      %v1373 = vlaneseq
      %v1374 = vshrl.u32 %v1373, 7
      %v1375 = vsub.s32 %v1372, %v1374
      %v1376 = vrot.slane %v1362, %v1375
      %v1377 = vcombine.low %v1345, %v1360
      %v1378 = vcombine.high %v1345, %v1360
      %v1380 = vunpack.c.l.s4 1934713408
      %v1381 = vunpack.c.0.s8 %v1380
      %v1382 = vlaneseq
      %v1383 = vshrl.u32 %v1382, 7
      %v1384 = vsub.s32 %v1381, %v1383
      %v1385 = vrot.slane %v1377, %v1384
      %v1387 = vunpack.c.l.s4 1934713408
      %v1388 = vunpack.c.0.s8 %v1387
      %v1389 = vlaneseq
      %v1390 = vshrl.u32 %v1389, 7
      %v1391 = vsub.s32 %v1388, %v1390
      %v1392 = vrot.slane %v1378, %v1391
      %v1393 = vcombine.high %v1369, 0.0
      %v1394 = vcombine.high %v1376, 0.0
      %v1395 = vcombine.high %v1385, 0.0
      %v1396 = vcombine.high %v1392, 0.0
      %v1397 = vcombine.low %v1369, %v1376
      %v1399 = vunpack.c.l.s4 1983009808
      %v1400 = vunpack.c.0.s8 %v1399
      %v1401 = vlaneseq
      %v1402 = vshrl.u32 %v1401, 7
      %v1403 = vsub.s32 %v1400, %v1402
      %v1404 = vrot.slane %v1397, %v1403
      %v1405 = vcombine.low %v1393, %v1394
      %v1407 = vunpack.c.l.s4 1983009808
      %v1408 = vunpack.c.0.s8 %v1407
      %v1409 = vlaneseq
      %v1410 = vshrl.u32 %v1409, 7
      %v1411 = vsub.s32 %v1408, %v1410
      %v1412 = vrot.slane %v1405, %v1411
      %v1413 = vcombine.low %v1385, %v1392
      %v1415 = vunpack.c.l.s4 1983009808
      %v1416 = vunpack.c.0.s8 %v1415
      %v1417 = vlaneseq
      %v1418 = vshrl.u32 %v1417, 7
      %v1419 = vsub.s32 %v1416, %v1418
      %v1420 = vrot.slane %v1413, %v1419
      %v1421 = vcombine.low %v1395, %v1396
      %v1423 = vunpack.c.l.s4 1983009808
      %v1424 = vunpack.c.0.s8 %v1423
      %v1425 = vlaneseq
      %v1426 = vshrl.u32 %v1425, 7
      %v1427 = vsub.s32 %v1424, %v1426
      %v1428 = vrot.slane %v1421, %v1427
      %v1429 = vcombine.low %v1404, %v1412
      %v1431 = vunpack.c.l.s4 1934713408
      %v1432 = vunpack.c.0.s8 %v1431
      %v1433 = vlaneseq
      %v1434 = vshrl.u32 %v1433, 7
      %v1435 = vsub.s32 %v1432, %v1434
      %v1436 = vrot.slane %v1429, %v1435
      %v1437 = vcombine.low %v1420, %v1428
      %v1439 = vunpack.c.l.s4 1934713408
      %v1440 = vunpack.c.0.s8 %v1439
      %v1441 = vlaneseq
      %v1442 = vshrl.u32 %v1441, 7
      %v1443 = vsub.s32 %v1440, %v1442
      %v1444 = vrot.slane %v1437, %v1443
      %v1445 = vcombine.low %v1436, %v1444
      %v1446 = vcombine.high %v1436, %v1444
      %v1447 = vpack.c.bf16 %v1071, %v1071
      %v1448 = vpack.c.bf16 %v1072, %v1072
      %v1449 = vpack.c.bf16 %v1258, %v1258
      %v1450 = vpack.c.bf16 %v1259, %v1259
      %vm1451 = vcmask 130048
      %v1453 = vsel %vm1451, %v1447, 0
      %v1456 = vsel %vm1451, %v1449, 0
      %1458 = vmatprep.subr.bf16.mxu0 0
      %1459 = vmatpush1.bf16.xpose.msra.mxu0 %v1456
      %1460 = vmatprep.subr.bf16.mxu0 0
      %1461 = vmatpush1.bf16.xpose.msra.mxu0 0
      %1462 = vmatprep.subr.bf16.mxu0 0
      %1463 = vmatpush1.bf16.xpose.msra.mxu0 0
      %1464 = vmatprep.subr.bf16.mxu0 0
      %1465 = vmatpush1.bf16.xpose.msra.mxu0 0
      %1466 = vmatprep.subr.bf16.mxu0 0
      %1467 = vmatpush1.bf16.xpose.msra.mxu0 0
      %1468 = vmatprep.subr.bf16.mxu0 0
      %1469 = vmatpush1.bf16.xpose.msra.mxu0 0
      %1470 = vmatprep.subr.bf16.mxu0 0
      %1471 = vmatpush1.bf16.xpose.msra.mxu0 0
      %1472 = vmatprep.subr.bf16.mxu0 0
      %1473 = vmatpush1.bf16.xpose.msra.mxu0 0
      %1474 = vmatprep.subr.bf16.mxu0 0
      %1475 = vmatpush1.bf16.xpose.msra.mxu0 0
      %1476 = vmatprep.subr.bf16.mxu0 0
      %1477 = vmatpush1.bf16.xpose.msra.mxu0 0
      %1478 = vmatprep.subr.bf16.mxu0 0
      %1479 = vmatpush1.bf16.xpose.msra.mxu0 0
      %1480 = vmatprep.subr.bf16.mxu0 0
      %1481 = vmatpush1.bf16.xpose.msra.mxu0 0
      %1482 = vmatprep.subr.bf16.mxu0 0
      %1483 = vmatpush1.bf16.xpose.msra.mxu0 0
      %1484 = vmatprep.subr.bf16.mxu0 0
      %1485 = vmatpush1.bf16.xpose.msra.mxu0 0
      %1486 = vmatprep.subr.bf16.mxu0 0
      %1487 = vmatpush1.bf16.xpose.msra.mxu0 0
      %1488 = vmatprep.subr.bf16.mxu0 0
      %1489 = vmatpush1.bf16.xpose.msra.mxu0 0
      %1490 = vmatprep.mubr.bf16.mxu0 0
      %1491 = vmatmul.mubr.bf16.gmra.mrb[0].mxu0 %v1453
      %v1492 = vpop.f32.mrb[0].mxu0
      %v1493 = vadd.f32 0.0, %v1492
      %v1494 = vpop.f32.mrb[0].mxu0
      %v1495 = vpop.f32.mrb[0].mxu0
      %v1496 = vpop.f32.mrb[0].mxu0
      %1497 = vdwg.mxu0
      %v1499 = vsel %vm1451, %v1448, 0
      %v1502 = vsel %vm1451, %v1450, 0
      %1504 = vmatprep.subr.bf16.mxu0 0
      %1505 = vmatpush1.bf16.xpose.msra.mxu0 %v1502
      %1506 = vmatprep.subr.bf16.mxu0 0
      %1507 = vmatpush1.bf16.xpose.msra.mxu0 0
      %1508 = vmatprep.subr.bf16.mxu0 0
      %1509 = vmatpush1.bf16.xpose.msra.mxu0 0
      %1510 = vmatprep.subr.bf16.mxu0 0
      %1511 = vmatpush1.bf16.xpose.msra.mxu0 0
      %1512 = vmatprep.subr.bf16.mxu0 0
      %1513 = vmatpush1.bf16.xpose.msra.mxu0 0
      %1514 = vmatprep.subr.bf16.mxu0 0
      %1515 = vmatpush1.bf16.xpose.msra.mxu0 0
      %1516 = vmatprep.subr.bf16.mxu0 0
      %1517 = vmatpush1.bf16.xpose.msra.mxu0 0
      %1518 = vmatprep.subr.bf16.mxu0 0
      %1519 = vmatpush1.bf16.xpose.msra.mxu0 0
      %1520 = vmatprep.subr.bf16.mxu0 0
      %1521 = vmatpush1.bf16.xpose.msra.mxu0 0
      %1522 = vmatprep.subr.bf16.mxu0 0
      %1523 = vmatpush1.bf16.xpose.msra.mxu0 0
      %1524 = vmatprep.subr.bf16.mxu0 0
      %1525 = vmatpush1.bf16.xpose.msra.mxu0 0
      %1526 = vmatprep.subr.bf16.mxu0 0
      %1527 = vmatpush1.bf16.xpose.msra.mxu0 0
      %1528 = vmatprep.subr.bf16.mxu0 0
      %1529 = vmatpush1.bf16.xpose.msra.mxu0 0
      %1530 = vmatprep.subr.bf16.mxu0 0
      %1531 = vmatpush1.bf16.xpose.msra.mxu0 0
      %1532 = vmatprep.subr.bf16.mxu0 0
      %1533 = vmatpush1.bf16.xpose.msra.mxu0 0
      %1534 = vmatprep.subr.bf16.mxu0 0
      %1535 = vmatpush1.bf16.xpose.msra.mxu0 0
      %1536 = vmatprep.mubr.bf16.mxu0 0
      %1537 = vmatmul.mubr.bf16.gmra.mrb[0].mxu0 %v1499
      %v1538 = vpop.f32.mrb[0].mxu0
      %v1539 = vadd.f32 0.0, %v1538
      %v1540 = vpop.f32.mrb[0].mxu0
      %v1541 = vpop.f32.mrb[0].mxu0
      %v1542 = vpop.f32.mrb[0].mxu0
      %1543 = vdwg.mxu0
      %v1544 = vmul.f32 %v1493, 0.25
      %v1545 = vmul.f32 %v1539, 0.25
      %v1547 = vlaneseq
      %v1548 = vshrl.u32 %v1547, 7
      %v1549 = vsub.s32 0, %v1548
      %v1550 = vrot.slane %v881, %v1549
      %v1552 = vadd.f32 %v1544, %v1550
      %v1553 = vadd.f32 %v1545, %v1550
      %vm1554 = vcmask 64512
      %v1555 = vsel %vm1554, %v1552, -inf
      %1556 = vmax.xlane.f32.xlu0 %v1555
      %v1557 = vpop.xlane.xlu0 %1556
      %v1558 = vsel %vm1554, %v1553, -inf
      %1559 = vmax.xlane.f32.xlu0 %v1558
      %v1560 = vpop.xlane.xlu0 %1559
      %v1561 = vsub.f32 %v1552, %v1557
      %v1562 = vsub.f32 %v1553, %v1560
      %v1563 = vmul.f32 %v1561, 1.442695
      %v1564 = vpow.pop %v1563
      %v1565 = vmul.f32 %v1562, 1.442695
      %v1566 = vpow.pop %v1565
      %v1567 = vsel %vm1554, %v1564, 0.0
      %1568 = vadd.xlane.f32.xlu0 %v1567
      %v1569 = vpop.xlane.xlu0 %1568
      %v1570 = vsel %vm1554, %v1566, 0.0
      %1571 = vadd.xlane.f32.xlu0 %v1570
      %v1572 = vpop.xlane.xlu0 %1571
      %v1573 = vrcp.pop %v1569
      %v1574 = vrcp.pop %v1572
      %v1575 = vmul.f32 %v1564, %v1573
      %v1576 = vmul.f32 %v1566, %v1574
      %v1577 = vpack.c.bf16 %v1575, %v1575
      %v1578 = vpack.c.bf16 %v1576, %v1576
      %v1579 = vpack.c.bf16 %v1445, %v1445
      %v1580 = vpack.c.bf16 %v1446, %v1446
      %v1582 = vsel %vm1554, %v1577, 0
      %vm1584 = vcmask 1043456
      %v1586 = vsel %vm1584, %v1579, 0
      %1588 = vmatprep.subr.bf16.mxu0 0
      %1589 = vmatpush1.bf16.msra.mxu0 %v1586
      %1590 = vmatprep.subr.bf16.mxu0 0
      %1591 = vmatpush1.bf16.msra.mxu0 0
      %1592 = vmatprep.subr.bf16.mxu0 0
      %1593 = vmatpush1.bf16.msra.mxu0 0
      %1594 = vmatprep.subr.bf16.mxu0 0
      %1595 = vmatpush1.bf16.msra.mxu0 0
      %1596 = vmatprep.subr.bf16.mxu0 0
      %1597 = vmatpush1.bf16.msra.mxu0 0
      %1598 = vmatprep.subr.bf16.mxu0 0
      %1599 = vmatpush1.bf16.msra.mxu0 0
      %1600 = vmatprep.subr.bf16.mxu0 0
      %1601 = vmatpush1.bf16.msra.mxu0 0
      %1602 = vmatprep.subr.bf16.mxu0 0
      %1603 = vmatpush1.bf16.msra.mxu0 0
      %1604 = vmatprep.subr.bf16.mxu0 0
      %1605 = vmatpush1.bf16.msra.mxu0 0
      %1606 = vmatprep.subr.bf16.mxu0 0
      %1607 = vmatpush1.bf16.msra.mxu0 0
      %1608 = vmatprep.subr.bf16.mxu0 0
      %1609 = vmatpush1.bf16.msra.mxu0 0
      %1610 = vmatprep.subr.bf16.mxu0 0
      %1611 = vmatpush1.bf16.msra.mxu0 0
      %1612 = vmatprep.subr.bf16.mxu0 0
      %1613 = vmatpush1.bf16.msra.mxu0 0
      %1614 = vmatprep.subr.bf16.mxu0 0
      %1615 = vmatpush1.bf16.msra.mxu0 0
      %1616 = vmatprep.subr.bf16.mxu0 0
      %1617 = vmatpush1.bf16.msra.mxu0 0
      %1618 = vmatprep.subr.bf16.mxu0 0
      %1619 = vmatpush1.bf16.msra.mxu0 0
      %1620 = vmatprep.mubr.bf16.mxu0 0
      %1621 = vmatmul.mubr.bf16.gmra.mrb[0].mxu0 %v1582
      %v1622 = vpop.f32.mrb[0].mxu0
      %v1623 = vadd.f32 0.0, %v1622
      %v1624 = vpop.f32.mrb[0].mxu0
      %v1625 = vpop.f32.mrb[0].mxu0
      %v1626 = vpop.f32.mrb[0].mxu0
      %1627 = vdwg.mxu0
      %v1629 = vsel %vm1554, %v1578, 0
      %v1632 = vsel %vm1584, %v1580, 0
      %1634 = vmatprep.subr.bf16.mxu0 0
      %1635 = vmatpush1.bf16.msra.mxu0 %v1632
      %1636 = vmatprep.subr.bf16.mxu0 0
      %1637 = vmatpush1.bf16.msra.mxu0 0
      %1638 = vmatprep.subr.bf16.mxu0 0
      %1639 = vmatpush1.bf16.msra.mxu0 0
      %1640 = vmatprep.subr.bf16.mxu0 0
      %1641 = vmatpush1.bf16.msra.mxu0 0
      %1642 = vmatprep.subr.bf16.mxu0 0
      %1643 = vmatpush1.bf16.msra.mxu0 0
      %1644 = vmatprep.subr.bf16.mxu0 0
      %1645 = vmatpush1.bf16.msra.mxu0 0
      %1646 = vmatprep.subr.bf16.mxu0 0
      %1647 = vmatpush1.bf16.msra.mxu0 0
      %1648 = vmatprep.subr.bf16.mxu0 0
      %1649 = vmatpush1.bf16.msra.mxu0 0
      %1650 = vmatprep.subr.bf16.mxu0 0
      %1651 = vmatpush1.bf16.msra.mxu0 0
      %1652 = vmatprep.subr.bf16.mxu0 0
      %1653 = vmatpush1.bf16.msra.mxu0 0
      %1654 = vmatprep.subr.bf16.mxu0 0
      %1655 = vmatpush1.bf16.msra.mxu0 0
      %1656 = vmatprep.subr.bf16.mxu0 0
      %1657 = vmatpush1.bf16.msra.mxu0 0
      %1658 = vmatprep.subr.bf16.mxu0 0
      %1659 = vmatpush1.bf16.msra.mxu0 0
      %1660 = vmatprep.subr.bf16.mxu0 0
      %1661 = vmatpush1.bf16.msra.mxu0 0
      %1662 = vmatprep.subr.bf16.mxu0 0
      %1663 = vmatpush1.bf16.msra.mxu0 0
      %1664 = vmatprep.subr.bf16.mxu0 0
      %1665 = vmatpush1.bf16.msra.mxu0 0
      %1666 = vmatprep.mubr.bf16.mxu0 0
      %1667 = vmatmul.mubr.bf16.gmra.mrb[0].mxu0 %v1629
      %v1668 = vpop.f32.mrb[0].mxu0
      %v1669 = vadd.f32 0.0, %v1668
      %v1670 = vpop.f32.mrb[0].mxu0
      %v1671 = vpop.f32.mrb[0].mxu0
      %v1672 = vpop.f32.mrb[0].mxu0
      %1673 = vdwg.mxu0
      %v1674 = vcombine.high %v1623, 0.0
      %v1676 = vunpack.c.l.s4 1983009808
      %v1677 = vunpack.c.0.s8 %v1676
      %v1678 = vlaneseq
      %v1679 = vshrl.u32 %v1678, 7
      %v1680 = vsub.s32 %v1677, %v1679
      %v1681 = vrot.slane %v1623, %v1680
      %v1683 = vunpack.c.l.s4 1983009808
      %v1684 = vunpack.c.0.s8 %v1683
      %v1685 = vlaneseq
      %v1686 = vshrl.u32 %v1685, 7
      %v1687 = vsub.s32 %v1684, %v1686
      %v1688 = vrot.slane %v1674, %v1687
      %v1689 = vcombine.high %v1669, 0.0
      %v1691 = vunpack.c.l.s4 1983009808
      %v1692 = vunpack.c.0.s8 %v1691
      %v1693 = vlaneseq
      %v1694 = vshrl.u32 %v1693, 7
      %v1695 = vsub.s32 %v1692, %v1694
      %v1696 = vrot.slane %v1669, %v1695
      %v1698 = vunpack.c.l.s4 1983009808
      %v1699 = vunpack.c.0.s8 %v1698
      %v1700 = vlaneseq
      %v1701 = vshrl.u32 %v1700, 7
      %v1702 = vsub.s32 %v1699, %v1701
      %v1703 = vrot.slane %v1689, %v1702
      %v1704 = vcombine.low %v1681, %v1696
      %v1705 = vcombine.high %v1681, %v1696
      %v1707 = vunpack.c.l.s4 1934713408
      %v1708 = vunpack.c.0.s8 %v1707
      %v1709 = vlaneseq
      %v1710 = vshrl.u32 %v1709, 7
      %v1711 = vsub.s32 %v1708, %v1710
      %v1712 = vrot.slane %v1704, %v1711
      %v1714 = vunpack.c.l.s4 1934713408
      %v1715 = vunpack.c.0.s8 %v1714
      %v1716 = vlaneseq
      %v1717 = vshrl.u32 %v1716, 7
      %v1718 = vsub.s32 %v1715, %v1717
      %v1719 = vrot.slane %v1705, %v1718
      %v1720 = vcombine.low %v1688, %v1703
      %v1721 = vcombine.high %v1688, %v1703
      %v1723 = vunpack.c.l.s4 1934713408
      %v1724 = vunpack.c.0.s8 %v1723
      %v1725 = vlaneseq
      %v1726 = vshrl.u32 %v1725, 7
      %v1727 = vsub.s32 %v1724, %v1726
      %v1728 = vrot.slane %v1720, %v1727
      %v1730 = vunpack.c.l.s4 1934713408
      %v1731 = vunpack.c.0.s8 %v1730
      %v1732 = vlaneseq
      %v1733 = vshrl.u32 %v1732, 7
      %v1734 = vsub.s32 %v1731, %v1733
      %v1735 = vrot.slane %v1721, %v1734
      %v1736 = vcombine.high %v1712, 0.0
      %v1737 = vcombine.high %v1719, 0.0
      %v1738 = vcombine.high %v1728, 0.0
      %v1739 = vcombine.high %v1735, 0.0
      %v1740 = vcombine.low %v1712, %v1719
      %v1742 = vunpack.c.l.s4 1983009808
      %v1743 = vunpack.c.0.s8 %v1742
      %v1744 = vlaneseq
      %v1745 = vshrl.u32 %v1744, 7
      %v1746 = vsub.s32 %v1743, %v1745
      %v1747 = vrot.slane %v1740, %v1746
      %v1748 = vcombine.low %v1736, %v1737
      %v1750 = vunpack.c.l.s4 1983009808
      %v1751 = vunpack.c.0.s8 %v1750
      %v1752 = vlaneseq
      %v1753 = vshrl.u32 %v1752, 7
      %v1754 = vsub.s32 %v1751, %v1753
      %v1755 = vrot.slane %v1748, %v1754
      %v1756 = vcombine.low %v1728, %v1735
      %v1758 = vunpack.c.l.s4 1983009808
      %v1759 = vunpack.c.0.s8 %v1758
      %v1760 = vlaneseq
      %v1761 = vshrl.u32 %v1760, 7
      %v1762 = vsub.s32 %v1759, %v1761
      %v1763 = vrot.slane %v1756, %v1762
      %v1764 = vcombine.low %v1738, %v1739
      %v1766 = vunpack.c.l.s4 1983009808
      %v1767 = vunpack.c.0.s8 %v1766
      %v1768 = vlaneseq
      %v1769 = vshrl.u32 %v1768, 7
      %v1770 = vsub.s32 %v1767, %v1769
      %v1771 = vrot.slane %v1764, %v1770
      %v1772 = vcombine.low %v1747, %v1755
      %v1774 = vunpack.c.l.s4 1934713408
      %v1775 = vunpack.c.0.s8 %v1774
      %v1776 = vlaneseq
      %v1777 = vshrl.u32 %v1776, 7
      %v1778 = vsub.s32 %v1775, %v1777
      %v1779 = vrot.slane %v1772, %v1778
      %v1780 = vcombine.low %v1763, %v1771
      %v1782 = vunpack.c.l.s4 1934713408
      %v1783 = vunpack.c.0.s8 %v1782
      %v1784 = vlaneseq
      %v1785 = vshrl.u32 %v1784, 7
      %v1786 = vsub.s32 %v1783, %v1785
      %v1787 = vrot.slane %v1780, %v1786
      %v1788 = vcombine.low %v1779, %v1787
      %v1789 = vcombine.high %v1779, %v1787
      %1791 = vrot.lane.b32.xlu0 %v1789, 16
      %v1792 = vpop.permute.xlu0 %1791
      %v1794 = vsel %vm1451, %v1788, %v1792
      %v1795 = vld [vmem:[%s13] sm:$0xf]
      %v1796 = vld [vmem:[%s13 + $0x4] sm:$0xf]
      %v1797 = vld [vmem:[%s13 + $0x8] sm:$0xf]
      %v1798 = vld [vmem:[%s13 + $0xc] sm:$0xf]
      %v1799 = vpack.c.bf16 %v1794, %v1794
      %v1800 = vld [vmem:[%s14] sm:$0x1]
      %v1802 = vlaneseq
      %v1803 = vshrl.u32 %v1802, 7
      %v1804 = vsub.s32 0, %v1803
      %v1805 = vrot.slane %v1800, %v1804
      %v1811 = vunpack.c.l.b16 %v1795
      %v1812 = vunpack.c.l.b16 %v1796
      %v1813 = vunpack.c.l.b16 %v1797
      %v1814 = vunpack.c.l.b16 %v1798
      %v1815 = vpack.c.b16 %v1812, %v1811
      %v1816 = vpack.c.b16 %v1814, %v1813
      %v1818 = vsel %vm852, %v1799, 0
      %v1821 = vsel %vm852, %v1815, 0
      %v1824 = vsel %vm852, %v1816, 0
      %1826 = vmatprep.subr.bf16.mxu0 0
      %1827 = vmatpush1.bf16.xpose.msra.mxu0 %v1821
      %1828 = vmatprep.subr.bf16.mxu0 0
      %1829 = vmatpush1.bf16.xpose.msra.mxu0 %v1824
      %1830 = vmatprep.subr.bf16.mxu0 0
      %1831 = vmatpush1.bf16.xpose.msra.mxu0 0
      %1832 = vmatprep.subr.bf16.mxu0 0
      %1833 = vmatpush1.bf16.xpose.msra.mxu0 0
      %1834 = vmatprep.subr.bf16.mxu0 0
      %1835 = vmatpush1.bf16.xpose.msra.mxu0 0
      %1836 = vmatprep.subr.bf16.mxu0 0
      %1837 = vmatpush1.bf16.xpose.msra.mxu0 0
      %1838 = vmatprep.subr.bf16.mxu0 0
      %1839 = vmatpush1.bf16.xpose.msra.mxu0 0
      %1840 = vmatprep.subr.bf16.mxu0 0
      %1841 = vmatpush1.bf16.xpose.msra.mxu0 0
      %1842 = vmatprep.subr.bf16.mxu0 0
      %1843 = vmatpush1.bf16.xpose.msra.mxu0 0
      %1844 = vmatprep.subr.bf16.mxu0 0
      %1845 = vmatpush1.bf16.xpose.msra.mxu0 0
      %1846 = vmatprep.subr.bf16.mxu0 0
      %1847 = vmatpush1.bf16.xpose.msra.mxu0 0
      %1848 = vmatprep.subr.bf16.mxu0 0
      %1849 = vmatpush1.bf16.xpose.msra.mxu0 0
      %1850 = vmatprep.subr.bf16.mxu0 0
      %1851 = vmatpush1.bf16.xpose.msra.mxu0 0
      %1852 = vmatprep.subr.bf16.mxu0 0
      %1853 = vmatpush1.bf16.xpose.msra.mxu0 0
      %1854 = vmatprep.subr.bf16.mxu0 0
      %1855 = vmatpush1.bf16.xpose.msra.mxu0 0
      %1856 = vmatprep.subr.bf16.mxu0 0
      %1857 = vmatpush1.bf16.xpose.msra.mxu0 0
      %1858 = vmatprep.mubr.bf16.mxu0 0
      %1859 = vmatmul.mubr.bf16.gmra.mrb[0].mxu0 %v1818
      %v1860 = vpop.f32.mrb[0].mxu0
      %v1861 = vadd.f32 %v1805, %v1860
      %v1862 = vpop.f32.mrb[0].mxu0
      %v1863 = vpop.f32.mrb[0].mxu0
      %v1864 = vpop.f32.mrb[0].mxu0
      %1865 = vdwg.mxu0
      %v1866 = vadd.f32 %v880, %v1861
      %v1867 = vld [vmem:[%s15] sm:$0x1]
      %v1868 = vld [vmem:[%s16] sm:$0x1]
      %v1869 = vsel %vm852, %v1866, 0.0
      %1870 = vadd.xlane.f32.xlu0 %v1869
      %v1871 = vpop.xlane.xlu0 %1870
      %v1872 = vmul.f32 %v1871, %v856
      %v1873 = vsub.f32 %v1866, %v1872
      %v1874 = vmul.f32 %v1873, %v1873
      %v1875 = vsel %vm852, %v1874, 0.0
      %1876 = vadd.xlane.f32.xlu0 %v1875
      %v1877 = vpop.xlane.xlu0 %1876
      %v1878 = vmul.f32 %v1877, %v856
      %v1879 = vadd.f32 %v1878, 1e-05
      %v1880 = vrsqrt.pop %v1879
      %v1881 = vmul.f32 %v1873, %v1880
      %v1883 = vlaneseq
      %v1884 = vshrl.u32 %v1883, 7
      %v1885 = vsub.s32 0, %v1884
      %v1886 = vrot.slane %v1867, %v1885
      %v1888 = vmul.f32 %v1881, %v1886
      %v1890 = vlaneseq
      %v1891 = vshrl.u32 %v1890, 7
      %v1892 = vsub.s32 0, %v1891
      %v1893 = vrot.slane %v1868, %v1892
      %v1895 = vadd.f32 %v1888, %v1893
      %v1896 = vld [vmem:[%s17] sm:$0xf]
      %v1897 = vld [vmem:[%s17 + $0x4] sm:$0xf]
      %v1898 = vld [vmem:[%s17 + $0x8] sm:$0xf]
      %v1899 = vld [vmem:[%s17 + $0xc] sm:$0xf]
      %v1900 = vld [vmem:[%s17 + $0x10] sm:$0xf]
      %v1901 = vld [vmem:[%s17 + $0x14] sm:$0xf]
      %v1902 = vld [vmem:[%s17 + $0x18] sm:$0xf]
      %v1903 = vld [vmem:[%s17 + $0x1c] sm:$0xf]
      %v1904 = vld [vmem:[%s17 + $0x20] sm:$0xf]
      %v1905 = vld [vmem:[%s17 + $0x24] sm:$0xf]
      %v1906 = vld [vmem:[%s17 + $0x28] sm:$0xf]
      %v1907 = vld [vmem:[%s17 + $0x2c] sm:$0xf]
      %v1908 = vld [vmem:[%s17 + $0x30] sm:$0xf]
      %v1909 = vld [vmem:[%s17 + $0x34] sm:$0xf]
      %v1910 = vld [vmem:[%s17 + $0x38] sm:$0xf]
      %v1911 = vld [vmem:[%s17 + $0x3c] sm:$0xf]
      %v1912 = vpack.c.bf16 %v1895, %v1895
      %v1913 = vld [vmem:[%s18] sm:$0x1]
      %v1915 = vlaneseq
      %v1916 = vshrl.u32 %v1915, 7
      %v1917 = vsub.s32 0, %v1916
      %v1918 = vrot.slane %v1913, %v1917
      %v1936 = vunpack.c.l.b16 %v1896
      %v1937 = vunpack.c.l.b16 %v1897
      %v1938 = vunpack.c.l.b16 %v1898
      %v1939 = vunpack.c.l.b16 %v1899
      %v1940 = vunpack.c.l.b16 %v1900
      %v1941 = vunpack.c.l.b16 %v1901
      %v1942 = vunpack.c.l.b16 %v1902
      %v1943 = vunpack.c.l.b16 %v1903
      %v1944 = vunpack.c.l.b16 %v1904
      %v1945 = vunpack.c.l.b16 %v1905
      %v1946 = vunpack.c.l.b16 %v1906
      %v1947 = vunpack.c.l.b16 %v1907
      %v1948 = vunpack.c.l.b16 %v1908
      %v1949 = vunpack.c.l.b16 %v1909
      %v1950 = vunpack.c.l.b16 %v1910
      %v1951 = vunpack.c.l.b16 %v1911
      %v1952 = vpack.c.b16 %v1937, %v1936
      %v1953 = vpack.c.b16 %v1939, %v1938
      %v1954 = vpack.c.b16 %v1941, %v1940
      %v1955 = vpack.c.b16 %v1943, %v1942
      %v1956 = vpack.c.b16 %v1945, %v1944
      %v1957 = vpack.c.b16 %v1947, %v1946
      %v1958 = vpack.c.b16 %v1949, %v1948
      %v1959 = vpack.c.b16 %v1951, %v1950
      %v1961 = vsel %vm852, %v1912, 0
      %v1964 = vsel %vm852, %v1952, 0
      %v1967 = vsel %vm852, %v1953, 0
      %v1970 = vsel %vm852, %v1954, 0
      %v1973 = vsel %vm852, %v1955, 0
      %v1976 = vsel %vm852, %v1956, 0
      %v1979 = vsel %vm852, %v1957, 0
      %v1982 = vsel %vm852, %v1958, 0
      %v1985 = vsel %vm852, %v1959, 0
      %1987 = vmatprep.subr.bf16.mxu0 0
      %1988 = vmatpush1.bf16.xpose.msra.mxu0 %v1964
      %1989 = vmatprep.subr.bf16.mxu0 0
      %1990 = vmatpush1.bf16.xpose.msra.mxu0 %v1967
      %1991 = vmatprep.subr.bf16.mxu0 0
      %1992 = vmatpush1.bf16.xpose.msra.mxu0 %v1970
      %1993 = vmatprep.subr.bf16.mxu0 0
      %1994 = vmatpush1.bf16.xpose.msra.mxu0 %v1973
      %1995 = vmatprep.subr.bf16.mxu0 0
      %1996 = vmatpush1.bf16.xpose.msra.mxu0 %v1976
      %1997 = vmatprep.subr.bf16.mxu0 0
      %1998 = vmatpush1.bf16.xpose.msra.mxu0 %v1979
      %1999 = vmatprep.subr.bf16.mxu0 0
      %2000 = vmatpush1.bf16.xpose.msra.mxu0 %v1982
      %2001 = vmatprep.subr.bf16.mxu0 0
      %2002 = vmatpush1.bf16.xpose.msra.mxu0 %v1985
      %2003 = vmatprep.subr.bf16.mxu0 0
      %2004 = vmatpush1.bf16.xpose.msra.mxu0 0
      %2005 = vmatprep.subr.bf16.mxu0 0
      %2006 = vmatpush1.bf16.xpose.msra.mxu0 0
      %2007 = vmatprep.subr.bf16.mxu0 0
      %2008 = vmatpush1.bf16.xpose.msra.mxu0 0
      %2009 = vmatprep.subr.bf16.mxu0 0
      %2010 = vmatpush1.bf16.xpose.msra.mxu0 0
      %2011 = vmatprep.subr.bf16.mxu0 0
      %2012 = vmatpush1.bf16.xpose.msra.mxu0 0
      %2013 = vmatprep.subr.bf16.mxu0 0
      %2014 = vmatpush1.bf16.xpose.msra.mxu0 0
      %2015 = vmatprep.subr.bf16.mxu0 0
      %2016 = vmatpush1.bf16.xpose.msra.mxu0 0
      %2017 = vmatprep.subr.bf16.mxu0 0
      %2018 = vmatpush1.bf16.xpose.msra.mxu0 0
      %2019 = vmatprep.mubr.bf16.mxu0 0
      %2020 = vmatmul.mubr.bf16.gmra.mrb[0].mxu0 %v1961
      %v2021 = vpop.f32.mrb[0].mxu0
      %v2022 = vadd.f32 %v1918, %v2021
      %v2023 = vpop.f32.mrb[0].mxu0
      %v2024 = vpop.f32.mrb[0].mxu0
      %v2025 = vpop.f32.mrb[0].mxu0
      %2026 = vdwg.mxu0
      %v2027 = vmax.f32 %v2022, 0.0
      %v2028 = vld [vmem:[%s19] sm:$0xf]
      %v2029 = vld [vmem:[%s19 + $0x4] sm:$0xf]
      %v2030 = vld [vmem:[%s19 + $0x8] sm:$0xf]
      %v2031 = vld [vmem:[%s19 + $0xc] sm:$0xf]
      %v2032 = vpack.c.bf16 %v2027, %v2027
      %v2033 = vld [vmem:[%s20] sm:$0x1]
      %v2035 = vlaneseq
      %v2036 = vshrl.u32 %v2035, 7
      %v2037 = vsub.s32 0, %v2036
      %v2038 = vrot.slane %v2033, %v2037
      %v2044 = vunpack.c.l.b16 %v2028
      %v2045 = vunpack.c.l.b16 %v2029
      %v2046 = vunpack.c.l.b16 %v2030
      %v2047 = vunpack.c.l.b16 %v2031
      %v2048 = vpack.c.b16 %v2045, %v2044
      %v2049 = vpack.c.b16 %v2047, %v2046
      %2052 = vmatprep.subr.bf16.mxu0 0
      %2053 = vmatpush1.bf16.xpose.msra.mxu0 %v2048
      %2054 = vmatprep.subr.bf16.mxu0 0
      %2055 = vmatpush1.bf16.xpose.msra.mxu0 %v2049
      %2056 = vmatprep.subr.bf16.mxu0 0
      %2057 = vmatpush1.bf16.xpose.msra.mxu0 0
      %2058 = vmatprep.subr.bf16.mxu0 0
      %2059 = vmatpush1.bf16.xpose.msra.mxu0 0
      %2060 = vmatprep.subr.bf16.mxu0 0
      %2061 = vmatpush1.bf16.xpose.msra.mxu0 0
      %2062 = vmatprep.subr.bf16.mxu0 0
      %2063 = vmatpush1.bf16.xpose.msra.mxu0 0
      %2064 = vmatprep.subr.bf16.mxu0 0
      %2065 = vmatpush1.bf16.xpose.msra.mxu0 0
      %2066 = vmatprep.subr.bf16.mxu0 0
      %2067 = vmatpush1.bf16.xpose.msra.mxu0 0
      %2068 = vmatprep.subr.bf16.mxu0 0
      %2069 = vmatpush1.bf16.xpose.msra.mxu0 0
      %2070 = vmatprep.subr.bf16.mxu0 0
      %2071 = vmatpush1.bf16.xpose.msra.mxu0 0
      %2072 = vmatprep.subr.bf16.mxu0 0
      %2073 = vmatpush1.bf16.xpose.msra.mxu0 0
      %2074 = vmatprep.subr.bf16.mxu0 0
      %2075 = vmatpush1.bf16.xpose.msra.mxu0 0
      %2076 = vmatprep.subr.bf16.mxu0 0
      %2077 = vmatpush1.bf16.xpose.msra.mxu0 0
      %2078 = vmatprep.subr.bf16.mxu0 0
      %2079 = vmatpush1.bf16.xpose.msra.mxu0 0
      %2080 = vmatprep.subr.bf16.mxu0 0
      %2081 = vmatpush1.bf16.xpose.msra.mxu0 0
      %2082 = vmatprep.subr.bf16.mxu0 0
      %2083 = vmatpush1.bf16.xpose.msra.mxu0 0
      %2084 = vmatprep.mubr.bf16.mxu0 0
      %2085 = vmatmul.mubr.bf16.gmra.mrb[0].mxu0 %v2032
      %v2086 = vpop.f32.mrb[0].mxu0
      %v2087 = vadd.f32 %v2038, %v2086
      %v2088 = vpop.f32.mrb[0].mxu0
      %v2089 = vpop.f32.mrb[0].mxu0
      %v2090 = vpop.f32.mrb[0].mxu0
      %2091 = vdwg.mxu0
      %v2092 = vadd.f32 %v1895, %v2087
      %v2093 = vld [vmem:[%s21] sm:$0x1]
      %v2094 = vld [vmem:[%s22] sm:$0x1]
      %v2095 = vsel %vm852, %v2092, 0.0
      %2096 = vadd.xlane.f32.xlu0 %v2095
      %v2097 = vpop.xlane.xlu0 %2096
      %v2098 = vmul.f32 %v2097, %v856
      %v2099 = vsub.f32 %v2092, %v2098
      %v2100 = vmul.f32 %v2099, %v2099
      %v2101 = vsel %vm852, %v2100, 0.0
      %2102 = vadd.xlane.f32.xlu0 %v2101
      %v2103 = vpop.xlane.xlu0 %2102
      %v2104 = vmul.f32 %v2103, %v856
      %v2105 = vadd.f32 %v2104, 1e-05
      %v2106 = vrsqrt.pop %v2105
      %v2107 = vmul.f32 %v2099, %v2106
      %v2109 = vlaneseq
      %v2110 = vshrl.u32 %v2109, 7
      %v2111 = vsub.s32 0, %v2110
      %v2112 = vrot.slane %v2093, %v2111
      %v2114 = vmul.f32 %v2107, %v2112
      %v2116 = vlaneseq
      %v2117 = vshrl.u32 %v2116, 7
      %v2118 = vsub.s32 0, %v2117
      %v2119 = vrot.slane %v2094, %v2118
      %v2121 = vadd.f32 %v2114, %v2119
      %s2122 = scalar_lea.vmem %s7, 16
      %v2123 = vld [vmem:[%s2122] sm:$0xf]
      %v2124 = vld [vmem:[%s2122 + $0x4] sm:$0xf]
      %v2125 = vld [vmem:[%s2122 + $0x8] sm:$0xf]
      %v2126 = vld [vmem:[%s2122 + $0xc] sm:$0xf]
      %v2127 = vpack.c.bf16 %v2121, %v2121
      %s2128 = scalar_lea.vmem %s8, 1
      %v2129 = vld [vmem:[%s2128] sm:$0x1]
      %v2131 = vlaneseq
      %v2132 = vshrl.u32 %v2131, 7
      %v2133 = vsub.s32 0, %v2132
      %v2134 = vrot.slane %v2129, %v2133
      %v2140 = vunpack.c.l.b16 %v2123
      %v2141 = vunpack.c.l.b16 %v2124
      %v2142 = vunpack.c.l.b16 %v2125
      %v2143 = vunpack.c.l.b16 %v2126
      %v2144 = vpack.c.b16 %v2141, %v2140
      %v2145 = vpack.c.b16 %v2143, %v2142
      %v2147 = vsel %vm852, %v2127, 0
      %v2150 = vsel %vm852, %v2144, 0
      %v2153 = vsel %vm852, %v2145, 0
      %2155 = vmatprep.subr.bf16.mxu0 0
      %2156 = vmatpush1.bf16.xpose.msra.mxu0 %v2150
      %2157 = vmatprep.subr.bf16.mxu0 0
      %2158 = vmatpush1.bf16.xpose.msra.mxu0 %v2153
      %2159 = vmatprep.subr.bf16.mxu0 0
      %2160 = vmatpush1.bf16.xpose.msra.mxu0 0
      %2161 = vmatprep.subr.bf16.mxu0 0
      %2162 = vmatpush1.bf16.xpose.msra.mxu0 0
      %2163 = vmatprep.subr.bf16.mxu0 0
      %2164 = vmatpush1.bf16.xpose.msra.mxu0 0
      %2165 = vmatprep.subr.bf16.mxu0 0
      %2166 = vmatpush1.bf16.xpose.msra.mxu0 0
      %2167 = vmatprep.subr.bf16.mxu0 0
      %2168 = vmatpush1.bf16.xpose.msra.mxu0 0
      %2169 = vmatprep.subr.bf16.mxu0 0
      %2170 = vmatpush1.bf16.xpose.msra.mxu0 0
      %2171 = vmatprep.subr.bf16.mxu0 0
      %2172 = vmatpush1.bf16.xpose.msra.mxu0 0
      %2173 = vmatprep.subr.bf16.mxu0 0
      %2174 = vmatpush1.bf16.xpose.msra.mxu0 0
      %2175 = vmatprep.subr.bf16.mxu0 0
      %2176 = vmatpush1.bf16.xpose.msra.mxu0 0
      %2177 = vmatprep.subr.bf16.mxu0 0
      %2178 = vmatpush1.bf16.xpose.msra.mxu0 0
      %2179 = vmatprep.subr.bf16.mxu0 0
      %2180 = vmatpush1.bf16.xpose.msra.mxu0 0
      %2181 = vmatprep.subr.bf16.mxu0 0
      %2182 = vmatpush1.bf16.xpose.msra.mxu0 0
      %2183 = vmatprep.subr.bf16.mxu0 0
      %2184 = vmatpush1.bf16.xpose.msra.mxu0 0
      %2185 = vmatprep.subr.bf16.mxu0 0
      %2186 = vmatpush1.bf16.xpose.msra.mxu0 0
      %2187 = vmatprep.mubr.bf16.mxu0 0
      %2188 = vmatmul.mubr.bf16.gmra.mrb[0].mxu0 %v2147
      %v2189 = vpop.f32.mrb[0].mxu0
      %v2190 = vadd.f32 %v2134, %v2189
      %v2191 = vpop.f32.mrb[0].mxu0
      %v2192 = vpop.f32.mrb[0].mxu0
      %v2193 = vpop.f32.mrb[0].mxu0
      %2194 = vdwg.mxu0
      %2196 = vrot.lane.b32.xlu0 %v2190, 112
      %v2197 = vpop.permute.xlu0 %2196
      %v2199 = vcombine.high %v2190, 0.0
      %v2201 = vunpack.c.l.s4 1983009808
      %v2202 = vunpack.c.0.s8 %v2201
      %v2203 = vlaneseq
      %v2204 = vshrl.u32 %v2203, 7
      %v2205 = vsub.s32 %v2202, %v2204
      %v2206 = vrot.slane %v2190, %v2205
      %v2208 = vunpack.c.l.s4 1983009808
      %v2209 = vunpack.c.0.s8 %v2208
      %v2210 = vlaneseq
      %v2211 = vshrl.u32 %v2210, 7
      %v2212 = vsub.s32 %v2209, %v2211
      %v2213 = vrot.slane %v2199, %v2212
      %v2214 = vcombine.high %v2197, 0.0
      %v2216 = vunpack.c.l.s4 1983009808
      %v2217 = vunpack.c.0.s8 %v2216
      %v2218 = vlaneseq
      %v2219 = vshrl.u32 %v2218, 7
      %v2220 = vsub.s32 %v2217, %v2219
      %v2221 = vrot.slane %v2197, %v2220
      %v2223 = vunpack.c.l.s4 1983009808
      %v2224 = vunpack.c.0.s8 %v2223
      %v2225 = vlaneseq
      %v2226 = vshrl.u32 %v2225, 7
      %v2227 = vsub.s32 %v2224, %v2226
      %v2228 = vrot.slane %v2214, %v2227
      %v2229 = vcombine.low %v2206, %v2221
      %v2230 = vcombine.high %v2206, %v2221
      %v2232 = vunpack.c.l.s4 1934713408
      %v2233 = vunpack.c.0.s8 %v2232
      %v2234 = vlaneseq
      %v2235 = vshrl.u32 %v2234, 7
      %v2236 = vsub.s32 %v2233, %v2235
      %v2237 = vrot.slane %v2229, %v2236
      %v2239 = vunpack.c.l.s4 1934713408
      %v2240 = vunpack.c.0.s8 %v2239
      %v2241 = vlaneseq
      %v2242 = vshrl.u32 %v2241, 7
      %v2243 = vsub.s32 %v2240, %v2242
      %v2244 = vrot.slane %v2230, %v2243
      %v2245 = vcombine.low %v2213, %v2228
      %v2246 = vcombine.high %v2213, %v2228
      %v2248 = vunpack.c.l.s4 1934713408
      %v2249 = vunpack.c.0.s8 %v2248
      %v2250 = vlaneseq
      %v2251 = vshrl.u32 %v2250, 7
      %v2252 = vsub.s32 %v2249, %v2251
      %v2253 = vrot.slane %v2245, %v2252
      %v2255 = vunpack.c.l.s4 1934713408
      %v2256 = vunpack.c.0.s8 %v2255
      %v2257 = vlaneseq
      %v2258 = vshrl.u32 %v2257, 7
      %v2259 = vsub.s32 %v2256, %v2258
      %v2260 = vrot.slane %v2246, %v2259
      %v2261 = vcombine.high %v2237, 0.0
      %v2262 = vcombine.high %v2244, 0.0
      %v2263 = vcombine.high %v2253, 0.0
      %v2264 = vcombine.high %v2260, 0.0
      %v2265 = vcombine.low %v2237, %v2244
      %v2267 = vunpack.c.l.s4 1983009808
      %v2268 = vunpack.c.0.s8 %v2267
      %v2269 = vlaneseq
      %v2270 = vshrl.u32 %v2269, 7
      %v2271 = vsub.s32 %v2268, %v2270
      %v2272 = vrot.slane %v2265, %v2271
      %v2273 = vcombine.low %v2261, %v2262
      %v2275 = vunpack.c.l.s4 1983009808
      %v2276 = vunpack.c.0.s8 %v2275
      %v2277 = vlaneseq
      %v2278 = vshrl.u32 %v2277, 7
      %v2279 = vsub.s32 %v2276, %v2278
      %v2280 = vrot.slane %v2273, %v2279
      %v2281 = vcombine.low %v2253, %v2260
      %v2283 = vunpack.c.l.s4 1983009808
      %v2284 = vunpack.c.0.s8 %v2283
      %v2285 = vlaneseq
      %v2286 = vshrl.u32 %v2285, 7
      %v2287 = vsub.s32 %v2284, %v2286
      %v2288 = vrot.slane %v2281, %v2287
      %v2289 = vcombine.low %v2263, %v2264
      %v2291 = vunpack.c.l.s4 1983009808
      %v2292 = vunpack.c.0.s8 %v2291
      %v2293 = vlaneseq
      %v2294 = vshrl.u32 %v2293, 7
      %v2295 = vsub.s32 %v2292, %v2294
      %v2296 = vrot.slane %v2289, %v2295
      %v2297 = vcombine.low %v2272, %v2280
      %v2299 = vunpack.c.l.s4 1934713408
      %v2300 = vunpack.c.0.s8 %v2299
      %v2301 = vlaneseq
      %v2302 = vshrl.u32 %v2301, 7
      %v2303 = vsub.s32 %v2300, %v2302
      %v2304 = vrot.slane %v2297, %v2303
      %v2305 = vcombine.low %v2288, %v2296
      %v2307 = vunpack.c.l.s4 1934713408
      %v2308 = vunpack.c.0.s8 %v2307
      %v2309 = vlaneseq
      %v2310 = vshrl.u32 %v2309, 7
      %v2311 = vsub.s32 %v2308, %v2310
      %v2312 = vrot.slane %v2305, %v2311
      %v2313 = vcombine.low %v2304, %v2312
      %v2314 = vcombine.high %v2304, %v2312
      %s2315 = scalar_lea.vmem %s9, 16
      %v2316 = vld [vmem:[%s2315] sm:$0xf]
      %v2317 = vld [vmem:[%s2315 + $0x4] sm:$0xf]
      %v2318 = vld [vmem:[%s2315 + $0x8] sm:$0xf]
      %v2319 = vld [vmem:[%s2315 + $0xc] sm:$0xf]
      %s2320 = scalar_lea.vmem %s10, 1
      %v2321 = vld [vmem:[%s2320] sm:$0x1]
      %v2323 = vlaneseq
      %v2324 = vshrl.u32 %v2323, 7
      %v2325 = vsub.s32 0, %v2324
      %v2326 = vrot.slane %v2321, %v2325
      %v2332 = vunpack.c.l.b16 %v2316
      %v2333 = vunpack.c.l.b16 %v2317
      %v2334 = vunpack.c.l.b16 %v2318
      %v2335 = vunpack.c.l.b16 %v2319
      %v2336 = vpack.c.b16 %v2333, %v2332
      %v2337 = vpack.c.b16 %v2335, %v2334
      %v2339 = vsel %vm852, %v2336, 0
      %v2342 = vsel %vm852, %v2337, 0
      %2344 = vmatprep.subr.bf16.mxu0 0
      %2345 = vmatpush1.bf16.xpose.msra.mxu0 %v2339
      %2346 = vmatprep.subr.bf16.mxu0 0
      %2347 = vmatpush1.bf16.xpose.msra.mxu0 %v2342
      %2348 = vmatprep.subr.bf16.mxu0 0
      %2349 = vmatpush1.bf16.xpose.msra.mxu0 0
      %2350 = vmatprep.subr.bf16.mxu0 0
      %2351 = vmatpush1.bf16.xpose.msra.mxu0 0
      %2352 = vmatprep.subr.bf16.mxu0 0
      %2353 = vmatpush1.bf16.xpose.msra.mxu0 0
      %2354 = vmatprep.subr.bf16.mxu0 0
      %2355 = vmatpush1.bf16.xpose.msra.mxu0 0
      %2356 = vmatprep.subr.bf16.mxu0 0
      %2357 = vmatpush1.bf16.xpose.msra.mxu0 0
      %2358 = vmatprep.subr.bf16.mxu0 0
      %2359 = vmatpush1.bf16.xpose.msra.mxu0 0
      %2360 = vmatprep.subr.bf16.mxu0 0
      %2361 = vmatpush1.bf16.xpose.msra.mxu0 0
      %2362 = vmatprep.subr.bf16.mxu0 0
      %2363 = vmatpush1.bf16.xpose.msra.mxu0 0
      %2364 = vmatprep.subr.bf16.mxu0 0
      %2365 = vmatpush1.bf16.xpose.msra.mxu0 0
      %2366 = vmatprep.subr.bf16.mxu0 0
      %2367 = vmatpush1.bf16.xpose.msra.mxu0 0
      %2368 = vmatprep.subr.bf16.mxu0 0
      %2369 = vmatpush1.bf16.xpose.msra.mxu0 0
      %2370 = vmatprep.subr.bf16.mxu0 0
      %2371 = vmatpush1.bf16.xpose.msra.mxu0 0
      %2372 = vmatprep.subr.bf16.mxu0 0
      %2373 = vmatpush1.bf16.xpose.msra.mxu0 0
      %2374 = vmatprep.subr.bf16.mxu0 0
      %2375 = vmatpush1.bf16.xpose.msra.mxu0 0
      %2376 = vmatprep.mubr.bf16.mxu0 0
      %2377 = vmatmul.mubr.bf16.gmra.mrb[0].mxu0 %v2147
      %v2378 = vpop.f32.mrb[0].mxu0
      %v2379 = vadd.f32 %v2326, %v2378
      %v2380 = vpop.f32.mrb[0].mxu0
      %v2381 = vpop.f32.mrb[0].mxu0
      %v2382 = vpop.f32.mrb[0].mxu0
      %2383 = vdwg.mxu0
      %2385 = vrot.lane.b32.xlu0 %v2379, 112
      %v2386 = vpop.permute.xlu0 %2385
      %v2388 = vcombine.high %v2379, 0.0
      %v2390 = vunpack.c.l.s4 1983009808
      %v2391 = vunpack.c.0.s8 %v2390
      %v2392 = vlaneseq
      %v2393 = vshrl.u32 %v2392, 7
      %v2394 = vsub.s32 %v2391, %v2393
      %v2395 = vrot.slane %v2379, %v2394
      %v2397 = vunpack.c.l.s4 1983009808
      %v2398 = vunpack.c.0.s8 %v2397
      %v2399 = vlaneseq
      %v2400 = vshrl.u32 %v2399, 7
      %v2401 = vsub.s32 %v2398, %v2400
      %v2402 = vrot.slane %v2388, %v2401
      %v2403 = vcombine.high %v2386, 0.0
      %v2405 = vunpack.c.l.s4 1983009808
      %v2406 = vunpack.c.0.s8 %v2405
      %v2407 = vlaneseq
      %v2408 = vshrl.u32 %v2407, 7
      %v2409 = vsub.s32 %v2406, %v2408
      %v2410 = vrot.slane %v2386, %v2409
      %v2412 = vunpack.c.l.s4 1983009808
      %v2413 = vunpack.c.0.s8 %v2412
      %v2414 = vlaneseq
      %v2415 = vshrl.u32 %v2414, 7
      %v2416 = vsub.s32 %v2413, %v2415
      %v2417 = vrot.slane %v2403, %v2416
      %v2418 = vcombine.low %v2395, %v2410
      %v2419 = vcombine.high %v2395, %v2410
      %v2421 = vunpack.c.l.s4 1934713408
      %v2422 = vunpack.c.0.s8 %v2421
      %v2423 = vlaneseq
      %v2424 = vshrl.u32 %v2423, 7
      %v2425 = vsub.s32 %v2422, %v2424
      %v2426 = vrot.slane %v2418, %v2425
      %v2428 = vunpack.c.l.s4 1934713408
      %v2429 = vunpack.c.0.s8 %v2428
      %v2430 = vlaneseq
      %v2431 = vshrl.u32 %v2430, 7
      %v2432 = vsub.s32 %v2429, %v2431
      %v2433 = vrot.slane %v2419, %v2432
      %v2434 = vcombine.low %v2402, %v2417
      %v2435 = vcombine.high %v2402, %v2417
      %v2437 = vunpack.c.l.s4 1934713408
      %v2438 = vunpack.c.0.s8 %v2437
      %v2439 = vlaneseq
      %v2440 = vshrl.u32 %v2439, 7
      %v2441 = vsub.s32 %v2438, %v2440
      %v2442 = vrot.slane %v2434, %v2441
      %v2444 = vunpack.c.l.s4 1934713408
      %v2445 = vunpack.c.0.s8 %v2444
      %v2446 = vlaneseq
      %v2447 = vshrl.u32 %v2446, 7
      %v2448 = vsub.s32 %v2445, %v2447
      %v2449 = vrot.slane %v2435, %v2448
      %v2450 = vcombine.high %v2426, 0.0
      %v2451 = vcombine.high %v2433, 0.0
      %v2452 = vcombine.high %v2442, 0.0
      %v2453 = vcombine.high %v2449, 0.0
      %v2454 = vcombine.low %v2426, %v2433
      %v2456 = vunpack.c.l.s4 1983009808
      %v2457 = vunpack.c.0.s8 %v2456
      %v2458 = vlaneseq
      %v2459 = vshrl.u32 %v2458, 7
      %v2460 = vsub.s32 %v2457, %v2459
      %v2461 = vrot.slane %v2454, %v2460
      %v2462 = vcombine.low %v2450, %v2451
      %v2464 = vunpack.c.l.s4 1983009808
      %v2465 = vunpack.c.0.s8 %v2464
      %v2466 = vlaneseq
      %v2467 = vshrl.u32 %v2466, 7
      %v2468 = vsub.s32 %v2465, %v2467
      %v2469 = vrot.slane %v2462, %v2468
      %v2470 = vcombine.low %v2442, %v2449
      %v2472 = vunpack.c.l.s4 1983009808
      %v2473 = vunpack.c.0.s8 %v2472
      %v2474 = vlaneseq
      %v2475 = vshrl.u32 %v2474, 7
      %v2476 = vsub.s32 %v2473, %v2475
      %v2477 = vrot.slane %v2470, %v2476
      %v2478 = vcombine.low %v2452, %v2453
      %v2480 = vunpack.c.l.s4 1983009808
      %v2481 = vunpack.c.0.s8 %v2480
      %v2482 = vlaneseq
      %v2483 = vshrl.u32 %v2482, 7
      %v2484 = vsub.s32 %v2481, %v2483
      %v2485 = vrot.slane %v2478, %v2484
      %v2486 = vcombine.low %v2461, %v2469
      %v2488 = vunpack.c.l.s4 1934713408
      %v2489 = vunpack.c.0.s8 %v2488
      %v2490 = vlaneseq
      %v2491 = vshrl.u32 %v2490, 7
      %v2492 = vsub.s32 %v2489, %v2491
      %v2493 = vrot.slane %v2486, %v2492
      %v2494 = vcombine.low %v2477, %v2485
      %v2496 = vunpack.c.l.s4 1934713408
      %v2497 = vunpack.c.0.s8 %v2496
      %v2498 = vlaneseq
      %v2499 = vshrl.u32 %v2498, 7
      %v2500 = vsub.s32 %v2497, %v2499
      %v2501 = vrot.slane %v2494, %v2500
      %v2502 = vcombine.low %v2493, %v2501
      %v2503 = vcombine.high %v2493, %v2501
      %s2504 = scalar_lea.vmem %s11, 16
      %v2505 = vld [vmem:[%s2504] sm:$0xf]
      %v2506 = vld [vmem:[%s2504 + $0x4] sm:$0xf]
      %v2507 = vld [vmem:[%s2504 + $0x8] sm:$0xf]
      %v2508 = vld [vmem:[%s2504 + $0xc] sm:$0xf]
      %s2509 = scalar_lea.vmem %s12, 1
      %v2510 = vld [vmem:[%s2509] sm:$0x1]
      %v2512 = vlaneseq
      %v2513 = vshrl.u32 %v2512, 7
      %v2514 = vsub.s32 0, %v2513
      %v2515 = vrot.slane %v2510, %v2514
      %v2521 = vunpack.c.l.b16 %v2505
      %v2522 = vunpack.c.l.b16 %v2506
      %v2523 = vunpack.c.l.b16 %v2507
      %v2524 = vunpack.c.l.b16 %v2508
      %v2525 = vpack.c.b16 %v2522, %v2521
      %v2526 = vpack.c.b16 %v2524, %v2523
      %v2528 = vsel %vm852, %v2525, 0
      %v2531 = vsel %vm852, %v2526, 0
      %2533 = vmatprep.subr.bf16.mxu0 0
      %2534 = vmatpush1.bf16.xpose.msra.mxu0 %v2528
      %2535 = vmatprep.subr.bf16.mxu0 0
      %2536 = vmatpush1.bf16.xpose.msra.mxu0 %v2531
      %2537 = vmatprep.subr.bf16.mxu0 0
      %2538 = vmatpush1.bf16.xpose.msra.mxu0 0
      %2539 = vmatprep.subr.bf16.mxu0 0
      %2540 = vmatpush1.bf16.xpose.msra.mxu0 0
      %2541 = vmatprep.subr.bf16.mxu0 0
      %2542 = vmatpush1.bf16.xpose.msra.mxu0 0
      %2543 = vmatprep.subr.bf16.mxu0 0
      %2544 = vmatpush1.bf16.xpose.msra.mxu0 0
      %2545 = vmatprep.subr.bf16.mxu0 0
      %2546 = vmatpush1.bf16.xpose.msra.mxu0 0
      %2547 = vmatprep.subr.bf16.mxu0 0
      %2548 = vmatpush1.bf16.xpose.msra.mxu0 0
      %2549 = vmatprep.subr.bf16.mxu0 0
      %2550 = vmatpush1.bf16.xpose.msra.mxu0 0
      %2551 = vmatprep.subr.bf16.mxu0 0
      %2552 = vmatpush1.bf16.xpose.msra.mxu0 0
      %2553 = vmatprep.subr.bf16.mxu0 0
      %2554 = vmatpush1.bf16.xpose.msra.mxu0 0
      %2555 = vmatprep.subr.bf16.mxu0 0
      %2556 = vmatpush1.bf16.xpose.msra.mxu0 0
      %2557 = vmatprep.subr.bf16.mxu0 0
      %2558 = vmatpush1.bf16.xpose.msra.mxu0 0
      %2559 = vmatprep.subr.bf16.mxu0 0
      %2560 = vmatpush1.bf16.xpose.msra.mxu0 0
      %2561 = vmatprep.subr.bf16.mxu0 0
      %2562 = vmatpush1.bf16.xpose.msra.mxu0 0
      %2563 = vmatprep.subr.bf16.mxu0 0
      %2564 = vmatpush1.bf16.xpose.msra.mxu0 0
      %2565 = vmatprep.mubr.bf16.mxu0 0
      %2566 = vmatmul.mubr.bf16.gmra.mrb[0].mxu0 %v2147
      %v2567 = vpop.f32.mrb[0].mxu0
      %v2568 = vadd.f32 %v2515, %v2567
      %v2569 = vpop.f32.mrb[0].mxu0
      %v2570 = vpop.f32.mrb[0].mxu0
      %v2571 = vpop.f32.mrb[0].mxu0
      %2572 = vdwg.mxu0
      %2574 = vrot.lane.b32.xlu0 %v2568, 112
      %v2575 = vpop.permute.xlu0 %2574
      %v2577 = vcombine.high %v2568, 0.0
      %v2579 = vunpack.c.l.s4 1983009808
      %v2580 = vunpack.c.0.s8 %v2579
      %v2581 = vlaneseq
      %v2582 = vshrl.u32 %v2581, 7
      %v2583 = vsub.s32 %v2580, %v2582
      %v2584 = vrot.slane %v2568, %v2583
      %v2586 = vunpack.c.l.s4 1983009808
      %v2587 = vunpack.c.0.s8 %v2586
      %v2588 = vlaneseq
      %v2589 = vshrl.u32 %v2588, 7
      %v2590 = vsub.s32 %v2587, %v2589
      %v2591 = vrot.slane %v2577, %v2590
      %v2592 = vcombine.high %v2575, 0.0
      %v2594 = vunpack.c.l.s4 1983009808
      %v2595 = vunpack.c.0.s8 %v2594
      %v2596 = vlaneseq
      %v2597 = vshrl.u32 %v2596, 7
      %v2598 = vsub.s32 %v2595, %v2597
      %v2599 = vrot.slane %v2575, %v2598
      %v2601 = vunpack.c.l.s4 1983009808
      %v2602 = vunpack.c.0.s8 %v2601
      %v2603 = vlaneseq
      %v2604 = vshrl.u32 %v2603, 7
      %v2605 = vsub.s32 %v2602, %v2604
      %v2606 = vrot.slane %v2592, %v2605
      %v2607 = vcombine.low %v2584, %v2599
      %v2608 = vcombine.high %v2584, %v2599
      %v2610 = vunpack.c.l.s4 1934713408
      %v2611 = vunpack.c.0.s8 %v2610
      %v2612 = vlaneseq
      %v2613 = vshrl.u32 %v2612, 7
      %v2614 = vsub.s32 %v2611, %v2613
      %v2615 = vrot.slane %v2607, %v2614
      %v2617 = vunpack.c.l.s4 1934713408
      %v2618 = vunpack.c.0.s8 %v2617
      %v2619 = vlaneseq
      %v2620 = vshrl.u32 %v2619, 7
      %v2621 = vsub.s32 %v2618, %v2620
      %v2622 = vrot.slane %v2608, %v2621
      %v2623 = vcombine.low %v2591, %v2606
      %v2624 = vcombine.high %v2591, %v2606
      %v2626 = vunpack.c.l.s4 1934713408
      %v2627 = vunpack.c.0.s8 %v2626
      %v2628 = vlaneseq
      %v2629 = vshrl.u32 %v2628, 7
      %v2630 = vsub.s32 %v2627, %v2629
      %v2631 = vrot.slane %v2623, %v2630
      %v2633 = vunpack.c.l.s4 1934713408
      %v2634 = vunpack.c.0.s8 %v2633
      %v2635 = vlaneseq
      %v2636 = vshrl.u32 %v2635, 7
      %v2637 = vsub.s32 %v2634, %v2636
      %v2638 = vrot.slane %v2624, %v2637
      %v2639 = vcombine.high %v2615, 0.0
      %v2640 = vcombine.high %v2622, 0.0
      %v2641 = vcombine.high %v2631, 0.0
      %v2642 = vcombine.high %v2638, 0.0
      %v2643 = vcombine.low %v2615, %v2622
      %v2645 = vunpack.c.l.s4 1983009808
      %v2646 = vunpack.c.0.s8 %v2645
      %v2647 = vlaneseq
      %v2648 = vshrl.u32 %v2647, 7
      %v2649 = vsub.s32 %v2646, %v2648
      %v2650 = vrot.slane %v2643, %v2649
      %v2651 = vcombine.low %v2639, %v2640
      %v2653 = vunpack.c.l.s4 1983009808
      %v2654 = vunpack.c.0.s8 %v2653
      %v2655 = vlaneseq
      %v2656 = vshrl.u32 %v2655, 7
      %v2657 = vsub.s32 %v2654, %v2656
      %v2658 = vrot.slane %v2651, %v2657
      %v2659 = vcombine.low %v2631, %v2638
      %v2661 = vunpack.c.l.s4 1983009808
      %v2662 = vunpack.c.0.s8 %v2661
      %v2663 = vlaneseq
      %v2664 = vshrl.u32 %v2663, 7
      %v2665 = vsub.s32 %v2662, %v2664
      %v2666 = vrot.slane %v2659, %v2665
      %v2667 = vcombine.low %v2641, %v2642
      %v2669 = vunpack.c.l.s4 1983009808
      %v2670 = vunpack.c.0.s8 %v2669
      %v2671 = vlaneseq
      %v2672 = vshrl.u32 %v2671, 7
      %v2673 = vsub.s32 %v2670, %v2672
      %v2674 = vrot.slane %v2667, %v2673
      %v2675 = vcombine.low %v2650, %v2658
      %v2677 = vunpack.c.l.s4 1934713408
      %v2678 = vunpack.c.0.s8 %v2677
      %v2679 = vlaneseq
      %v2680 = vshrl.u32 %v2679, 7
      %v2681 = vsub.s32 %v2678, %v2680
      %v2682 = vrot.slane %v2675, %v2681
      %v2683 = vcombine.low %v2666, %v2674
      %v2685 = vunpack.c.l.s4 1934713408
      %v2686 = vunpack.c.0.s8 %v2685
      %v2687 = vlaneseq
      %v2688 = vshrl.u32 %v2687, 7
      %v2689 = vsub.s32 %v2686, %v2688
      %v2690 = vrot.slane %v2683, %v2689
      %v2691 = vcombine.low %v2682, %v2690
      %v2692 = vcombine.high %v2682, %v2690
      %v2693 = vpack.c.bf16 %v2313, %v2313
      %v2694 = vpack.c.bf16 %v2314, %v2314
      %v2695 = vpack.c.bf16 %v2502, %v2502
      %v2696 = vpack.c.bf16 %v2503, %v2503
      %v2698 = vsel %vm1451, %v2693, 0
      %v2701 = vsel %vm1451, %v2695, 0
      %2703 = vmatprep.subr.bf16.mxu0 0
      %2704 = vmatpush1.bf16.xpose.msra.mxu0 %v2701
      %2705 = vmatprep.subr.bf16.mxu0 0
      %2706 = vmatpush1.bf16.xpose.msra.mxu0 0
      %2707 = vmatprep.subr.bf16.mxu0 0
      %2708 = vmatpush1.bf16.xpose.msra.mxu0 0
      %2709 = vmatprep.subr.bf16.mxu0 0
      %2710 = vmatpush1.bf16.xpose.msra.mxu0 0
      %2711 = vmatprep.subr.bf16.mxu0 0
      %2712 = vmatpush1.bf16.xpose.msra.mxu0 0
      %2713 = vmatprep.subr.bf16.mxu0 0
      %2714 = vmatpush1.bf16.xpose.msra.mxu0 0
      %2715 = vmatprep.subr.bf16.mxu0 0
      %2716 = vmatpush1.bf16.xpose.msra.mxu0 0
      %2717 = vmatprep.subr.bf16.mxu0 0
      %2718 = vmatpush1.bf16.xpose.msra.mxu0 0
      %2719 = vmatprep.subr.bf16.mxu0 0
      %2720 = vmatpush1.bf16.xpose.msra.mxu0 0
      %2721 = vmatprep.subr.bf16.mxu0 0
      %2722 = vmatpush1.bf16.xpose.msra.mxu0 0
      %2723 = vmatprep.subr.bf16.mxu0 0
      %2724 = vmatpush1.bf16.xpose.msra.mxu0 0
      %2725 = vmatprep.subr.bf16.mxu0 0
      %2726 = vmatpush1.bf16.xpose.msra.mxu0 0
      %2727 = vmatprep.subr.bf16.mxu0 0
      %2728 = vmatpush1.bf16.xpose.msra.mxu0 0
      %2729 = vmatprep.subr.bf16.mxu0 0
      %2730 = vmatpush1.bf16.xpose.msra.mxu0 0
      %2731 = vmatprep.subr.bf16.mxu0 0
      %2732 = vmatpush1.bf16.xpose.msra.mxu0 0
      %2733 = vmatprep.subr.bf16.mxu0 0
      %2734 = vmatpush1.bf16.xpose.msra.mxu0 0
      %2735 = vmatprep.mubr.bf16.mxu0 0
      %2736 = vmatmul.mubr.bf16.gmra.mrb[0].mxu0 %v2698
      %v2737 = vpop.f32.mrb[0].mxu0
      %v2738 = vadd.f32 0.0, %v2737
      %v2739 = vpop.f32.mrb[0].mxu0
      %v2740 = vpop.f32.mrb[0].mxu0
      %v2741 = vpop.f32.mrb[0].mxu0
      %2742 = vdwg.mxu0
      %v2744 = vsel %vm1451, %v2694, 0
      %v2747 = vsel %vm1451, %v2696, 0
      %2749 = vmatprep.subr.bf16.mxu0 0
      %2750 = vmatpush1.bf16.xpose.msra.mxu0 %v2747
      %2751 = vmatprep.subr.bf16.mxu0 0
      %2752 = vmatpush1.bf16.xpose.msra.mxu0 0
      %2753 = vmatprep.subr.bf16.mxu0 0
      %2754 = vmatpush1.bf16.xpose.msra.mxu0 0
      %2755 = vmatprep.subr.bf16.mxu0 0
      %2756 = vmatpush1.bf16.xpose.msra.mxu0 0
      %2757 = vmatprep.subr.bf16.mxu0 0
      %2758 = vmatpush1.bf16.xpose.msra.mxu0 0
      %2759 = vmatprep.subr.bf16.mxu0 0
      %2760 = vmatpush1.bf16.xpose.msra.mxu0 0
      %2761 = vmatprep.subr.bf16.mxu0 0
      %2762 = vmatpush1.bf16.xpose.msra.mxu0 0
      %2763 = vmatprep.subr.bf16.mxu0 0
      %2764 = vmatpush1.bf16.xpose.msra.mxu0 0
      %2765 = vmatprep.subr.bf16.mxu0 0
      %2766 = vmatpush1.bf16.xpose.msra.mxu0 0
      %2767 = vmatprep.subr.bf16.mxu0 0
      %2768 = vmatpush1.bf16.xpose.msra.mxu0 0
      %2769 = vmatprep.subr.bf16.mxu0 0
      %2770 = vmatpush1.bf16.xpose.msra.mxu0 0
      %2771 = vmatprep.subr.bf16.mxu0 0
      %2772 = vmatpush1.bf16.xpose.msra.mxu0 0
      %2773 = vmatprep.subr.bf16.mxu0 0
      %2774 = vmatpush1.bf16.xpose.msra.mxu0 0
      %2775 = vmatprep.subr.bf16.mxu0 0
      %2776 = vmatpush1.bf16.xpose.msra.mxu0 0
      %2777 = vmatprep.subr.bf16.mxu0 0
      %2778 = vmatpush1.bf16.xpose.msra.mxu0 0
      %2779 = vmatprep.subr.bf16.mxu0 0
      %2780 = vmatpush1.bf16.xpose.msra.mxu0 0
      %2781 = vmatprep.mubr.bf16.mxu0 0
      %2782 = vmatmul.mubr.bf16.gmra.mrb[0].mxu0 %v2744
      %v2783 = vpop.f32.mrb[0].mxu0
      %v2784 = vadd.f32 0.0, %v2783
      %v2785 = vpop.f32.mrb[0].mxu0
      %v2786 = vpop.f32.mrb[0].mxu0
      %v2787 = vpop.f32.mrb[0].mxu0
      %2788 = vdwg.mxu0
      %v2789 = vmul.f32 %v2738, 0.25
      %v2790 = vmul.f32 %v2784, 0.25
      %v2791 = vadd.f32 %v2789, %v1550
      %v2792 = vadd.f32 %v2790, %v1550
      %v2793 = vsel %vm1554, %v2791, -inf
      %2794 = vmax.xlane.f32.xlu0 %v2793
      %v2795 = vpop.xlane.xlu0 %2794
      %v2796 = vsel %vm1554, %v2792, -inf
      %2797 = vmax.xlane.f32.xlu0 %v2796
      %v2798 = vpop.xlane.xlu0 %2797
      %v2799 = vsub.f32 %v2791, %v2795
      %v2800 = vsub.f32 %v2792, %v2798
      %v2801 = vmul.f32 %v2799, 1.442695
      %v2802 = vpow.pop %v2801
      %v2803 = vmul.f32 %v2800, 1.442695
      %v2804 = vpow.pop %v2803
      %v2805 = vsel %vm1554, %v2802, 0.0
      %2806 = vadd.xlane.f32.xlu0 %v2805
      %v2807 = vpop.xlane.xlu0 %2806
      %v2808 = vsel %vm1554, %v2804, 0.0
      %2809 = vadd.xlane.f32.xlu0 %v2808
      %v2810 = vpop.xlane.xlu0 %2809
      %v2811 = vrcp.pop %v2807
      %v2812 = vrcp.pop %v2810
      %v2813 = vmul.f32 %v2802, %v2811
      %v2814 = vmul.f32 %v2804, %v2812
      %v2815 = vpack.c.bf16 %v2813, %v2813
      %v2816 = vpack.c.bf16 %v2814, %v2814
      %v2817 = vpack.c.bf16 %v2691, %v2691
      %v2818 = vpack.c.bf16 %v2692, %v2692
      %v2820 = vsel %vm1554, %v2815, 0
      %v2823 = vsel %vm1584, %v2817, 0
      %2825 = vmatprep.subr.bf16.mxu0 0
      %2826 = vmatpush1.bf16.msra.mxu0 %v2823
      %2827 = vmatprep.subr.bf16.mxu0 0
      %2828 = vmatpush1.bf16.msra.mxu0 0
      %2829 = vmatprep.subr.bf16.mxu0 0
      %2830 = vmatpush1.bf16.msra.mxu0 0
      %2831 = vmatprep.subr.bf16.mxu0 0
      %2832 = vmatpush1.bf16.msra.mxu0 0
      %2833 = vmatprep.subr.bf16.mxu0 0
      %2834 = vmatpush1.bf16.msra.mxu0 0
      %2835 = vmatprep.subr.bf16.mxu0 0
      %2836 = vmatpush1.bf16.msra.mxu0 0
      %2837 = vmatprep.subr.bf16.mxu0 0
      %2838 = vmatpush1.bf16.msra.mxu0 0
      %2839 = vmatprep.subr.bf16.mxu0 0
      %2840 = vmatpush1.bf16.msra.mxu0 0
      %2841 = vmatprep.subr.bf16.mxu0 0
      %2842 = vmatpush1.bf16.msra.mxu0 0
      %2843 = vmatprep.subr.bf16.mxu0 0
      %2844 = vmatpush1.bf16.msra.mxu0 0
      %2845 = vmatprep.subr.bf16.mxu0 0
      %2846 = vmatpush1.bf16.msra.mxu0 0
      %2847 = vmatprep.subr.bf16.mxu0 0
      %2848 = vmatpush1.bf16.msra.mxu0 0
      %2849 = vmatprep.subr.bf16.mxu0 0
      %2850 = vmatpush1.bf16.msra.mxu0 0
      %2851 = vmatprep.subr.bf16.mxu0 0
      %2852 = vmatpush1.bf16.msra.mxu0 0
      %2853 = vmatprep.subr.bf16.mxu0 0
      %2854 = vmatpush1.bf16.msra.mxu0 0
      %2855 = vmatprep.subr.bf16.mxu0 0
      %2856 = vmatpush1.bf16.msra.mxu0 0
      %2857 = vmatprep.mubr.bf16.mxu0 0
      %2858 = vmatmul.mubr.bf16.gmra.mrb[0].mxu0 %v2820
      %v2859 = vpop.f32.mrb[0].mxu0
      %v2860 = vadd.f32 0.0, %v2859
      %v2861 = vpop.f32.mrb[0].mxu0
      %v2862 = vpop.f32.mrb[0].mxu0
      %v2863 = vpop.f32.mrb[0].mxu0
      %2864 = vdwg.mxu0
      %v2866 = vsel %vm1554, %v2816, 0
      %v2869 = vsel %vm1584, %v2818, 0
      %2871 = vmatprep.subr.bf16.mxu0 0
      %2872 = vmatpush1.bf16.msra.mxu0 %v2869
      %2873 = vmatprep.subr.bf16.mxu0 0
      %2874 = vmatpush1.bf16.msra.mxu0 0
      %2875 = vmatprep.subr.bf16.mxu0 0
      %2876 = vmatpush1.bf16.msra.mxu0 0
      %2877 = vmatprep.subr.bf16.mxu0 0
      %2878 = vmatpush1.bf16.msra.mxu0 0
      %2879 = vmatprep.subr.bf16.mxu0 0
      %2880 = vmatpush1.bf16.msra.mxu0 0
      %2881 = vmatprep.subr.bf16.mxu0 0
      %2882 = vmatpush1.bf16.msra.mxu0 0
      %2883 = vmatprep.subr.bf16.mxu0 0
      %2884 = vmatpush1.bf16.msra.mxu0 0
      %2885 = vmatprep.subr.bf16.mxu0 0
      %2886 = vmatpush1.bf16.msra.mxu0 0
      %2887 = vmatprep.subr.bf16.mxu0 0
      %2888 = vmatpush1.bf16.msra.mxu0 0
      %2889 = vmatprep.subr.bf16.mxu0 0
      %2890 = vmatpush1.bf16.msra.mxu0 0
      %2891 = vmatprep.subr.bf16.mxu0 0
      %2892 = vmatpush1.bf16.msra.mxu0 0
      %2893 = vmatprep.subr.bf16.mxu0 0
      %2894 = vmatpush1.bf16.msra.mxu0 0
      %2895 = vmatprep.subr.bf16.mxu0 0
      %2896 = vmatpush1.bf16.msra.mxu0 0
      %2897 = vmatprep.subr.bf16.mxu0 0
      %2898 = vmatpush1.bf16.msra.mxu0 0
      %2899 = vmatprep.subr.bf16.mxu0 0
      %2900 = vmatpush1.bf16.msra.mxu0 0
      %2901 = vmatprep.subr.bf16.mxu0 0
      %2902 = vmatpush1.bf16.msra.mxu0 0
      %2903 = vmatprep.mubr.bf16.mxu0 0
      %2904 = vmatmul.mubr.bf16.gmra.mrb[0].mxu0 %v2866
      %v2905 = vpop.f32.mrb[0].mxu0
      %v2906 = vadd.f32 0.0, %v2905
      %v2907 = vpop.f32.mrb[0].mxu0
      %v2908 = vpop.f32.mrb[0].mxu0
      %v2909 = vpop.f32.mrb[0].mxu0
      %2910 = vdwg.mxu0
      %v2911 = vcombine.high %v2860, 0.0
      %v2913 = vunpack.c.l.s4 1983009808
      %v2914 = vunpack.c.0.s8 %v2913
      %v2915 = vlaneseq
      %v2916 = vshrl.u32 %v2915, 7
      %v2917 = vsub.s32 %v2914, %v2916
      %v2918 = vrot.slane %v2860, %v2917
      %v2920 = vunpack.c.l.s4 1983009808
      %v2921 = vunpack.c.0.s8 %v2920
      %v2922 = vlaneseq
      %v2923 = vshrl.u32 %v2922, 7
      %v2924 = vsub.s32 %v2921, %v2923
      %v2925 = vrot.slane %v2911, %v2924
      %v2926 = vcombine.high %v2906, 0.0
      %v2928 = vunpack.c.l.s4 1983009808
      %v2929 = vunpack.c.0.s8 %v2928
      %v2930 = vlaneseq
      %v2931 = vshrl.u32 %v2930, 7
      %v2932 = vsub.s32 %v2929, %v2931
      %v2933 = vrot.slane %v2906, %v2932
      %v2935 = vunpack.c.l.s4 1983009808
      %v2936 = vunpack.c.0.s8 %v2935
      %v2937 = vlaneseq
      %v2938 = vshrl.u32 %v2937, 7
      %v2939 = vsub.s32 %v2936, %v2938
      %v2940 = vrot.slane %v2926, %v2939
      %v2941 = vcombine.low %v2918, %v2933
      %v2942 = vcombine.high %v2918, %v2933
      %v2944 = vunpack.c.l.s4 1934713408
      %v2945 = vunpack.c.0.s8 %v2944
      %v2946 = vlaneseq
      %v2947 = vshrl.u32 %v2946, 7
      %v2948 = vsub.s32 %v2945, %v2947
      %v2949 = vrot.slane %v2941, %v2948
      %v2951 = vunpack.c.l.s4 1934713408
      %v2952 = vunpack.c.0.s8 %v2951
      %v2953 = vlaneseq
      %v2954 = vshrl.u32 %v2953, 7
      %v2955 = vsub.s32 %v2952, %v2954
      %v2956 = vrot.slane %v2942, %v2955
      %v2957 = vcombine.low %v2925, %v2940
      %v2958 = vcombine.high %v2925, %v2940
      %v2960 = vunpack.c.l.s4 1934713408
      %v2961 = vunpack.c.0.s8 %v2960
      %v2962 = vlaneseq
      %v2963 = vshrl.u32 %v2962, 7
      %v2964 = vsub.s32 %v2961, %v2963
      %v2965 = vrot.slane %v2957, %v2964
      %v2967 = vunpack.c.l.s4 1934713408
      %v2968 = vunpack.c.0.s8 %v2967
      %v2969 = vlaneseq
      %v2970 = vshrl.u32 %v2969, 7
      %v2971 = vsub.s32 %v2968, %v2970
      %v2972 = vrot.slane %v2958, %v2971
      %v2973 = vcombine.high %v2949, 0.0
      %v2974 = vcombine.high %v2956, 0.0
      %v2975 = vcombine.high %v2965, 0.0
      %v2976 = vcombine.high %v2972, 0.0
      %v2977 = vcombine.low %v2949, %v2956
      %v2979 = vunpack.c.l.s4 1983009808
      %v2980 = vunpack.c.0.s8 %v2979
      %v2981 = vlaneseq
      %v2982 = vshrl.u32 %v2981, 7
      %v2983 = vsub.s32 %v2980, %v2982
      %v2984 = vrot.slane %v2977, %v2983
      %v2985 = vcombine.low %v2973, %v2974
      %v2987 = vunpack.c.l.s4 1983009808
      %v2988 = vunpack.c.0.s8 %v2987
      %v2989 = vlaneseq
      %v2990 = vshrl.u32 %v2989, 7
      %v2991 = vsub.s32 %v2988, %v2990
      %v2992 = vrot.slane %v2985, %v2991
      %v2993 = vcombine.low %v2965, %v2972
      %v2995 = vunpack.c.l.s4 1983009808
      %v2996 = vunpack.c.0.s8 %v2995
      %v2997 = vlaneseq
      %v2998 = vshrl.u32 %v2997, 7
      %v2999 = vsub.s32 %v2996, %v2998
      %v3000 = vrot.slane %v2993, %v2999
      %v3001 = vcombine.low %v2975, %v2976
      %v3003 = vunpack.c.l.s4 1983009808
      %v3004 = vunpack.c.0.s8 %v3003
      %v3005 = vlaneseq
      %v3006 = vshrl.u32 %v3005, 7
      %v3007 = vsub.s32 %v3004, %v3006
      %v3008 = vrot.slane %v3001, %v3007
      %v3009 = vcombine.low %v2984, %v2992
      %v3011 = vunpack.c.l.s4 1934713408
      %v3012 = vunpack.c.0.s8 %v3011
      %v3013 = vlaneseq
      %v3014 = vshrl.u32 %v3013, 7
      %v3015 = vsub.s32 %v3012, %v3014
      %v3016 = vrot.slane %v3009, %v3015
      %v3017 = vcombine.low %v3000, %v3008
      %v3019 = vunpack.c.l.s4 1934713408
      %v3020 = vunpack.c.0.s8 %v3019
      %v3021 = vlaneseq
      %v3022 = vshrl.u32 %v3021, 7
      %v3023 = vsub.s32 %v3020, %v3022
      %v3024 = vrot.slane %v3017, %v3023
      %v3025 = vcombine.low %v3016, %v3024
      %v3026 = vcombine.high %v3016, %v3024
      %3028 = vrot.lane.b32.xlu0 %v3026, 16
      %v3029 = vpop.permute.xlu0 %3028
      %v3031 = vsel %vm1451, %v3025, %v3029
      %s3032 = scalar_lea.vmem %s13, 16
      %v3033 = vld [vmem:[%s3032] sm:$0xf]
      %v3034 = vld [vmem:[%s3032 + $0x4] sm:$0xf]
      %v3035 = vld [vmem:[%s3032 + $0x8] sm:$0xf]
      %v3036 = vld [vmem:[%s3032 + $0xc] sm:$0xf]
      %v3037 = vpack.c.bf16 %v3031, %v3031
      %s3038 = scalar_lea.vmem %s14, 1
      %v3039 = vld [vmem:[%s3038] sm:$0x1]
      %v3041 = vlaneseq
      %v3042 = vshrl.u32 %v3041, 7
      %v3043 = vsub.s32 0, %v3042
      %v3044 = vrot.slane %v3039, %v3043
      %v3050 = vunpack.c.l.b16 %v3033
      %v3051 = vunpack.c.l.b16 %v3034
      %v3052 = vunpack.c.l.b16 %v3035
      %v3053 = vunpack.c.l.b16 %v3036
      %v3054 = vpack.c.b16 %v3051, %v3050
      %v3055 = vpack.c.b16 %v3053, %v3052
      %v3057 = vsel %vm852, %v3037, 0
      %v3060 = vsel %vm852, %v3054, 0
      %v3063 = vsel %vm852, %v3055, 0
      %3065 = vmatprep.subr.bf16.mxu0 0
      %3066 = vmatpush1.bf16.xpose.msra.mxu0 %v3060
      %3067 = vmatprep.subr.bf16.mxu0 0
      %3068 = vmatpush1.bf16.xpose.msra.mxu0 %v3063
      %3069 = vmatprep.subr.bf16.mxu0 0
      %3070 = vmatpush1.bf16.xpose.msra.mxu0 0
      %3071 = vmatprep.subr.bf16.mxu0 0
      %3072 = vmatpush1.bf16.xpose.msra.mxu0 0
      %3073 = vmatprep.subr.bf16.mxu0 0
      %3074 = vmatpush1.bf16.xpose.msra.mxu0 0
      %3075 = vmatprep.subr.bf16.mxu0 0
      %3076 = vmatpush1.bf16.xpose.msra.mxu0 0
      %3077 = vmatprep.subr.bf16.mxu0 0
      %3078 = vmatpush1.bf16.xpose.msra.mxu0 0
      %3079 = vmatprep.subr.bf16.mxu0 0
      %3080 = vmatpush1.bf16.xpose.msra.mxu0 0
      %3081 = vmatprep.subr.bf16.mxu0 0
      %3082 = vmatpush1.bf16.xpose.msra.mxu0 0
      %3083 = vmatprep.subr.bf16.mxu0 0
      %3084 = vmatpush1.bf16.xpose.msra.mxu0 0
      %3085 = vmatprep.subr.bf16.mxu0 0
      %3086 = vmatpush1.bf16.xpose.msra.mxu0 0
      %3087 = vmatprep.subr.bf16.mxu0 0
      %3088 = vmatpush1.bf16.xpose.msra.mxu0 0
      %3089 = vmatprep.subr.bf16.mxu0 0
      %3090 = vmatpush1.bf16.xpose.msra.mxu0 0
      %3091 = vmatprep.subr.bf16.mxu0 0
      %3092 = vmatpush1.bf16.xpose.msra.mxu0 0
      %3093 = vmatprep.subr.bf16.mxu0 0
      %3094 = vmatpush1.bf16.xpose.msra.mxu0 0
      %3095 = vmatprep.subr.bf16.mxu0 0
      %3096 = vmatpush1.bf16.xpose.msra.mxu0 0
      %3097 = vmatprep.mubr.bf16.mxu0 0
      %3098 = vmatmul.mubr.bf16.gmra.mrb[0].mxu0 %v3057
      %v3099 = vpop.f32.mrb[0].mxu0
      %v3100 = vadd.f32 %v3044, %v3099
      %v3101 = vpop.f32.mrb[0].mxu0
      %v3102 = vpop.f32.mrb[0].mxu0
      %v3103 = vpop.f32.mrb[0].mxu0
      %3104 = vdwg.mxu0
      %v3105 = vadd.f32 %v2121, %v3100
      %s3106 = scalar_lea.vmem %s15, 1
      %v3107 = vld [vmem:[%s3106] sm:$0x1]
      %s3108 = scalar_lea.vmem %s16, 1
      %v3109 = vld [vmem:[%s3108] sm:$0x1]
      %v3110 = vsel %vm852, %v3105, 0.0
      %3111 = vadd.xlane.f32.xlu0 %v3110
      %v3112 = vpop.xlane.xlu0 %3111
      %v3113 = vmul.f32 %v3112, %v856
      %v3114 = vsub.f32 %v3105, %v3113
      %v3115 = vmul.f32 %v3114, %v3114
      %v3116 = vsel %vm852, %v3115, 0.0
      %3117 = vadd.xlane.f32.xlu0 %v3116
      %v3118 = vpop.xlane.xlu0 %3117
      %v3119 = vmul.f32 %v3118, %v856
      %v3120 = vadd.f32 %v3119, 1e-05
      %v3121 = vrsqrt.pop %v3120
      %v3122 = vmul.f32 %v3114, %v3121
      %v3124 = vlaneseq
      %v3125 = vshrl.u32 %v3124, 7
      %v3126 = vsub.s32 0, %v3125
      %v3127 = vrot.slane %v3107, %v3126
      %v3129 = vmul.f32 %v3122, %v3127
      %v3131 = vlaneseq
      %v3132 = vshrl.u32 %v3131, 7
      %v3133 = vsub.s32 0, %v3132
      %v3134 = vrot.slane %v3109, %v3133
      %v3136 = vadd.f32 %v3129, %v3134
      %s3137 = scalar_lea.vmem %s17, 64
      %v3138 = vld [vmem:[%s3137] sm:$0xf]
      %v3139 = vld [vmem:[%s3137 + $0x4] sm:$0xf]
      %v3140 = vld [vmem:[%s3137 + $0x8] sm:$0xf]
      %v3141 = vld [vmem:[%s3137 + $0xc] sm:$0xf]
      %v3142 = vld [vmem:[%s3137 + $0x10] sm:$0xf]
      %v3143 = vld [vmem:[%s3137 + $0x14] sm:$0xf]
      %v3144 = vld [vmem:[%s3137 + $0x18] sm:$0xf]
      %v3145 = vld [vmem:[%s3137 + $0x1c] sm:$0xf]
      %v3146 = vld [vmem:[%s3137 + $0x20] sm:$0xf]
      %v3147 = vld [vmem:[%s3137 + $0x24] sm:$0xf]
      %v3148 = vld [vmem:[%s3137 + $0x28] sm:$0xf]
      %v3149 = vld [vmem:[%s3137 + $0x2c] sm:$0xf]
      %v3150 = vld [vmem:[%s3137 + $0x30] sm:$0xf]
      %v3151 = vld [vmem:[%s3137 + $0x34] sm:$0xf]
      %v3152 = vld [vmem:[%s3137 + $0x38] sm:$0xf]
      %v3153 = vld [vmem:[%s3137 + $0x3c] sm:$0xf]
      %v3154 = vpack.c.bf16 %v3136, %v3136
      %s3155 = scalar_lea.vmem %s18, 1
      %v3156 = vld [vmem:[%s3155] sm:$0x1]
      %v3158 = vlaneseq
      %v3159 = vshrl.u32 %v3158, 7
      %v3160 = vsub.s32 0, %v3159
      %v3161 = vrot.slane %v3156, %v3160
      %v3179 = vunpack.c.l.b16 %v3138
      %v3180 = vunpack.c.l.b16 %v3139
      %v3181 = vunpack.c.l.b16 %v3140
      %v3182 = vunpack.c.l.b16 %v3141
      %v3183 = vunpack.c.l.b16 %v3142
      %v3184 = vunpack.c.l.b16 %v3143
      %v3185 = vunpack.c.l.b16 %v3144
      %v3186 = vunpack.c.l.b16 %v3145
      %v3187 = vunpack.c.l.b16 %v3146
      %v3188 = vunpack.c.l.b16 %v3147
      %v3189 = vunpack.c.l.b16 %v3148
      %v3190 = vunpack.c.l.b16 %v3149
      %v3191 = vunpack.c.l.b16 %v3150
      %v3192 = vunpack.c.l.b16 %v3151
      %v3193 = vunpack.c.l.b16 %v3152
      %v3194 = vunpack.c.l.b16 %v3153
      %v3195 = vpack.c.b16 %v3180, %v3179
      %v3196 = vpack.c.b16 %v3182, %v3181
      %v3197 = vpack.c.b16 %v3184, %v3183
      %v3198 = vpack.c.b16 %v3186, %v3185
      %v3199 = vpack.c.b16 %v3188, %v3187
      %v3200 = vpack.c.b16 %v3190, %v3189
      %v3201 = vpack.c.b16 %v3192, %v3191
      %v3202 = vpack.c.b16 %v3194, %v3193
      %v3204 = vsel %vm852, %v3154, 0
      %v3207 = vsel %vm852, %v3195, 0
      %v3210 = vsel %vm852, %v3196, 0
      %v3213 = vsel %vm852, %v3197, 0
      %v3216 = vsel %vm852, %v3198, 0
      %v3219 = vsel %vm852, %v3199, 0
      %v3222 = vsel %vm852, %v3200, 0
      %v3225 = vsel %vm852, %v3201, 0
      %v3228 = vsel %vm852, %v3202, 0
      %3230 = vmatprep.subr.bf16.mxu0 0
      %3231 = vmatpush1.bf16.xpose.msra.mxu0 %v3207
      %3232 = vmatprep.subr.bf16.mxu0 0
      %3233 = vmatpush1.bf16.xpose.msra.mxu0 %v3210
      %3234 = vmatprep.subr.bf16.mxu0 0
      %3235 = vmatpush1.bf16.xpose.msra.mxu0 %v3213
      %3236 = vmatprep.subr.bf16.mxu0 0
      %3237 = vmatpush1.bf16.xpose.msra.mxu0 %v3216
      %3238 = vmatprep.subr.bf16.mxu0 0
      %3239 = vmatpush1.bf16.xpose.msra.mxu0 %v3219
      %3240 = vmatprep.subr.bf16.mxu0 0
      %3241 = vmatpush1.bf16.xpose.msra.mxu0 %v3222
      %3242 = vmatprep.subr.bf16.mxu0 0
      %3243 = vmatpush1.bf16.xpose.msra.mxu0 %v3225
      %3244 = vmatprep.subr.bf16.mxu0 0
      %3245 = vmatpush1.bf16.xpose.msra.mxu0 %v3228
      %3246 = vmatprep.subr.bf16.mxu0 0
      %3247 = vmatpush1.bf16.xpose.msra.mxu0 0
      %3248 = vmatprep.subr.bf16.mxu0 0
      %3249 = vmatpush1.bf16.xpose.msra.mxu0 0
      %3250 = vmatprep.subr.bf16.mxu0 0
      %3251 = vmatpush1.bf16.xpose.msra.mxu0 0
      %3252 = vmatprep.subr.bf16.mxu0 0
      %3253 = vmatpush1.bf16.xpose.msra.mxu0 0
      %3254 = vmatprep.subr.bf16.mxu0 0
      %3255 = vmatpush1.bf16.xpose.msra.mxu0 0
      %3256 = vmatprep.subr.bf16.mxu0 0
      %3257 = vmatpush1.bf16.xpose.msra.mxu0 0
      %3258 = vmatprep.subr.bf16.mxu0 0
      %3259 = vmatpush1.bf16.xpose.msra.mxu0 0
      %3260 = vmatprep.subr.bf16.mxu0 0
      %3261 = vmatpush1.bf16.xpose.msra.mxu0 0
      %3262 = vmatprep.mubr.bf16.mxu0 0
      %3263 = vmatmul.mubr.bf16.gmra.mrb[0].mxu0 %v3204
      %v3264 = vpop.f32.mrb[0].mxu0
      %v3265 = vadd.f32 %v3161, %v3264
      %v3266 = vpop.f32.mrb[0].mxu0
      %v3267 = vpop.f32.mrb[0].mxu0
      %v3268 = vpop.f32.mrb[0].mxu0
      %3269 = vdwg.mxu0
      %v3270 = vmax.f32 %v3265, 0.0
      %s3271 = scalar_lea.vmem %s19, 16
      %v3272 = vld [vmem:[%s3271] sm:$0xf]
      %v3273 = vld [vmem:[%s3271 + $0x4] sm:$0xf]
      %v3274 = vld [vmem:[%s3271 + $0x8] sm:$0xf]
      %v3275 = vld [vmem:[%s3271 + $0xc] sm:$0xf]
      %v3276 = vpack.c.bf16 %v3270, %v3270
      %s3277 = scalar_lea.vmem %s20, 1
      %v3278 = vld [vmem:[%s3277] sm:$0x1]
      %v3280 = vlaneseq
      %v3281 = vshrl.u32 %v3280, 7
      %v3282 = vsub.s32 0, %v3281
      %v3283 = vrot.slane %v3278, %v3282
      %v3289 = vunpack.c.l.b16 %v3272
      %v3290 = vunpack.c.l.b16 %v3273
      %v3291 = vunpack.c.l.b16 %v3274
      %v3292 = vunpack.c.l.b16 %v3275
      %v3293 = vpack.c.b16 %v3290, %v3289
      %v3294 = vpack.c.b16 %v3292, %v3291
      %3297 = vmatprep.subr.bf16.mxu0 0
      %3298 = vmatpush1.bf16.xpose.msra.mxu0 %v3293
      %3299 = vmatprep.subr.bf16.mxu0 0
      %3300 = vmatpush1.bf16.xpose.msra.mxu0 %v3294
      %3301 = vmatprep.subr.bf16.mxu0 0
      %3302 = vmatpush1.bf16.xpose.msra.mxu0 0
      %3303 = vmatprep.subr.bf16.mxu0 0
      %3304 = vmatpush1.bf16.xpose.msra.mxu0 0
      %3305 = vmatprep.subr.bf16.mxu0 0
      %3306 = vmatpush1.bf16.xpose.msra.mxu0 0
      %3307 = vmatprep.subr.bf16.mxu0 0
      %3308 = vmatpush1.bf16.xpose.msra.mxu0 0
      %3309 = vmatprep.subr.bf16.mxu0 0
      %3310 = vmatpush1.bf16.xpose.msra.mxu0 0
      %3311 = vmatprep.subr.bf16.mxu0 0
      %3312 = vmatpush1.bf16.xpose.msra.mxu0 0
      %3313 = vmatprep.subr.bf16.mxu0 0
      %3314 = vmatpush1.bf16.xpose.msra.mxu0 0
      %3315 = vmatprep.subr.bf16.mxu0 0
      %3316 = vmatpush1.bf16.xpose.msra.mxu0 0
      %3317 = vmatprep.subr.bf16.mxu0 0
      %3318 = vmatpush1.bf16.xpose.msra.mxu0 0
      %3319 = vmatprep.subr.bf16.mxu0 0
      %3320 = vmatpush1.bf16.xpose.msra.mxu0 0
      %3321 = vmatprep.subr.bf16.mxu0 0
      %3322 = vmatpush1.bf16.xpose.msra.mxu0 0
      %3323 = vmatprep.subr.bf16.mxu0 0
      %3324 = vmatpush1.bf16.xpose.msra.mxu0 0
      %3325 = vmatprep.subr.bf16.mxu0 0
      %3326 = vmatpush1.bf16.xpose.msra.mxu0 0
      %3327 = vmatprep.subr.bf16.mxu0 0
      %3328 = vmatpush1.bf16.xpose.msra.mxu0 0
      %3329 = vmatprep.mubr.bf16.mxu0 0
      %3330 = vmatmul.mubr.bf16.gmra.mrb[0].mxu0 %v3276
      %v3331 = vpop.f32.mrb[0].mxu0
      %v3332 = vadd.f32 %v3283, %v3331
      %v3333 = vpop.f32.mrb[0].mxu0
      %v3334 = vpop.f32.mrb[0].mxu0
      %v3335 = vpop.f32.mrb[0].mxu0
      %3336 = vdwg.mxu0
      %v3337 = vadd.f32 %v3136, %v3332
      %s3338 = scalar_lea.vmem %s21, 1
      %v3339 = vld [vmem:[%s3338] sm:$0x1]
      %s3340 = scalar_lea.vmem %s22, 1
      %v3341 = vld [vmem:[%s3340] sm:$0x1]
      %v3342 = vsel %vm852, %v3337, 0.0
      %3343 = vadd.xlane.f32.xlu0 %v3342
      %v3344 = vpop.xlane.xlu0 %3343
      %v3345 = vmul.f32 %v3344, %v856
      %v3346 = vsub.f32 %v3337, %v3345
      %v3347 = vmul.f32 %v3346, %v3346
      %v3348 = vsel %vm852, %v3347, 0.0
      %3349 = vadd.xlane.f32.xlu0 %v3348
      %v3350 = vpop.xlane.xlu0 %3349
      %v3351 = vmul.f32 %v3350, %v856
      %v3352 = vadd.f32 %v3351, 1e-05
      %v3353 = vrsqrt.pop %v3352
      %v3354 = vmul.f32 %v3346, %v3353
      %v3356 = vlaneseq
      %v3357 = vshrl.u32 %v3356, 7
      %v3358 = vsub.s32 0, %v3357
      %v3359 = vrot.slane %v3339, %v3358
      %v3361 = vmul.f32 %v3354, %v3359
      %v3363 = vlaneseq
      %v3364 = vshrl.u32 %v3363, 7
      %v3365 = vsub.s32 0, %v3364
      %v3366 = vrot.slane %v3341, %v3365
      %v3368 = vadd.f32 %v3361, %v3366
      %v3369 = vld [vmem:[%s839] sm:$0x1]
      %v3370 = vpack.c.bf16 %v3369, %v3369
      %v3371 = vpack.c.bf16 %v3368, %v3368
      %vm3372 = vcmask 56320
      %v3374 = vsel %vm3372, %v3370, 0
      %vm3376 = vcmask 1042432
      %v3377 = vsel %vm3376, 4294967295, 65535
      %v3378 = vsel %vm1584, %v3377, 0
      %v3380 = vand.u32 %v3371, %v3378
      %3382 = vmatprep.subr.bf16.mxu0 0
      %3383 = vmatpush1.bf16.msra.mxu0 %v3380
      %3384 = vmatprep.subr.bf16.mxu0 0
      %3385 = vmatpush1.bf16.msra.mxu0 0
      %3386 = vmatprep.subr.bf16.mxu0 0
      %3387 = vmatpush1.bf16.msra.mxu0 0
      %3388 = vmatprep.subr.bf16.mxu0 0
      %3389 = vmatpush1.bf16.msra.mxu0 0
      %3390 = vmatprep.subr.bf16.mxu0 0
      %3391 = vmatpush1.bf16.msra.mxu0 0
      %3392 = vmatprep.subr.bf16.mxu0 0
      %3393 = vmatpush1.bf16.msra.mxu0 0
      %3394 = vmatprep.subr.bf16.mxu0 0
      %3395 = vmatpush1.bf16.msra.mxu0 0
      %3396 = vmatprep.subr.bf16.mxu0 0
      %3397 = vmatpush1.bf16.msra.mxu0 0
      %3398 = vmatprep.subr.bf16.mxu0 0
      %3399 = vmatpush1.bf16.msra.mxu0 0
      %3400 = vmatprep.subr.bf16.mxu0 0
      %3401 = vmatpush1.bf16.msra.mxu0 0
      %3402 = vmatprep.subr.bf16.mxu0 0
      %3403 = vmatpush1.bf16.msra.mxu0 0
      %3404 = vmatprep.subr.bf16.mxu0 0
      %3405 = vmatpush1.bf16.msra.mxu0 0
      %3406 = vmatprep.subr.bf16.mxu0 0
      %3407 = vmatpush1.bf16.msra.mxu0 0
      %3408 = vmatprep.subr.bf16.mxu0 0
      %3409 = vmatpush1.bf16.msra.mxu0 0
      %3410 = vmatprep.subr.bf16.mxu0 0
      %3411 = vmatpush1.bf16.msra.mxu0 0
      %3412 = vmatprep.subr.bf16.mxu0 0
      %3413 = vmatpush1.bf16.msra.mxu0 0
      %3414 = vmatprep.mubr.bf16.mxu0 0
      %3415 = vmatmul.mubr.bf16.gmra.mrb[0].mxu0 %v3374
      %v3416 = vpop.f32.mrb[0].mxu0
      %v3417 = vadd.f32 0.0, %v3416
      %v3418 = vpop.f32.mrb[0].mxu0
      %v3419 = vpop.f32.mrb[0].mxu0
      %v3420 = vpop.f32.mrb[0].mxu0
      %3421 = vdwg.mxu0
      %v3422 = vld [vmem:[%s842] sm:$0x1]
      %v3423 = vrcp.pop %v3422
      %3425 = vset.pattern.permute.xlu0 0
      %3426 = vperm.xlu0 %3425, %v3423
      %v3427 = vpop.permute.xlu0 %3426
      %v3429 = vlaneseq
      %v3430 = vshrl.u32 %v3429, 7
      %v3431 = vsub.s32 0, %v3430
      %v3432 = vrot.slane %v3427, %v3431
      %v3433 = vmul.f32 %v3417, %v3432
      %v3434 = vld [vmem:[%s23] sm:$0x1]
      %v3435 = vpack.c.bf16 %v3433, %v3433
      %v3436 = vunpack.c.l.bf16 %v3435
      %v3437 = vunpack.c.l.bf16 %v3434
      %v3438 = vmul.f32 %v3436, %v3437
      %vm3439 = vcmask 253952
      %v3440 = vsel %vm3439, %v3438, 0.0
      %3441 = vadd.xlane.f32.xlu0 %v3440
      %v3442 = vpop.xlane.xlu0 %3441
      %v3443 = vld [vmem:[%s24] sm:$0x1]
      %v3444 = vunpack.c.l.bf16 %v3371
      %v3445 = vunpack.c.l.bf16 %v3443
      %v3447 = vlaneseq
      %v3448 = vshrl.u32 %v3447, 7
      %v3449 = vsub.s32 0, %v3448
      %v3450 = vrot.slane %v3445, %v3449
      %v3452 = vmul.f32 %v3444, %v3450
      %vm3453 = vcmask 261127
      %v3454 = vsel %vm3453, %v3452, 0.0
      %3455 = vadd.xlane.f32.xlu0 %v3454
      %v3456 = vpop.xlane.xlu0 %3455
      %v3458 = vrot.slane %v3456, 7
      %v3460 = vadd.f32 %v3442, %v3458
      %v3461 = vld [vmem:[#allocation2] sm:$0x1]
      %v3462 = vadd.f32 %v3460, %v3461
      %v3463 = vxor.u32 %v3462, 2147483648
      %v3464 = vmul.f32 %v3463, 1.442695
      %v3465 = vpow.pop %v3464
      %v3466 = vadd.f32 %v3465, 1.0
      %v3467 = vrcp.pop %v3466
      %v3468 = vmul.f32 1.0, %v3467
      %vm3469 = vcmask 0
      %3470 = vst.msk [vmem:[%s845] sm:$0x1] %vm3469, %v3468
      %p3471 = scmp.lt.s32.totalorder %s39, 1
      %s3472 = scalar_select %p3471, %s39, 1
      %s3473 = scalar_lea.vmem %s26, %s3472
      // Predicated region
      $region125: #{acmr_forward.1} parent=123 // pred_check
        %p3474 = pneg %p628
      $region126: #{acmr_forward.1} parent=123 // pred_check_branch
        %3476 = sbr.rel (%p3474) target = $region128
      $region127: #{acmr_forward.1} parent=123 // pred_region
        _
      $region128: #{acmr_forward.1} parent=123 // pred_fallthru
        _
    $region124: #{acmr_forward.1} parent=5 // pred_fallthru
      _
    %p3477 = scmp.le.s32.totalorder 2, %s34
    // Predicated region
    $region129: #{acmr_forward.1} parent=5 // pred_check
      %p3478 = pneg %p3477
    $region130: #{acmr_forward.1} parent=5 // pred_check_branch
      %3480 = sbr.rel (%p3478) target = $region132
    $region131: #{acmr_forward.1} parent=5 // pred_region
      %s3481 = ssub.s32 %s34, 2
      // Predicated region
      $region133: #{acmr_forward.1} parent=131 // pred_check
        %p3482 = pneg %p634
      $region134: #{acmr_forward.1} parent=131 // pred_check_branch
        %3484 = sbr.rel (%p3482) target = $region136
      $region135: #{acmr_forward.1} parent=131 // pred_region
        %p3485 = scmp.lt.s32.totalorder %s40, 1
        %s3486 = scalar_select %p3485, %s40, 1
        %s3487 = scalar_lea.vmem %s26, %s3486
      $region136: #{acmr_forward.1} parent=131 // pred_fallthru
        _
    $region132: #{acmr_forward.1} parent=5 // pred_fallthru
      _
  $region6: #{acmr_forward.1} parent=0 // loop_footer
    %s38 = sadd.s32 1, %s34
  $region7: #{acmr_forward.1} parent=0 // loop_footer_branch
    %33 = sbr.rel target = $region3
  $region8: #{acmr_forward.1} parent=0 // loop_exit
    _

</llo_original>
